<compile_context>
chip_gen: v7x
topology: tpu7x:2x2x1
jax: 0.10.0
libtpu: 0.0.40
codegen_flags: <defaults>
</compile_context>

<pallas_src>
import functools
import math

import jax
import jax.numpy as jnp
from jax.experimental import pallas as pl
from jax.experimental.pallas import tpu as pltpu


# ----------------------------------------------------------------------------
# grid generation (replicates gen_grid_up from the PCN codebase)
# ----------------------------------------------------------------------------
def gen_grid_up(up_ratio, grid_size=0.05):
    sqrted = int(math.sqrt(up_ratio)) + 1
    num_x, num_y = 1, up_ratio
    for i in reversed(range(1, sqrted + 1)):
        if up_ratio % i == 0:
            num_x = i
            num_y = up_ratio // i
            break
    grid_x = jnp.linspace(-grid_size, grid_size, num_x)
    grid_y = jnp.linspace(-grid_size, grid_size, num_y)
    xg, yg = jnp.meshgrid(grid_x, grid_y, indexing="ij")
    grid = jnp.stack([xg, yg], axis=-1).reshape(-1, 2).T  # (2, up_ratio)
    return grid.astype(jnp.float32)


def _pick_tile_pad(n, target):
    """Return (tile, padded_n) with padded_n % tile == 0.

    Prefers a 128-multiple divisor of n (no padding).  Otherwise pads n up to a
    multiple of 128 and tiles the padded size (pad-and-mask), so we never fall
    back to a single huge block for awkward n (e.g. 3*num_coarse = 3000)."""
    if n < 128:
        return n, n
    top = min(target, (n // 128) * 128)
    for cand in range(top, 127, -128):
        if n % cand == 0:
            return cand, n
    padded = ((n + 127) // 128) * 128
    top = min(target, padded)
    for cand in range(top - top % 128, 127, -128):
        if padded % cand == 0:
            return cand, padded
    return 128, padded


# ----------------------------------------------------------------------------
# Pallas kernels
# ----------------------------------------------------------------------------
def _fc3_kernel(h_ref, w3_ref, b3_ref, out_ref):
    # Pure fc3 column-streaming matmul: bf16 operands, f32 accumulation + bias.
    out_ref[...] = (
        jnp.dot(h_ref[...], w3_ref[...], preferred_element_type=jnp.float32)
        + b3_ref[...])


def _point_mlp_kernel(sf_ref, gb_ref, w1_ref, w2_ref, b2_ref, w3_ref, b3_ref,
                      out_ref):
    # Channel-major (NCL) per-point MLP for one (batch, lane-tile) block:
    #   conv1 over the 5 small channels (f32, negligible) + hoisted
    #   (global + bias) term -> relu -> conv2 (bf16 MXU) -> relu
    #   -> conv3 (bf16 MXU) + center residual.  Output store is lane-dense.
    sf = sf_ref[0]                                              # (5, tile_n) f32
    h = jnp.dot(w1_ref[...], sf, preferred_element_type=jnp.float32)
    h = jnp.maximum(h + gb_ref[0], 0.0)                         # (512, tile_n) f32
    h = jnp.dot(w2_ref[...], h.astype(jnp.bfloat16),
                preferred_element_type=jnp.float32) + b2_ref[...]
    h = jnp.maximum(h, 0.0)
    out = jnp.dot(w3_ref[...], h.astype(jnp.bfloat16),
                  preferred_element_type=jnp.float32) + b3_ref[...]
    # channels 0:3 of sf are point_feat == center (residual, f32, lane-dense)
    out_ref[0] = out + sf[0:3, :]


# ----------------------------------------------------------------------------
# Wrappers around pallas_call
# ----------------------------------------------------------------------------
def fc3_stream(h, w3, b3, tile_out_target=2048):
    """coarse_flat = h @ W3 + b3, streaming the (1024, 3*num_coarse) weight in
    lane-dense column tiles (bf16 weights -> half the HBM bytes)."""
    B, D = h.shape
    Bp = max(16, ((B + 15) // 16) * 16)      # bf16 sublane-align the batch dim
    h_bf = h.astype(jnp.bfloat16)
    if Bp != B:
        h_bf = jnp.pad(h_bf, ((0, Bp - B), (0, 0)))
    out_cols = w3.shape[1]
    tile_out, padded = _pick_tile_pad(out_cols, tile_out_target)
    w3_bf = w3.astype(jnp.bfloat16)
    if padded != out_cols:
        w3_bf = jnp.pad(w3_bf, ((0, 0), (0, padded - out_cols)))
        b3 = jnp.pad(b3, ((0, 0), (0, padded - out_cols)))
    n_tiles = padded // tile_out

    out = pl.pallas_call(
        _fc3_kernel,
        out_shape=jax.ShapeDtypeStruct((Bp, padded), jnp.float32),
        grid=(n_tiles,),
        in_specs=[
            pl.BlockSpec((Bp, D), lambda j: (0, 0)),        # resident activations
            pl.BlockSpec((D, tile_out), lambda j: (0, j)),  # streamed fc3 W tile
            pl.BlockSpec((1, tile_out), lambda j: (0, j)),  # streamed fc3 b tile
        ],
        out_specs=pl.BlockSpec((Bp, tile_out), lambda j: (0, j)),
        compiler_params=pltpu.CompilerParams(
            dimension_semantics=("parallel",)),   # no cross-step deps anymore
    )(h_bf, w3_bf, b3)
    return out[:B, :out_cols]


def point_mlp(sf, gb, w1s, w2, b2, w3, b3, tile_n_target=1024):
    B, C, L = sf.shape
    hidden = gb.shape[1]
    tile_n, Lp = _pick_tile_pad(L, tile_n_target)
    if Lp != L:
        sf = jnp.pad(sf, ((0, 0), (0, 0), (0, Lp - L)))
    n_tiles = Lp // tile_n

    def full(shape):
        return pl.BlockSpec(shape, lambda b, j: (0,) * len(shape))

    fine = pl.pallas_call(
        _point_mlp_kernel,
        out_shape=jax.ShapeDtypeStruct((B, 3, Lp), jnp.float32),
        grid=(B, n_tiles),
        in_specs=[
            pl.BlockSpec((1, C, tile_n), lambda b, j: (b, 0, j)),   # small feats
            pl.BlockSpec((1, hidden, 1), lambda b, j: (b, 0, 0)),   # global + b1
            full(w1s.shape),                                        # conv1 (small)
            full(w2.shape), full(b2.shape),                         # conv2
            full(w3.shape), full(b3.shape),                         # conv3
        ],
        out_specs=pl.BlockSpec((1, 3, tile_n), lambda b, j: (b, 0, j)),
        compiler_params=pltpu.CompilerParams(
            dimension_semantics=("parallel", "parallel")),          # megacore OK
    )(sf, gb, w1s, w2, b2, w3, b3)
    return fine[:, :, :L] if Lp != L else fine


# ----------------------------------------------------------------------------
# Full forward (glue in plain JAX, hot paths in Pallas)
# ----------------------------------------------------------------------------
def pcn_decoder_forward(x, params, grid, num_coarse, num_fine, scale):
    B = x.shape[0]

    # ---- coarse branch: fc1/fc2 in XLA (tiny M), fc3 streamed in Pallas ----
    h = jnp.maximum(
        jnp.dot(x, params["fc1_w"], precision="highest") + params["fc1_b"], 0.0)
    h = jnp.maximum(
        jnp.dot(h, params["fc2_w"], precision="highest") + params["fc2_b"], 0.0)
    coarse = fc3_stream(h, params["fc3_w"], params["fc3_b"]).reshape(
        B, 3, num_coarse)

    # ---- small per-point features (5 channels, channel-major / NCL) --------
    grid_feat = jnp.broadcast_to(
        jnp.tile(grid, (1, num_coarse))[None], (B, 2, num_fine))
    point_feat = jnp.repeat(coarse, scale, axis=2)              # (B, 3, num_fine)
    sf = jnp.concatenate([point_feat, grid_feat], axis=1)       # (B, 5, num_fine)

    # ---- hoist conv1's global-feature contribution (+ fold conv1 bias) -----
    # conv1 input channels are [grid(2), point(3), global=x(1024)]; the x part
    # is identical for every fine point of a batch element, so its matmul runs
    # once per batch element here (f32/highest) instead of once per point.
    w1 = params["conv1_w"]                                      # (1029, 512)
    hidden = w1.shape[1]
    g = jnp.dot(x, w1[5:, :], precision="highest")              # (B, 512)
    gb = (g + params["conv1_b"]).reshape(B, hidden, 1)          # bias folded in

    # kernel-layout (out, in) weights matching sf channel order
    # sf channels: [point(0:3), grid(3:5)]
    w1s = jnp.concatenate([w1[2:5, :], w1[0:2, :]], axis=0).T   # (512, 5) f32
    w2 = params["conv2_w"].T.astype(jnp.bfloat16)               # (512, 512)
    b2 = params["conv2_b"].T                                    # (512, 1) f32
    w3 = params["conv3_w"].T.astype(jnp.bfloat16)               # (3, 512)
    b3 = params["conv3_b"].T                                    # (3, 1) f32

    # ---- fine branch (conv1/conv2/conv3 + center), lane-dense output -------
    fine = point_mlp(sf, gb, w1s, w2, b2, w3, b3)               # (B, 3, num_fine)
    return coarse, fine


# ----------------------------------------------------------------------------
# Deterministic parameter init (shapes follow PCN_decoder.__init__)
# ----------------------------------------------------------------------------
def init_params(key, num_coarse, cat_feature_num):
    def uni(k, shape, fan_in):
        bound = 1.0 / math.sqrt(fan_in)
        return jax.random.uniform(k, shape, jnp.float32, -bound, bound)

    ks = jax.random.split(key, 12)
    return {
        # Linear weights stored pre-transposed as (in, out); biases as (1, out)
        "fc1_w": uni(ks[0], (1024, 1024), 1024),
        "fc1_b": uni(ks[1], (1, 1024), 1024),
        "fc2_w": uni(ks[2], (1024, 1024), 1024),
        "fc2_b": uni(ks[3], (1, 1024), 1024),
        "fc3_w": uni(ks[4], (1024, 3 * num_coarse), 1024),
        "fc3_b": uni(ks[5], (1, 3 * num_coarse), 1024),
        # Conv1d(k=1) weights (out, in, 1) stored as (in, out)
        "conv1_w": uni(ks[6], (cat_feature_num, 512), cat_feature_num),
        "conv1_b": uni(ks[7], (1, 512), cat_feature_num),
        "conv2_w": uni(ks[8], (512, 512), 512),
        "conv2_b": uni(ks[9], (1, 512), 512),
        "conv3_w": uni(ks[10], (512, 3), 512),
        "conv3_b": uni(ks[11], (1, 3), 512),
    }


# ----------------------------------------------------------------------------
# Pure-jnp f32 reference for a correctness sanity check
# ----------------------------------------------------------------------------
def reference_forward(x, p, grid, num_coarse, num_fine, scale):
    hp = "highest"
    B = x.shape[0]
    h = jnp.maximum(jnp.dot(x, p["fc1_w"], precision=hp) + p["fc1_b"], 0.0)
    h = jnp.maximum(jnp.dot(h, p["fc2_w"], precision=hp) + p["fc2_b"], 0.0)
    coarse = (jnp.dot(h, p["fc3_w"], precision=hp)
              + p["fc3_b"]).reshape(B, 3, num_coarse)
    grid_feat = jnp.broadcast_to(jnp.tile(grid, (1, num_coarse))[None],
                                 (B, 2, num_fine))
    point_feat = jnp.repeat(coarse, scale, axis=2)
    global_feat = jnp.broadcast_to(x[:, :, None], (B, x.shape[1], num_fine))
    feat = jnp.concatenate([grid_feat, point_feat, global_feat], axis=1)
    f = jnp.transpose(feat, (0, 2, 1))
    f = jnp.maximum(jnp.dot(f, p["conv1_w"], precision=hp) + p["conv1_b"], 0.0)
    f = jnp.maximum(jnp.dot(f, p["conv2_w"], precision=hp) + p["conv2_b"], 0.0)
    f = jnp.dot(f, p["conv3_w"], precision=hp) + p["conv3_b"]
    fine = jnp.transpose(f, (0, 2, 1)) + point_feat
    return coarse, fine


if __name__ == "__main__":
    # Small, module-consistent shapes
    B = 2
    num_coarse = 16
    scale = 4
    num_fine = scale * num_coarse                      # 64
    cat_feature_num = 2 + 3 + 1024                     # 1029

    key = jax.random.PRNGKey(0)
    k_params, k_x = jax.random.split(key)
    params = init_params(k_params, num_coarse, cat_feature_num)
    x = jax.random.normal(k_x, (B, 1024), jnp.float32)
    grid = gen_grid_up(2 ** int(math.log2(scale)), 0.05)   # (2, scale)

    fwd = jax.jit(functools.partial(pcn_decoder_forward, num_coarse=num_coarse,
                                    num_fine=num_fine, scale=scale))
    coarse, fine = fwd(x, params, grid)
    jax.block_until_ready((coarse, fine))

    coarse_ref, fine_ref = reference_forward(x, params, grid,
                                             num_coarse, num_fine, scale)
    assert coarse.shape == (B, 3, num_coarse)
    assert fine.shape == (B, 3, num_fine)
    # bf16 matmul operands (f32 accumulation) in the kernels -> loosened
    # tolerances vs the pure-f32 reference.
    assert jnp.allclose(coarse, coarse_ref, atol=3e-2, rtol=3e-2)
    assert jnp.allclose(fine, fine_ref, atol=3e-2, rtol=3e-2)

    print("KERNEL_OK")
</pallas_src>

<mosaic_0001>
module attributes {stable_mosaic.version = 11 : i64} {
  func.func @_fc3_kernel(%arg0: i32, %arg1: memref<16x1024xbf16, #tpu.memory_space<vmem>>, %arg2: memref<1024x48xbf16, #tpu.memory_space<vmem>>, %arg3: memref<1x48xf32, #tpu.memory_space<vmem>>, %arg4: memref<16x48xf32, #tpu.memory_space<vmem>>) attributes {dimension_semantics = [#tpu.dimension_semantics<parallel>], iteration_bounds = array<i64: 1>, scalar_prefetch = 0 : i64, scratch_operands = 0 : i64, tpu.core_type = #tpu.core_type<tc>, window_params = [{pipeline_mode = #tpu.pipeline_mode<synchronous>, transform_indices = @transform_0, window_bounds = array<i64: 16, 1024>}, {transform_indices = @transform_1, window_bounds = array<i64: 1024, 48>}, {transform_indices = @transform_2, window_bounds = array<i64: 1, 48>}, {transform_indices = @transform_3, window_bounds = array<i64: 16, 48>}]} {
    %c0 = arith.constant 0 : index
    %c0_0 = arith.constant 0 : index
    %0 = vector.load %arg1[%c0, %c0_0] : memref<16x1024xbf16, #tpu.memory_space<vmem>>, vector<16x1024xbf16>
    %c0_1 = arith.constant 0 : index
    %c0_2 = arith.constant 0 : index
    %1 = vector.load %arg2[%c0_1, %c0_2] : memref<1024x48xbf16, #tpu.memory_space<vmem>>, vector<1024x48xbf16>
    %cst = arith.constant dense<0.000000e+00> : vector<16x48xf32>
    %2 = tpu.matmul %0, %1, %cst {dimension_numbers = #tpu.dot_dimension_numbers<[1], [0], [0], [1], [0, 0, 1, 1], [], []>} : vector<16x1024xbf16>, vector<1024x48xbf16>, vector<16x48xf32> -> vector<16x48xf32>
    %c0_3 = arith.constant 0 : index
    %c0_4 = arith.constant 0 : index
    %3 = vector.load %arg3[%c0_3, %c0_4] : memref<1x48xf32, #tpu.memory_space<vmem>>, vector<1x48xf32>
    %4 = vector.broadcast %3 : vector<1x48xf32> to vector<16x48xf32>
    %5 = arith.addf %2, %4 : vector<16x48xf32>
    %c0_5 = arith.constant 0 : index
    %c0_6 = arith.constant 0 : index
    %6 = vector.load %arg4[%c0_5, %c0_6] : memref<16x48xf32, #tpu.memory_space<vmem>>, vector<16x48xf32>
    tpu.vector_store %arg4[%c0_5, %c0_6], %5 {strides = array<i32>} : memref<16x48xf32, #tpu.memory_space<vmem>>, vector<16x48xf32>,
    return
  }
  func.func @transform_0(%arg0: i32) -> (i32, i32) {
    %c0_i32 = arith.constant 0 : i32
    %c0_i32_0 = arith.constant 0 : i32
    %c0_i32_1 = arith.constant 0 : i32
    return %c0_i32, %c0_i32_0 : i32, i32
  }
  func.func @transform_1(%arg0: i32) -> (i32, i32) {
    %c0_i32 = arith.constant 0 : i32
    %c0_i32_0 = arith.constant 0 : i32
    return %c0_i32, %arg0 : i32, i32
  }
  func.func @transform_2(%arg0: i32) -> (i32, i32) {
    %c0_i32 = arith.constant 0 : i32
    %c0_i32_0 = arith.constant 0 : i32
    return %c0_i32, %arg0 : i32, i32
  }
  func.func @transform_3(%arg0: i32) -> (i32, i32) {
    %c0_i32 = arith.constant 0 : i32
    %c0_i32_0 = arith.constant 0 : i32
    return %c0_i32, %arg0 : i32, i32
  }
}

module attributes {stable_mosaic.version = 11 : i64} {
  func.func @_point_mlp_kernel(%arg0: i32, %arg1: i32, %arg2: memref<1x5x64xf32, #tpu.memory_space<vmem>>, %arg3: memref<1x512x1xf32, #tpu.memory_space<vmem>>, %arg4: memref<512x5xf32, #tpu.memory_space<vmem>>, %arg5: memref<512x512xbf16, #tpu.memory_space<vmem>>, %arg6: memref<512x1xf32, #tpu.memory_space<vmem>>, %arg7: memref<3x512xbf16, #tpu.memory_space<vmem>>, %arg8: memref<3x1xf32, #tpu.memory_space<vmem>>, %arg9: memref<1x3x64xf32, #tpu.memory_space<vmem>>) attributes {dimension_semantics = [#tpu.dimension_semantics<parallel>, #tpu.dimension_semantics<parallel>], iteration_bounds = array<i64: 2, 1>, scalar_prefetch = 0 : i64, scratch_operands = 0 : i64, tpu.core_type = #tpu.core_type<tc>, window_params = [{transform_indices = @transform_0, window_bounds = array<i64: 1, 5, 64>}, {transform_indices = @transform_1, window_bounds = array<i64: 1, 512, 1>}, {pipeline_mode = #tpu.pipeline_mode<synchronous>, transform_indices = @transform_2, window_bounds = array<i64: 512, 5>}, {pipeline_mode = #tpu.pipeline_mode<synchronous>, transform_indices = @transform_3, window_bounds = array<i64: 512, 512>}, {pipeline_mode = #tpu.pipeline_mode<synchronous>, transform_indices = @transform_4, window_bounds = array<i64: 512, 1>}, {pipeline_mode = #tpu.pipeline_mode<synchronous>, transform_indices = @transform_5, window_bounds = array<i64: 3, 512>}, {pipeline_mode = #tpu.pipeline_mode<synchronous>, transform_indices = @transform_6, window_bounds = array<i64: 3, 1>}, {transform_indices = @transform_7, window_bounds = array<i64: 1, 3, 64>}]} {
    %c0 = arith.constant 0 : index
    %c0_0 = arith.constant 0 : index
    %c0_1 = arith.constant 0 : index
    %0 = vector.load %arg2[%c0, %c0_0, %c0_1] : memref<1x5x64xf32, #tpu.memory_space<vmem>>, vector<1x5x64xf32>
    %1 = vector.shape_cast %0 : vector<1x5x64xf32> to vector<5x64xf32>
    %c0_2 = arith.constant 0 : index
    %c0_3 = arith.constant 0 : index
    %2 = vector.load %arg4[%c0_2, %c0_3] : memref<512x5xf32, #tpu.memory_space<vmem>>, vector<512x5xf32>
    %cst = arith.constant dense<0.000000e+00> : vector<512x64xf32>
    %3 = tpu.matmul %2, %1, %cst {dimension_numbers = #tpu.dot_dimension_numbers<[1], [0], [0], [1], [0, 0, 1, 1], [], []>} : vector<512x5xf32>, vector<5x64xf32>, vector<512x64xf32> -> vector<512x64xf32>
    %c0_4 = arith.constant 0 : index
    %c0_5 = arith.constant 0 : index
    %c0_6 = arith.constant 0 : index
    %4 = vector.load %arg3[%c0_4, %c0_5, %c0_6] : memref<1x512x1xf32, #tpu.memory_space<vmem>>, vector<1x512x1xf32>
    %5 = vector.shape_cast %4 : vector<1x512x1xf32> to vector<512x1xf32>
    %6 = vector.broadcast %5 : vector<512x1xf32> to vector<512x64xf32>
    %7 = arith.addf %3, %6 : vector<512x64xf32>
    %cst_7 = arith.constant 0.000000e+00 : f32
    %8 = vector.broadcast %cst_7 : f32 to vector<512x64xf32>
    %9 = arith.maximumf %7, %8 : vector<512x64xf32>
    %c0_8 = arith.constant 0 : index
    %c0_9 = arith.constant 0 : index
    %10 = vector.load %arg5[%c0_8, %c0_9] : memref<512x512xbf16, #tpu.memory_space<vmem>>, vector<512x512xbf16>
    %11 = arith.truncf %9 : vector<512x64xf32> to vector<512x64xbf16>
    %cst_10 = arith.constant dense<0.000000e+00> : vector<512x64xf32>
    %12 = tpu.matmul %10, %11, %cst_10 {dimension_numbers = #tpu.dot_dimension_numbers<[1], [0], [0], [1], [0, 0, 1, 1], [], []>} : vector<512x512xbf16>, vector<512x64xbf16>, vector<512x64xf32> -> vector<512x64xf32>
    %c0_11 = arith.constant 0 : index
    %c0_12 = arith.constant 0 : index
    %13 = vector.load %arg6[%c0_11, %c0_12] : memref<512x1xf32, #tpu.memory_space<vmem>>, vector<512x1xf32>
    %14 = vector.broadcast %13 : vector<512x1xf32> to vector<512x64xf32>
    %15 = arith.addf %12, %14 : vector<512x64xf32>
    %cst_13 = arith.constant 0.000000e+00 : f32
    %16 = vector.broadcast %cst_13 : f32 to vector<512x64xf32>
    %17 = arith.maximumf %15, %16 : vector<512x64xf32>
    %c0_14 = arith.constant 0 : index
    %c0_15 = arith.constant 0 : index
    %18 = vector.load %arg7[%c0_14, %c0_15] : memref<3x512xbf16, #tpu.memory_space<vmem>>, vector<3x512xbf16>
    %19 = arith.truncf %17 : vector<512x64xf32> to vector<512x64xbf16>
    %cst_16 = arith.constant dense<0.000000e+00> : vector<3x64xf32>
    %20 = tpu.matmul %18, %19, %cst_16 {dimension_numbers = #tpu.dot_dimension_numbers<[1], [0], [0], [1], [0, 0, 1, 1], [], []>} : vector<3x512xbf16>, vector<512x64xbf16>, vector<3x64xf32> -> vector<3x64xf32>
    %c0_17 = arith.constant 0 : index
    %c0_18 = arith.constant 0 : index
    %21 = vector.load %arg8[%c0_17, %c0_18] : memref<3x1xf32, #tpu.memory_space<vmem>>, vector<3x1xf32>
    %22 = vector.broadcast %21 : vector<3x1xf32> to vector<3x64xf32>
    %23 = arith.addf %20, %22 : vector<3x64xf32>
    %24 = vector.extract_strided_slice %1 {offsets = [0, 0], sizes = [3, 64], strides = [1, 1]} : vector<5x64xf32> to vector<3x64xf32>
    %25 = arith.addf %23, %24 : vector<3x64xf32>
    %c0_19 = arith.constant 0 : index
    %c0_20 = arith.constant 0 : index
    %c0_21 = arith.constant 0 : index
    %26 = vector.load %arg9[%c0_19, %c0_20, %c0_21] : memref<1x3x64xf32, #tpu.memory_space<vmem>>, vector<1x3x64xf32>
    %27 = vector.shape_cast %26 : vector<1x3x64xf32> to vector<3x64xf32>
    %28 = vector.shape_cast %25 : vector<3x64xf32> to vector<1x3x64xf32>
    tpu.vector_store %arg9[%c0_19, %c0_20, %c0_21], %28 {strides = array<i32>} : memref<1x3x64xf32, #tpu.memory_space<vmem>>, vector<1x3x64xf32>,
    return
  }
  func.func @transform_0(%arg0: i32, %arg1: i32) -> (i32, i32, i32) {
    %c0_i32 = arith.constant 0 : i32
    %c0_i32_0 = arith.constant 0 : i32
    return %arg0, %c0_i32, %arg1 : i32, i32, i32
  }
  func.func @transform_1(%arg0: i32, %arg1: i32) -> (i32, i32, i32) {
    %c0_i32 = arith.constant 0 : i32
    %c0_i32_0 = arith.constant 0 : i32
    %c0_i32_1 = arith.constant 0 : i32
    return %arg0, %c0_i32, %c0_i32_0 : i32, i32, i32
  }
  func.func @transform_2(%arg0: i32, %arg1: i32) -> (i32, i32) {
    %c0_i32 = arith.constant 0 : i32
    %c0_i32_0 = arith.constant 0 : i32
    %c0_i32_1 = arith.constant 0 : i32
    return %c0_i32, %c0_i32_0 : i32, i32
  }
  func.func @transform_3(%arg0: i32, %arg1: i32) -> (i32, i32) {
    %c0_i32 = arith.constant 0 : i32
    %c0_i32_0 = arith.constant 0 : i32
    %c0_i32_1 = arith.constant 0 : i32
    return %c0_i32, %c0_i32_0 : i32, i32
  }
  func.func @transform_4(%arg0: i32, %arg1: i32) -> (i32, i32) {
    %c0_i32 = arith.constant 0 : i32
    %c0_i32_0 = arith.constant 0 : i32
    %c0_i32_1 = arith.constant 0 : i32
    return %c0_i32, %c0_i32_0 : i32, i32
  }
  func.func @transform_5(%arg0: i32, %arg1: i32) -> (i32, i32) {
    %c0_i32 = arith.constant 0 : i32
    %c0_i32_0 = arith.constant 0 : i32
    %c0_i32_1 = arith.constant 0 : i32
    return %c0_i32, %c0_i32_0 : i32, i32
  }
  func.func @transform_6(%arg0: i32, %arg1: i32) -> (i32, i32) {
    %c0_i32 = arith.constant 0 : i32
    %c0_i32_0 = arith.constant 0 : i32
    %c0_i32_1 = arith.constant 0 : i32
    return %c0_i32, %c0_i32_0 : i32, i32
  }
  func.func @transform_7(%arg0: i32, %arg1: i32) -> (i32, i32, i32) {
    %c0_i32 = arith.constant 0 : i32
    %c0_i32_0 = arith.constant 0 : i32
    return %arg0, %c0_i32, %arg1 : i32, i32, i32
  }
}

</mosaic_0001>

<llo_original>
// kernel: pcn_decoder_forward.2
$region0: #{pcn_decoder_forward.2}
  #allocation0 [shape = 'u32[]', space=smem, size = 0x4, offset = 0x4, fixed_abs, tag = 'smem constant byte address 0x4 - core index']
  #allocation1 [shape = 'u32[144,128]{1,0:T(1,128)}', space=vmem, size = 0x12000, scoped, tag = 'internal scratch']
  %s0 = inlined_call_operand.vmem [shape: bf16[16,1024], index: 0, kind: input, shape index: {}]
  %s1 = inlined_call_operand.vmem [shape: bf16[1024,48], index: 1, kind: input, shape index: {}]
  %s2 = inlined_call_operand.vmem [shape: f32[1,48], index: 2, kind: input, shape index: {}]
  %s3 = inlined_call_operand.vmem [shape: f32[16,48], index: 3, kind: output, shape index: {}]
  %s4 = sld [smem:[#allocation0]]
  $region22: #{pcn_decoder_forward.2} parent=0
    _
  %s6 = ssub.s32 1, %s4
  %s7 = scalar_select 0, %s6, %s4
  // Predicated region
  $region2: #{pcn_decoder_forward.2} parent=0 // pred_check
    _
  $region3: #{pcn_decoder_forward.2} parent=0 // pred_check_branch
    %9 = sbr.rel (0) target = $region5
  $region4: #{pcn_decoder_forward.2} parent=0 // pred_region
    _
  $region5: #{pcn_decoder_forward.2} parent=0 // pred_fallthru
    _
  // Predicated region
  $region6: #{pcn_decoder_forward.2} parent=0 // pred_check
    _
  $region7: #{pcn_decoder_forward.2} parent=0 // pred_check_branch
    %11 = sbr.rel (0) target = $region9
  $region8: #{pcn_decoder_forward.2} parent=0 // pred_region
    _
  $region9: #{pcn_decoder_forward.2} parent=0 // pred_fallthru
    _
  // Predicated region
  $region10: #{pcn_decoder_forward.2} parent=0 // pred_check
    _
  $region11: #{pcn_decoder_forward.2} parent=0 // pred_check_branch
    %13 = sbr.rel (0) target = $region13
  $region12: #{pcn_decoder_forward.2} parent=0 // pred_region
    _
  $region13: #{pcn_decoder_forward.2} parent=0 // pred_fallthru
    _
  %v15 = vld [vmem:[%s0] sm:$0xff]
  %v16 = vld [vmem:[%s0 + $0x8] sm:$0xff]
  %v17 = vld [vmem:[%s0 + $0x10] sm:$0xff]
  %v18 = vld [vmem:[%s0 + $0x18] sm:$0xff]
  %v19 = vld [vmem:[%s0 + $0x20] sm:$0xff]
  %v20 = vld [vmem:[%s0 + $0x28] sm:$0xff]
  %v21 = vld [vmem:[%s0 + $0x30] sm:$0xff]
  %v22 = vld [vmem:[%s0 + $0x38] sm:$0xff]
  %v23 = vld [vmem:[%s1] sm:$0xf]
  %v24 = vld [vmem:[%s1 + $0x4] sm:$0xf]
  %v25 = vld [vmem:[%s1 + $0x8] sm:$0xf]
  %v26 = vld [vmem:[%s1 + $0xc] sm:$0xf]
  %v27 = vld [vmem:[%s1 + $0x10] sm:$0xf]
  %v28 = vld [vmem:[%s1 + $0x14] sm:$0xf]
  %v29 = vld [vmem:[%s1 + $0x18] sm:$0xf]
  %v30 = vld [vmem:[%s1 + $0x1c] sm:$0xf]
  %v31 = vld [vmem:[%s1 + $0x20] sm:$0xf]
  %v32 = vld [vmem:[%s1 + $0x24] sm:$0xf]
  %v33 = vld [vmem:[%s1 + $0x28] sm:$0xf]
  %v34 = vld [vmem:[%s1 + $0x2c] sm:$0xf]
  %v35 = vld [vmem:[%s1 + $0x30] sm:$0xf]
  %v36 = vld [vmem:[%s1 + $0x34] sm:$0xf]
  %v37 = vld [vmem:[%s1 + $0x38] sm:$0xf]
  %v38 = vld [vmem:[%s1 + $0x3c] sm:$0xf]
  %v39 = vld [vmem:[%s1 + $0x40] sm:$0xf]
  %v40 = vld [vmem:[%s1 + $0x44] sm:$0xf]
  %v41 = vld [vmem:[%s1 + $0x48] sm:$0xf]
  %v42 = vld [vmem:[%s1 + $0x4c] sm:$0xf]
  %v43 = vld [vmem:[%s1 + $0x50] sm:$0xf]
  %v44 = vld [vmem:[%s1 + $0x54] sm:$0xf]
  %v45 = vld [vmem:[%s1 + $0x58] sm:$0xf]
  %v46 = vld [vmem:[%s1 + $0x5c] sm:$0xf]
  %v47 = vld [vmem:[%s1 + $0x60] sm:$0xf]
  %v48 = vld [vmem:[%s1 + $0x64] sm:$0xf]
  %v49 = vld [vmem:[%s1 + $0x68] sm:$0xf]
  %v50 = vld [vmem:[%s1 + $0x6c] sm:$0xf]
  %v51 = vld [vmem:[%s1 + $0x70] sm:$0xf]
  %v52 = vld [vmem:[%s1 + $0x74] sm:$0xf]
  %v53 = vld [vmem:[%s1 + $0x78] sm:$0xf]
  %v54 = vld [vmem:[%s1 + $0x7c] sm:$0xf]
  %v55 = vld [vmem:[%s1 + $0x80] sm:$0xf]
  %v56 = vld [vmem:[%s1 + $0x84] sm:$0xf]
  %v57 = vld [vmem:[%s1 + $0x88] sm:$0xf]
  %v58 = vld [vmem:[%s1 + $0x8c] sm:$0xf]
  %v59 = vld [vmem:[%s1 + $0x90] sm:$0xf]
  %v60 = vld [vmem:[%s1 + $0x94] sm:$0xf]
  %v61 = vld [vmem:[%s1 + $0x98] sm:$0xf]
  %v62 = vld [vmem:[%s1 + $0x9c] sm:$0xf]
  %v63 = vld [vmem:[%s1 + $0xa0] sm:$0xf]
  %v64 = vld [vmem:[%s1 + $0xa4] sm:$0xf]
  %v65 = vld [vmem:[%s1 + $0xa8] sm:$0xf]
  %v66 = vld [vmem:[%s1 + $0xac] sm:$0xf]
  %v67 = vld [vmem:[%s1 + $0xb0] sm:$0xf]
  %v68 = vld [vmem:[%s1 + $0xb4] sm:$0xf]
  %v69 = vld [vmem:[%s1 + $0xb8] sm:$0xf]
  %v70 = vld [vmem:[%s1 + $0xbc] sm:$0xf]
  %v71 = vld [vmem:[%s1 + $0xc0] sm:$0xf]
  %v72 = vld [vmem:[%s1 + $0xc4] sm:$0xf]
  %v73 = vld [vmem:[%s1 + $0xc8] sm:$0xf]
  %v74 = vld [vmem:[%s1 + $0xcc] sm:$0xf]
  %v75 = vld [vmem:[%s1 + $0xd0] sm:$0xf]
  %v76 = vld [vmem:[%s1 + $0xd4] sm:$0xf]
  %v77 = vld [vmem:[%s1 + $0xd8] sm:$0xf]
  %v78 = vld [vmem:[%s1 + $0xdc] sm:$0xf]
  %v79 = vld [vmem:[%s1 + $0xe0] sm:$0xf]
  %v80 = vld [vmem:[%s1 + $0xe4] sm:$0xf]
  %v81 = vld [vmem:[%s1 + $0xe8] sm:$0xf]
  %v82 = vld [vmem:[%s1 + $0xec] sm:$0xf]
  %v83 = vld [vmem:[%s1 + $0xf0] sm:$0xf]
  %v84 = vld [vmem:[%s1 + $0xf4] sm:$0xf]
  %v85 = vld [vmem:[%s1 + $0xf8] sm:$0xf]
  %v86 = vld [vmem:[%s1 + $0xfc] sm:$0xf]
  %v87 = vld [vmem:[%s1 + $0x100] sm:$0xf]
  %v88 = vld [vmem:[%s1 + $0x104] sm:$0xf]
  %v89 = vld [vmem:[%s1 + $0x108] sm:$0xf]
  %v90 = vld [vmem:[%s1 + $0x10c] sm:$0xf]
  %v91 = vld [vmem:[%s1 + $0x110] sm:$0xf]
  %v92 = vld [vmem:[%s1 + $0x114] sm:$0xf]
  %v93 = vld [vmem:[%s1 + $0x118] sm:$0xf]
  %v94 = vld [vmem:[%s1 + $0x11c] sm:$0xf]
  %v95 = vld [vmem:[%s1 + $0x120] sm:$0xf]
  %v96 = vld [vmem:[%s1 + $0x124] sm:$0xf]
  %v97 = vld [vmem:[%s1 + $0x128] sm:$0xf]
  %v98 = vld [vmem:[%s1 + $0x12c] sm:$0xf]
  %v99 = vld [vmem:[%s1 + $0x130] sm:$0xf]
  %v100 = vld [vmem:[%s1 + $0x134] sm:$0xf]
  %v101 = vld [vmem:[%s1 + $0x138] sm:$0xf]
  %v102 = vld [vmem:[%s1 + $0x13c] sm:$0xf]
  %v103 = vld [vmem:[%s1 + $0x140] sm:$0xf]
  %v104 = vld [vmem:[%s1 + $0x144] sm:$0xf]
  %v105 = vld [vmem:[%s1 + $0x148] sm:$0xf]
  %v106 = vld [vmem:[%s1 + $0x14c] sm:$0xf]
  %v107 = vld [vmem:[%s1 + $0x150] sm:$0xf]
  %v108 = vld [vmem:[%s1 + $0x154] sm:$0xf]
  %v109 = vld [vmem:[%s1 + $0x158] sm:$0xf]
  %v110 = vld [vmem:[%s1 + $0x15c] sm:$0xf]
  %v111 = vld [vmem:[%s1 + $0x160] sm:$0xf]
  %v112 = vld [vmem:[%s1 + $0x164] sm:$0xf]
  %v113 = vld [vmem:[%s1 + $0x168] sm:$0xf]
  %v114 = vld [vmem:[%s1 + $0x16c] sm:$0xf]
  %v115 = vld [vmem:[%s1 + $0x170] sm:$0xf]
  %v116 = vld [vmem:[%s1 + $0x174] sm:$0xf]
  %v117 = vld [vmem:[%s1 + $0x178] sm:$0xf]
  %v118 = vld [vmem:[%s1 + $0x17c] sm:$0xf]
  %v119 = vld [vmem:[%s1 + $0x180] sm:$0xf]
  %v120 = vld [vmem:[%s1 + $0x184] sm:$0xf]
  %v121 = vld [vmem:[%s1 + $0x188] sm:$0xf]
  %v122 = vld [vmem:[%s1 + $0x18c] sm:$0xf]
  %v123 = vld [vmem:[%s1 + $0x190] sm:$0xf]
  %v124 = vld [vmem:[%s1 + $0x194] sm:$0xf]
  %v125 = vld [vmem:[%s1 + $0x198] sm:$0xf]
  %v126 = vld [vmem:[%s1 + $0x19c] sm:$0xf]
  %v127 = vld [vmem:[%s1 + $0x1a0] sm:$0xf]
  %v128 = vld [vmem:[%s1 + $0x1a4] sm:$0xf]
  %v129 = vld [vmem:[%s1 + $0x1a8] sm:$0xf]
  %v130 = vld [vmem:[%s1 + $0x1ac] sm:$0xf]
  %v131 = vld [vmem:[%s1 + $0x1b0] sm:$0xf]
  %v132 = vld [vmem:[%s1 + $0x1b4] sm:$0xf]
  %v133 = vld [vmem:[%s1 + $0x1b8] sm:$0xf]
  %v134 = vld [vmem:[%s1 + $0x1bc] sm:$0xf]
  %v135 = vld [vmem:[%s1 + $0x1c0] sm:$0xf]
  %v136 = vld [vmem:[%s1 + $0x1c4] sm:$0xf]
  %v137 = vld [vmem:[%s1 + $0x1c8] sm:$0xf]
  %v138 = vld [vmem:[%s1 + $0x1cc] sm:$0xf]
  %v139 = vld [vmem:[%s1 + $0x1d0] sm:$0xf]
  %v140 = vld [vmem:[%s1 + $0x1d4] sm:$0xf]
  %v141 = vld [vmem:[%s1 + $0x1d8] sm:$0xf]
  %v142 = vld [vmem:[%s1 + $0x1dc] sm:$0xf]
  %v143 = vld [vmem:[%s1 + $0x1e0] sm:$0xf]
  %v144 = vld [vmem:[%s1 + $0x1e4] sm:$0xf]
  %v145 = vld [vmem:[%s1 + $0x1e8] sm:$0xf]
  %v146 = vld [vmem:[%s1 + $0x1ec] sm:$0xf]
  %v147 = vld [vmem:[%s1 + $0x1f0] sm:$0xf]
  %v148 = vld [vmem:[%s1 + $0x1f4] sm:$0xf]
  %v149 = vld [vmem:[%s1 + $0x1f8] sm:$0xf]
  %v150 = vld [vmem:[%s1 + $0x1fc] sm:$0xf]
  %v151 = vld [vmem:[%s2] sm:$0x1]
  %v153 = vlaneseq
  %v154 = vshrl.u32 %v153, 7
  %v155 = vsub.s32 0, %v154
  %v156 = vrot.slane %v151, %v155
  %v166 = vunpack.c.l.b16 %v15
  %v167 = vunpack.c.h.b16 %v15
  %v168 = vunpack.c.l.b16 %v16
  %v169 = vunpack.c.h.b16 %v16
  %v170 = vunpack.c.l.b16 %v17
  %v171 = vunpack.c.h.b16 %v17
  %v172 = vunpack.c.l.b16 %v18
  %v173 = vunpack.c.h.b16 %v18
  %v174 = vunpack.c.l.b16 %v19
  %v175 = vunpack.c.h.b16 %v19
  %v176 = vunpack.c.l.b16 %v20
  %v177 = vunpack.c.h.b16 %v20
  %v178 = vunpack.c.l.b16 %v21
  %v179 = vunpack.c.h.b16 %v21
  %v180 = vunpack.c.l.b16 %v22
  %v181 = vunpack.c.h.b16 %v22
  %v182 = vpack.c.b16 %v174, %v166
  %v183 = vpack.c.b16 %v175, %v167
  %v184 = vpack.c.b16 %v176, %v168
  %v185 = vpack.c.b16 %v177, %v169
  %v186 = vpack.c.b16 %v178, %v170
  %v187 = vpack.c.b16 %v179, %v171
  %v188 = vpack.c.b16 %v180, %v172
  %v189 = vpack.c.b16 %v181, %v173
  %v326 = vunpack.c.l.b16 %v23
  %v327 = vunpack.c.l.b16 %v24
  %v328 = vunpack.c.l.b16 %v25
  %v329 = vunpack.c.l.b16 %v26
  %v330 = vunpack.c.l.b16 %v27
  %v331 = vunpack.c.l.b16 %v28
  %v332 = vunpack.c.l.b16 %v29
  %v333 = vunpack.c.l.b16 %v30
  %v334 = vunpack.c.l.b16 %v31
  %v335 = vunpack.c.l.b16 %v32
  %v336 = vunpack.c.l.b16 %v33
  %v337 = vunpack.c.l.b16 %v34
  %v338 = vunpack.c.l.b16 %v35
  %v339 = vunpack.c.l.b16 %v36
  %v340 = vunpack.c.l.b16 %v37
  %v341 = vunpack.c.l.b16 %v38
  %v342 = vunpack.c.l.b16 %v39
  %v343 = vunpack.c.l.b16 %v40
  %v344 = vunpack.c.l.b16 %v41
  %v345 = vunpack.c.l.b16 %v42
  %v346 = vunpack.c.l.b16 %v43
  %v347 = vunpack.c.l.b16 %v44
  %v348 = vunpack.c.l.b16 %v45
  %v349 = vunpack.c.l.b16 %v46
  %v350 = vunpack.c.l.b16 %v47
  %v351 = vunpack.c.l.b16 %v48
  %v352 = vunpack.c.l.b16 %v49
  %v353 = vunpack.c.l.b16 %v50
  %v354 = vunpack.c.l.b16 %v51
  %v355 = vunpack.c.l.b16 %v52
  %v356 = vunpack.c.l.b16 %v53
  %v357 = vunpack.c.l.b16 %v54
  %v358 = vunpack.c.l.b16 %v55
  %v359 = vunpack.c.l.b16 %v56
  %v360 = vunpack.c.l.b16 %v57
  %v361 = vunpack.c.l.b16 %v58
  %v362 = vunpack.c.l.b16 %v59
  %v363 = vunpack.c.l.b16 %v60
  %v364 = vunpack.c.l.b16 %v61
  %v365 = vunpack.c.l.b16 %v62
  %v366 = vunpack.c.l.b16 %v63
  %v367 = vunpack.c.l.b16 %v64
  %v368 = vunpack.c.l.b16 %v65
  %v369 = vunpack.c.l.b16 %v66
  %v370 = vunpack.c.l.b16 %v67
  %v371 = vunpack.c.l.b16 %v68
  %v372 = vunpack.c.l.b16 %v69
  %v373 = vunpack.c.l.b16 %v70
  %v374 = vunpack.c.l.b16 %v71
  %v375 = vunpack.c.l.b16 %v72
  %v376 = vunpack.c.l.b16 %v73
  %v377 = vunpack.c.l.b16 %v74
  %v378 = vunpack.c.l.b16 %v75
  %v379 = vunpack.c.l.b16 %v76
  %v380 = vunpack.c.l.b16 %v77
  %v381 = vunpack.c.l.b16 %v78
  %v382 = vunpack.c.l.b16 %v79
  %v383 = vunpack.c.l.b16 %v80
  %v384 = vunpack.c.l.b16 %v81
  %v385 = vunpack.c.l.b16 %v82
  %v386 = vunpack.c.l.b16 %v83
  %v387 = vunpack.c.l.b16 %v84
  %v388 = vunpack.c.l.b16 %v85
  %v389 = vunpack.c.l.b16 %v86
  %v390 = vunpack.c.l.b16 %v87
  %v391 = vunpack.c.l.b16 %v88
  %v392 = vunpack.c.l.b16 %v89
  %v393 = vunpack.c.l.b16 %v90
  %v394 = vunpack.c.l.b16 %v91
  %v395 = vunpack.c.l.b16 %v92
  %v396 = vunpack.c.l.b16 %v93
  %v397 = vunpack.c.l.b16 %v94
  %v398 = vunpack.c.l.b16 %v95
  %v399 = vunpack.c.l.b16 %v96
  %v400 = vunpack.c.l.b16 %v97
  %v401 = vunpack.c.l.b16 %v98
  %v402 = vunpack.c.l.b16 %v99
  %v403 = vunpack.c.l.b16 %v100
  %v404 = vunpack.c.l.b16 %v101
  %v405 = vunpack.c.l.b16 %v102
  %v406 = vunpack.c.l.b16 %v103
  %v407 = vunpack.c.l.b16 %v104
  %v408 = vunpack.c.l.b16 %v105
  %v409 = vunpack.c.l.b16 %v106
  %v410 = vunpack.c.l.b16 %v107
  %v411 = vunpack.c.l.b16 %v108
  %v412 = vunpack.c.l.b16 %v109
  %v413 = vunpack.c.l.b16 %v110
  %v414 = vunpack.c.l.b16 %v111
  %v415 = vunpack.c.l.b16 %v112
  %v416 = vunpack.c.l.b16 %v113
  %v417 = vunpack.c.l.b16 %v114
  %v418 = vunpack.c.l.b16 %v115
  %v419 = vunpack.c.l.b16 %v116
  %v420 = vunpack.c.l.b16 %v117
  %v421 = vunpack.c.l.b16 %v118
  %v422 = vunpack.c.l.b16 %v119
  %v423 = vunpack.c.l.b16 %v120
  %v424 = vunpack.c.l.b16 %v121
  %v425 = vunpack.c.l.b16 %v122
  %v426 = vunpack.c.l.b16 %v123
  %v427 = vunpack.c.l.b16 %v124
  %v428 = vunpack.c.l.b16 %v125
  %v429 = vunpack.c.l.b16 %v126
  %v430 = vunpack.c.l.b16 %v127
  %v431 = vunpack.c.l.b16 %v128
  %v432 = vunpack.c.l.b16 %v129
  %v433 = vunpack.c.l.b16 %v130
  %v434 = vunpack.c.l.b16 %v131
  %v435 = vunpack.c.l.b16 %v132
  %v436 = vunpack.c.l.b16 %v133
  %v437 = vunpack.c.l.b16 %v134
  %v438 = vunpack.c.l.b16 %v135
  %v439 = vunpack.c.l.b16 %v136
  %v440 = vunpack.c.l.b16 %v137
  %v441 = vunpack.c.l.b16 %v138
  %v442 = vunpack.c.l.b16 %v139
  %v443 = vunpack.c.l.b16 %v140
  %v444 = vunpack.c.l.b16 %v141
  %v445 = vunpack.c.l.b16 %v142
  %v446 = vunpack.c.l.b16 %v143
  %v447 = vunpack.c.l.b16 %v144
  %v448 = vunpack.c.l.b16 %v145
  %v449 = vunpack.c.l.b16 %v146
  %v450 = vunpack.c.l.b16 %v147
  %v451 = vunpack.c.l.b16 %v148
  %v452 = vunpack.c.l.b16 %v149
  %v453 = vunpack.c.l.b16 %v150
  %v454 = vpack.c.b16 %v327, %v326
  %v455 = vpack.c.b16 %v329, %v328
  %v456 = vpack.c.b16 %v331, %v330
  %v457 = vpack.c.b16 %v333, %v332
  %v458 = vpack.c.b16 %v335, %v334
  %v459 = vpack.c.b16 %v337, %v336
  %v460 = vpack.c.b16 %v339, %v338
  %v461 = vpack.c.b16 %v341, %v340
  %v462 = vpack.c.b16 %v343, %v342
  %v463 = vpack.c.b16 %v345, %v344
  %v464 = vpack.c.b16 %v347, %v346
  %v465 = vpack.c.b16 %v349, %v348
  %v466 = vpack.c.b16 %v351, %v350
  %v467 = vpack.c.b16 %v353, %v352
  %v468 = vpack.c.b16 %v355, %v354
  %v469 = vpack.c.b16 %v357, %v356
  %v470 = vpack.c.b16 %v359, %v358
  %v471 = vpack.c.b16 %v361, %v360
  %v472 = vpack.c.b16 %v363, %v362
  %v473 = vpack.c.b16 %v365, %v364
  %v474 = vpack.c.b16 %v367, %v366
  %v475 = vpack.c.b16 %v369, %v368
  %v476 = vpack.c.b16 %v371, %v370
  %v477 = vpack.c.b16 %v373, %v372
  %v478 = vpack.c.b16 %v375, %v374
  %v479 = vpack.c.b16 %v377, %v376
  %v480 = vpack.c.b16 %v379, %v378
  %v481 = vpack.c.b16 %v381, %v380
  %v482 = vpack.c.b16 %v383, %v382
  %v483 = vpack.c.b16 %v385, %v384
  %v484 = vpack.c.b16 %v387, %v386
  %v485 = vpack.c.b16 %v389, %v388
  %v486 = vpack.c.b16 %v391, %v390
  %v487 = vpack.c.b16 %v393, %v392
  %v488 = vpack.c.b16 %v395, %v394
  %v489 = vpack.c.b16 %v397, %v396
  %v490 = vpack.c.b16 %v399, %v398
  %v491 = vpack.c.b16 %v401, %v400
  %v492 = vpack.c.b16 %v403, %v402
  %v493 = vpack.c.b16 %v405, %v404
  %v494 = vpack.c.b16 %v407, %v406
  %v495 = vpack.c.b16 %v409, %v408
  %v496 = vpack.c.b16 %v411, %v410
  %v497 = vpack.c.b16 %v413, %v412
  %v498 = vpack.c.b16 %v415, %v414
  %v499 = vpack.c.b16 %v417, %v416
  %v500 = vpack.c.b16 %v419, %v418
  %v501 = vpack.c.b16 %v421, %v420
  %v502 = vpack.c.b16 %v423, %v422
  %v503 = vpack.c.b16 %v425, %v424
  %v504 = vpack.c.b16 %v427, %v426
  %v505 = vpack.c.b16 %v429, %v428
  %v506 = vpack.c.b16 %v431, %v430
  %v507 = vpack.c.b16 %v433, %v432
  %v508 = vpack.c.b16 %v435, %v434
  %v509 = vpack.c.b16 %v437, %v436
  %v510 = vpack.c.b16 %v439, %v438
  %v511 = vpack.c.b16 %v441, %v440
  %v512 = vpack.c.b16 %v443, %v442
  %v513 = vpack.c.b16 %v445, %v444
  %v514 = vpack.c.b16 %v447, %v446
  %v515 = vpack.c.b16 %v449, %v448
  %v516 = vpack.c.b16 %v451, %v450
  %v517 = vpack.c.b16 %v453, %v452
  %582 = vmatprep.subr.bf16.mxu0 0
  %583 = vmatpush1.bf16.msra.mxu0 %v454
  %584 = vmatprep.subr.bf16.mxu0 0
  %585 = vmatpush1.bf16.msra.mxu0 %v455
  %586 = vmatprep.subr.bf16.mxu0 0
  %587 = vmatpush1.bf16.msra.mxu0 %v456
  %588 = vmatprep.subr.bf16.mxu0 0
  %589 = vmatpush1.bf16.msra.mxu0 %v457
  %590 = vmatprep.subr.bf16.mxu0 0
  %591 = vmatpush1.bf16.msra.mxu0 %v458
  %592 = vmatprep.subr.bf16.mxu0 0
  %593 = vmatpush1.bf16.msra.mxu0 %v459
  %594 = vmatprep.subr.bf16.mxu0 0
  %595 = vmatpush1.bf16.msra.mxu0 %v460
  %596 = vmatprep.subr.bf16.mxu0 0
  %597 = vmatpush1.bf16.msra.mxu0 %v461
  %598 = vmatprep.subr.bf16.mxu0 0
  %599 = vmatpush1.bf16.msra.mxu0 %v462
  %600 = vmatprep.subr.bf16.mxu0 0
  %601 = vmatpush1.bf16.msra.mxu0 %v463
  %602 = vmatprep.subr.bf16.mxu0 0
  %603 = vmatpush1.bf16.msra.mxu0 %v464
  %604 = vmatprep.subr.bf16.mxu0 0
  %605 = vmatpush1.bf16.msra.mxu0 %v465
  %606 = vmatprep.subr.bf16.mxu0 0
  %607 = vmatpush1.bf16.msra.mxu0 %v466
  %608 = vmatprep.subr.bf16.mxu0 0
  %609 = vmatpush1.bf16.msra.mxu0 %v467
  %610 = vmatprep.subr.bf16.mxu0 0
  %611 = vmatpush1.bf16.msra.mxu0 %v468
  %612 = vmatprep.subr.bf16.mxu0 0
  %613 = vmatpush1.bf16.msra.mxu0 %v469
  %614 = vmatprep.mubr.bf16.mxu0 %v183
  %615 = vmatmul.mubr.bf16.gmra.mrb[0].mxu0 %v182
  %v616 = vpop.f32.mrb[0].mxu0
  %v617 = vadd.f32 %v156, %v616
  %v618 = vpop.f32.mrb[0].mxu0
  %v619 = vpop.f32.mrb[0].mxu0
  %v620 = vadd.f32 %v156, %v619
  %v621 = vpop.f32.mrb[0].mxu0
  %622 = vdwg.mxu0
  %623 = vmatprep.subr.bf16.mxu0 0
  %624 = vmatpush1.bf16.msra.mxu0 %v470
  %625 = vmatprep.subr.bf16.mxu0 0
  %626 = vmatpush1.bf16.msra.mxu0 %v471
  %627 = vmatprep.subr.bf16.mxu0 0
  %628 = vmatpush1.bf16.msra.mxu0 %v472
  %629 = vmatprep.subr.bf16.mxu0 0
  %630 = vmatpush1.bf16.msra.mxu0 %v473
  %631 = vmatprep.subr.bf16.mxu0 0
  %632 = vmatpush1.bf16.msra.mxu0 %v474
  %633 = vmatprep.subr.bf16.mxu0 0
  %634 = vmatpush1.bf16.msra.mxu0 %v475
  %635 = vmatprep.subr.bf16.mxu0 0
  %636 = vmatpush1.bf16.msra.mxu0 %v476
  %637 = vmatprep.subr.bf16.mxu0 0
  %638 = vmatpush1.bf16.msra.mxu0 %v477
  %639 = vmatprep.subr.bf16.mxu0 0
  %640 = vmatpush1.bf16.msra.mxu0 %v478
  %641 = vmatprep.subr.bf16.mxu0 0
  %642 = vmatpush1.bf16.msra.mxu0 %v479
  %643 = vmatprep.subr.bf16.mxu0 0
  %644 = vmatpush1.bf16.msra.mxu0 %v480
  %645 = vmatprep.subr.bf16.mxu0 0
  %646 = vmatpush1.bf16.msra.mxu0 %v481
  %647 = vmatprep.subr.bf16.mxu0 0
  %648 = vmatpush1.bf16.msra.mxu0 %v482
  %649 = vmatprep.subr.bf16.mxu0 0
  %650 = vmatpush1.bf16.msra.mxu0 %v483
  %651 = vmatprep.subr.bf16.mxu0 0
  %652 = vmatpush1.bf16.msra.mxu0 %v484
  %653 = vmatprep.subr.bf16.mxu0 0
  %654 = vmatpush1.bf16.msra.mxu0 %v485
  %655 = vmatprep.mubr.bf16.mxu0 %v185
  %656 = vmatmul.mubr.bf16.gmra.mrb[0].mxu0 %v184
  %v657 = vpop.f32.mrb[0].mxu0
  %v658 = vadd.f32 %v617, %v657
  %v659 = vpop.f32.mrb[0].mxu0
  %v660 = vpop.f32.mrb[0].mxu0
  %v661 = vadd.f32 %v620, %v660
  %v662 = vpop.f32.mrb[0].mxu0
  %663 = vdwg.mxu0
  %664 = vmatprep.subr.bf16.mxu0 0
  %665 = vmatpush1.bf16.msra.mxu0 %v486
  %666 = vmatprep.subr.bf16.mxu0 0
  %667 = vmatpush1.bf16.msra.mxu0 %v487
  %668 = vmatprep.subr.bf16.mxu0 0
  %669 = vmatpush1.bf16.msra.mxu0 %v488
  %670 = vmatprep.subr.bf16.mxu0 0
  %671 = vmatpush1.bf16.msra.mxu0 %v489
  %672 = vmatprep.subr.bf16.mxu0 0
  %673 = vmatpush1.bf16.msra.mxu0 %v490
  %674 = vmatprep.subr.bf16.mxu0 0
  %675 = vmatpush1.bf16.msra.mxu0 %v491
  %676 = vmatprep.subr.bf16.mxu0 0
  %677 = vmatpush1.bf16.msra.mxu0 %v492
  %678 = vmatprep.subr.bf16.mxu0 0
  %679 = vmatpush1.bf16.msra.mxu0 %v493
  %680 = vmatprep.subr.bf16.mxu0 0
  %681 = vmatpush1.bf16.msra.mxu0 %v494
  %682 = vmatprep.subr.bf16.mxu0 0
  %683 = vmatpush1.bf16.msra.mxu0 %v495
  %684 = vmatprep.subr.bf16.mxu0 0
  %685 = vmatpush1.bf16.msra.mxu0 %v496
  %686 = vmatprep.subr.bf16.mxu0 0
  %687 = vmatpush1.bf16.msra.mxu0 %v497
  %688 = vmatprep.subr.bf16.mxu0 0
  %689 = vmatpush1.bf16.msra.mxu0 %v498
  %690 = vmatprep.subr.bf16.mxu0 0
  %691 = vmatpush1.bf16.msra.mxu0 %v499
  %692 = vmatprep.subr.bf16.mxu0 0
  %693 = vmatpush1.bf16.msra.mxu0 %v500
  %694 = vmatprep.subr.bf16.mxu0 0
  %695 = vmatpush1.bf16.msra.mxu0 %v501
  %696 = vmatprep.mubr.bf16.mxu0 %v187
  %697 = vmatmul.mubr.bf16.gmra.mrb[0].mxu0 %v186
  %v698 = vpop.f32.mrb[0].mxu0
  %v699 = vadd.f32 %v658, %v698
  %v700 = vpop.f32.mrb[0].mxu0
  %v701 = vpop.f32.mrb[0].mxu0
  %v702 = vadd.f32 %v661, %v701
  %v703 = vpop.f32.mrb[0].mxu0
  %704 = vdwg.mxu0
  %705 = vmatprep.subr.bf16.mxu0 0
  %706 = vmatpush1.bf16.msra.mxu0 %v502
  %707 = vmatprep.subr.bf16.mxu0 0
  %708 = vmatpush1.bf16.msra.mxu0 %v503
  %709 = vmatprep.subr.bf16.mxu0 0
  %710 = vmatpush1.bf16.msra.mxu0 %v504
  %711 = vmatprep.subr.bf16.mxu0 0
  %712 = vmatpush1.bf16.msra.mxu0 %v505
  %713 = vmatprep.subr.bf16.mxu0 0
  %714 = vmatpush1.bf16.msra.mxu0 %v506
  %715 = vmatprep.subr.bf16.mxu0 0
  %716 = vmatpush1.bf16.msra.mxu0 %v507
  %717 = vmatprep.subr.bf16.mxu0 0
  %718 = vmatpush1.bf16.msra.mxu0 %v508
  %719 = vmatprep.subr.bf16.mxu0 0
  %720 = vmatpush1.bf16.msra.mxu0 %v509
  %721 = vmatprep.subr.bf16.mxu0 0
  %722 = vmatpush1.bf16.msra.mxu0 %v510
  %723 = vmatprep.subr.bf16.mxu0 0
  %724 = vmatpush1.bf16.msra.mxu0 %v511
  %725 = vmatprep.subr.bf16.mxu0 0
  %726 = vmatpush1.bf16.msra.mxu0 %v512
  %727 = vmatprep.subr.bf16.mxu0 0
  %728 = vmatpush1.bf16.msra.mxu0 %v513
  %729 = vmatprep.subr.bf16.mxu0 0
  %730 = vmatpush1.bf16.msra.mxu0 %v514
  %731 = vmatprep.subr.bf16.mxu0 0
  %732 = vmatpush1.bf16.msra.mxu0 %v515
  %733 = vmatprep.subr.bf16.mxu0 0
  %734 = vmatpush1.bf16.msra.mxu0 %v516
  %735 = vmatprep.subr.bf16.mxu0 0
  %736 = vmatpush1.bf16.msra.mxu0 %v517
  %737 = vmatprep.mubr.bf16.mxu0 %v189
  %738 = vmatmul.mubr.bf16.gmra.mrb[0].mxu0 %v188
  %v739 = vpop.f32.mrb[0].mxu0
  %v740 = vadd.f32 %v699, %v739
  %v741 = vpop.f32.mrb[0].mxu0
  %v742 = vpop.f32.mrb[0].mxu0
  %v743 = vadd.f32 %v702, %v742
  %v744 = vpop.f32.mrb[0].mxu0
  %745 = vdwg.mxu0
  %vm746 = vcmask 392192
  %747 = vst.msk [vmem:[%s3] sm:$0xff] %vm746, %v740
  %748 = vst.msk [vmem:[%s3 + $0x8] sm:$0xff] %vm746, %v743
  // Predicated region
  $region14: #{pcn_decoder_forward.2} parent=0 // pred_check
    _
  $region15: #{pcn_decoder_forward.2} parent=0 // pred_check_branch
    %750 = sbr.rel (0) target = $region17
  $region16: #{pcn_decoder_forward.2} parent=0 // pred_region
    _
  $region17: #{pcn_decoder_forward.2} parent=0 // pred_fallthru
    _
  // Predicated region
  $region18: #{pcn_decoder_forward.2} parent=0 // pred_check
    _
  $region19: #{pcn_decoder_forward.2} parent=0 // pred_check_branch
    %752 = sbr.rel (0) target = $region21
  $region20: #{pcn_decoder_forward.2} parent=0 // pred_region
    _
  $region21: #{pcn_decoder_forward.2} parent=0 // pred_fallthru
    _

// kernel: pcn_decoder_forward.3
$region0: #{pcn_decoder_forward.3}
  #allocation0 [shape = 'u32[]', space=smem, size = 0x4, offset = 0x4, fixed_abs, tag = 'smem constant byte address 0x4 - core index']
  #allocation1 [shape = 'u32[144,128]{1,0:T(1,128)}', space=vmem, size = 0x12000, scoped, tag = 'internal scratch']
  %s0 = inlined_call_operand.vmem [shape: f32[2,5,64], index: 0, kind: input, shape index: {}]
  %s1 = inlined_call_operand.vmem [shape: f32[2,512,1], index: 1, kind: input, shape index: {}]
  %s2 = inlined_call_operand.vmem [shape: f32[512,5], index: 2, kind: input, shape index: {}]
  %s3 = inlined_call_operand.vmem [shape: bf16[512,512], index: 3, kind: input, shape index: {}]
  %s4 = inlined_call_operand.vmem [shape: f32[512,1], index: 4, kind: input, shape index: {}]
  %s5 = inlined_call_operand.vmem [shape: bf16[3,512], index: 5, kind: input, shape index: {}]
  %s6 = inlined_call_operand.vmem [shape: f32[3,1], index: 6, kind: input, shape index: {}]
  %s7 = inlined_call_operand.vmem [shape: f32[2,3,64], index: 7, kind: output, shape index: {}]
  %s8 = sld [smem:[#allocation0]]
  $region61: #{pcn_decoder_forward.3} parent=0
    _
  %s10 = ssub.s32 1, %s8
  %s11 = scalar_select 0, %s10, %s8
  loop: start=0, step=1, limit=4
  $region2: #{pcn_decoder_forward.3} parent=0 // loop_pre_header
    _
  $region3: #{pcn_decoder_forward.3} parent=0 // loop_header
    %s13 = sphi 0, %s17
    %p14 = scmp.ge.s32.totalorder %s13, 4
    %s20 = sphi 0, %s32
    %s21 = sphi 0, %s28
    %s22 = sphi 0, %s20
    %s23 = sphi 0, %s21
    %s24 = sphi 0, %s22
    %s25 = sphi 0, %s23
    %s37 = sphi 0, %s39
    %s40 = sphi 0, %s37
    %s41 = sphi 0, %s40
    %s57 = sphi 0, %s41
    %s63 = sphi 0, %s65
    %s66 = sphi 0, %s63
    %s67 = sphi 0, %s66
    %s83 = sphi 0, %s67
    %s87 = sphi 0, %s87
    %s89 = sphi 0, %s87
    %s90 = sphi 0, %s89
    %s104 = sphi 0, %s90
    %s108 = sphi 0, %s108
    %s110 = sphi 0, %s108
    %s111 = sphi 0, %s110
    %s125 = sphi 0, %s111
    %s129 = sphi 0, %s129
    %s131 = sphi 0, %s129
    %s132 = sphi 0, %s131
    %s146 = sphi 0, %s132
    %s150 = sphi 0, %s150
    %s152 = sphi 0, %s150
    %s153 = sphi 0, %s152
    %s167 = sphi 0, %s153
    %s171 = sphi 0, %s171
    %s173 = sphi 0, %s171
    %s174 = sphi 0, %s173
    %s188 = sphi 0, %s174
    %s196 = sphi 0, %s198
    %s199 = sphi 0, %s196
    %s200 = sphi 0, %s199
    %s216 = sphi 0, %s200
  $region4: #{pcn_decoder_forward.3} parent=0 // loop_header_branch
    %16 = sbr.rel (%p14) target = $region8
  $region5: #{pcn_decoder_forward.3} parent=0 // loop_body
    %s18 = ssub.s32 %s13, 1
    %s19 = ssub.s32 %s13, 2
    %s26 = sadd.s32 1, %s21
    %p27 = scmp.ge.s32.totalorder %s26, 1
    %s28 = scalar_select %p27, 0, %s26
    %s29 = sadd.s32 1, %s20
    %s30 = scalar_select %p27, %s29, %s20
    %p31 = scmp.ge.s32.totalorder %s30, 2
    %s32 = scalar_select %p31, 0, %s30
    %s33 = ssub.s32 %s20, %s32
    %s34 = ssub.s32 %s21, %s28
    %s35 = sor.u32 %s33, %s34
    %p36 = scmp.eq.s32.totalorder %s35, 0
    %s38 = sadd.s32 %s37, 1
    %s39 = scalar_select %p36, %s37, %s38
    %p42 = pneg %p36
    %p43 = scmp.eq.s32.totalorder %s13, 1
    %p44 = por %p42, %p43
    %p45 = scmp.ne.s32.totalorder %s37, %s40
    %p46 = scmp.eq.s32.totalorder %s13, 0
    %p47 = por %p45, %p46
    %p48 = scmp.ne.s32.totalorder %s37, %s40
    %p49 = scmp.eq.s32.totalorder %s18, 1
    %p50 = por %p48, %p49
    %p51 = scmp.ne.s32.totalorder %s40, %s41
    %p52 = scmp.eq.s32.totalorder %s18, 0
    %p53 = por %p51, %p52
    %p54 = scmp.ne.s32.totalorder %s40, %s41
    %p55 = scmp.eq.s32.totalorder %s19, 1
    %p56 = por %p54, %p55
    %p58 = scmp.ne.s32.totalorder %s41, %s57
    %p59 = scmp.eq.s32.totalorder %s19, 0
    %p60 = por %p58, %p59
    %s61 = ssub.s32 %s20, %s32
    %p62 = scmp.eq.s32.totalorder %s61, 0
    %s64 = sadd.s32 %s63, 1
    %s65 = scalar_select %p62, %s63, %s64
    %p68 = pneg %p62
    %p69 = scmp.eq.s32.totalorder %s13, 1
    %p70 = por %p68, %p69
    %p71 = scmp.ne.s32.totalorder %s63, %s66
    %p72 = scmp.eq.s32.totalorder %s13, 0
    %p73 = por %p71, %p72
    %p74 = scmp.ne.s32.totalorder %s63, %s66
    %p75 = scmp.eq.s32.totalorder %s18, 1
    %p76 = por %p74, %p75
    %p77 = scmp.ne.s32.totalorder %s66, %s67
    %p78 = scmp.eq.s32.totalorder %s18, 0
    %p79 = por %p77, %p78
    %p80 = scmp.ne.s32.totalorder %s66, %s67
    %p81 = scmp.eq.s32.totalorder %s19, 1
    %p82 = por %p80, %p81
    %p84 = scmp.ne.s32.totalorder %s67, %s83
    %p85 = scmp.eq.s32.totalorder %s19, 0
    %p86 = por %p84, %p85
    %s88 = sadd.s32 %s87, 1
    %p91 = scmp.eq.s32.totalorder %s13, 1
    %p92 = scmp.ne.s32.totalorder %s87, %s89
    %p93 = scmp.eq.s32.totalorder %s13, 0
    %p94 = por %p92, %p93
    %p95 = scmp.ne.s32.totalorder %s87, %s89
    %p96 = scmp.eq.s32.totalorder %s18, 1
    %p97 = por %p95, %p96
    %p98 = scmp.ne.s32.totalorder %s89, %s90
    %p99 = scmp.eq.s32.totalorder %s18, 0
    %p100 = por %p98, %p99
    %p101 = scmp.ne.s32.totalorder %s89, %s90
    %p102 = scmp.eq.s32.totalorder %s19, 1
    %p103 = por %p101, %p102
    %p105 = scmp.ne.s32.totalorder %s90, %s104
    %p106 = scmp.eq.s32.totalorder %s19, 0
    %p107 = por %p105, %p106
    %s109 = sadd.s32 %s108, 1
    %p112 = scmp.eq.s32.totalorder %s13, 1
    %p113 = scmp.ne.s32.totalorder %s108, %s110
    %p114 = scmp.eq.s32.totalorder %s13, 0
    %p115 = por %p113, %p114
    %p116 = scmp.ne.s32.totalorder %s108, %s110
    %p117 = scmp.eq.s32.totalorder %s18, 1
    %p118 = por %p116, %p117
    %p119 = scmp.ne.s32.totalorder %s110, %s111
    %p120 = scmp.eq.s32.totalorder %s18, 0
    %p121 = por %p119, %p120
    %p122 = scmp.ne.s32.totalorder %s110, %s111
    %p123 = scmp.eq.s32.totalorder %s19, 1
    %p124 = por %p122, %p123
    %p126 = scmp.ne.s32.totalorder %s111, %s125
    %p127 = scmp.eq.s32.totalorder %s19, 0
    %p128 = por %p126, %p127
    %s130 = sadd.s32 %s129, 1
    %p133 = scmp.eq.s32.totalorder %s13, 1
    %p134 = scmp.ne.s32.totalorder %s129, %s131
    %p135 = scmp.eq.s32.totalorder %s13, 0
    %p136 = por %p134, %p135
    %p137 = scmp.ne.s32.totalorder %s129, %s131
    %p138 = scmp.eq.s32.totalorder %s18, 1
    %p139 = por %p137, %p138
    %p140 = scmp.ne.s32.totalorder %s131, %s132
    %p141 = scmp.eq.s32.totalorder %s18, 0
    %p142 = por %p140, %p141
    %p143 = scmp.ne.s32.totalorder %s131, %s132
    %p144 = scmp.eq.s32.totalorder %s19, 1
    %p145 = por %p143, %p144
    %p147 = scmp.ne.s32.totalorder %s132, %s146
    %p148 = scmp.eq.s32.totalorder %s19, 0
    %p149 = por %p147, %p148
    %s151 = sadd.s32 %s150, 1
    %p154 = scmp.eq.s32.totalorder %s13, 1
    %p155 = scmp.ne.s32.totalorder %s150, %s152
    %p156 = scmp.eq.s32.totalorder %s13, 0
    %p157 = por %p155, %p156
    %p158 = scmp.ne.s32.totalorder %s150, %s152
    %p159 = scmp.eq.s32.totalorder %s18, 1
    %p160 = por %p158, %p159
    %p161 = scmp.ne.s32.totalorder %s152, %s153
    %p162 = scmp.eq.s32.totalorder %s18, 0
    %p163 = por %p161, %p162
    %p164 = scmp.ne.s32.totalorder %s152, %s153
    %p165 = scmp.eq.s32.totalorder %s19, 1
    %p166 = por %p164, %p165
    %p168 = scmp.ne.s32.totalorder %s153, %s167
    %p169 = scmp.eq.s32.totalorder %s19, 0
    %p170 = por %p168, %p169
    %s172 = sadd.s32 %s171, 1
    %p175 = scmp.eq.s32.totalorder %s13, 1
    %p176 = scmp.ne.s32.totalorder %s171, %s173
    %p177 = scmp.eq.s32.totalorder %s13, 0
    %p178 = por %p176, %p177
    %p179 = scmp.ne.s32.totalorder %s171, %s173
    %p180 = scmp.eq.s32.totalorder %s18, 1
    %p181 = por %p179, %p180
    %p182 = scmp.ne.s32.totalorder %s173, %s174
    %p183 = scmp.eq.s32.totalorder %s18, 0
    %p184 = por %p182, %p183
    %p185 = scmp.ne.s32.totalorder %s173, %s174
    %p186 = scmp.eq.s32.totalorder %s19, 1
    %p187 = por %p185, %p186
    %p189 = scmp.ne.s32.totalorder %s174, %s188
    %p190 = scmp.eq.s32.totalorder %s19, 0
    %p191 = por %p189, %p190
    %s192 = ssub.s32 %s20, %s32
    %s193 = ssub.s32 %s21, %s28
    %s194 = sor.u32 %s192, %s193
    %p195 = scmp.eq.s32.totalorder %s194, 0
    %s197 = sadd.s32 %s196, 1
    %s198 = scalar_select %p195, %s196, %s197
    %p201 = pneg %p195
    %p202 = scmp.eq.s32.totalorder %s13, 1
    %p203 = por %p201, %p202
    %p204 = scmp.ne.s32.totalorder %s196, %s199
    %p205 = scmp.eq.s32.totalorder %s13, 0
    %p206 = por %p204, %p205
    %p207 = scmp.ne.s32.totalorder %s196, %s199
    %p208 = scmp.eq.s32.totalorder %s18, 1
    %p209 = por %p207, %p208
    %p210 = scmp.ne.s32.totalorder %s199, %s200
    %p211 = scmp.eq.s32.totalorder %s18, 0
    %p212 = por %p210, %p211
    %p213 = scmp.ne.s32.totalorder %s199, %s200
    %p214 = scmp.eq.s32.totalorder %s19, 1
    %p215 = por %p213, %p214
    %p217 = scmp.ne.s32.totalorder %s200, %s216
    %p218 = scmp.eq.s32.totalorder %s19, 0
    %p219 = por %p217, %p218
    %p220 = scmp.le.s32.totalorder 1, %s13
    %p221 = scmp.lt.s32.totalorder %s13, 3
    %p222 = pnand %p220, %p221
    %p223 = pneg %p222
    // Predicated region
    $region9: #{pcn_decoder_forward.3} parent=5 // pred_check
      _
    $region10: #{pcn_decoder_forward.3} parent=5 // pred_check_branch
      %225 = sbr.rel (%p222) target = $region12
    $region11: #{pcn_decoder_forward.3} parent=5 // pred_region
      %s226 = ssub.s32 %s13, 1
      // Predicated region
      $region13: #{pcn_decoder_forward.3} parent=11 // pred_check
        %p227 = pneg %p100
      $region14: #{pcn_decoder_forward.3} parent=11 // pred_check_branch
        %229 = sbr.rel (%p227) target = $region16
      $region15: #{pcn_decoder_forward.3} parent=11 // pred_region
        _
      $region16: #{pcn_decoder_forward.3} parent=11 // pred_fallthru
        _
      // Predicated region
      $region17: #{pcn_decoder_forward.3} parent=11 // pred_check
        %p230 = pneg %p121
      $region18: #{pcn_decoder_forward.3} parent=11 // pred_check_branch
        %232 = sbr.rel (%p230) target = $region20
      $region19: #{pcn_decoder_forward.3} parent=11 // pred_region
        _
      $region20: #{pcn_decoder_forward.3} parent=11 // pred_fallthru
        _
      // Predicated region
      $region21: #{pcn_decoder_forward.3} parent=11 // pred_check
        %p233 = pneg %p142
      $region22: #{pcn_decoder_forward.3} parent=11 // pred_check_branch
        %235 = sbr.rel (%p233) target = $region24
      $region23: #{pcn_decoder_forward.3} parent=11 // pred_region
        _
      $region24: #{pcn_decoder_forward.3} parent=11 // pred_fallthru
        _
      // Predicated region
      $region25: #{pcn_decoder_forward.3} parent=11 // pred_check
        %p236 = pneg %p163
      $region26: #{pcn_decoder_forward.3} parent=11 // pred_check_branch
        %238 = sbr.rel (%p236) target = $region28
      $region27: #{pcn_decoder_forward.3} parent=11 // pred_region
        _
      $region28: #{pcn_decoder_forward.3} parent=11 // pred_fallthru
        _
      // Predicated region
      $region29: #{pcn_decoder_forward.3} parent=11 // pred_check
        %p239 = pneg %p184
      $region30: #{pcn_decoder_forward.3} parent=11 // pred_check_branch
        %241 = sbr.rel (%p239) target = $region32
      $region31: #{pcn_decoder_forward.3} parent=11 // pred_region
        _
      $region32: #{pcn_decoder_forward.3} parent=11 // pred_fallthru
        _
    $region12: #{pcn_decoder_forward.3} parent=5 // pred_fallthru
      _
    %p242 = scmp.lt.s32.totalorder %s13, 2
    // Predicated region
    $region33: #{pcn_decoder_forward.3} parent=5 // pred_check
      %p243 = pneg %p242
    $region34: #{pcn_decoder_forward.3} parent=5 // pred_check_branch
      %245 = sbr.rel (%p243) target = $region36
    $region35: #{pcn_decoder_forward.3} parent=5 // pred_region
      // Predicated region
      $region37: #{pcn_decoder_forward.3} parent=35 // pred_check
        %p246 = pneg %p47
      $region38: #{pcn_decoder_forward.3} parent=35 // pred_check_branch
        %248 = sbr.rel (%p246) target = $region40
      $region39: #{pcn_decoder_forward.3} parent=35 // pred_region
        %p249 = scmp.lt.s32.totalorder %s20, 1
        %s250 = scalar_select %p249, %s20, 1
        %p251 = scmp.lt.s32.totalorder %s21, 0
        %s252 = scalar_select %p251, %s21, 0
        %s253 = sadd.s32 %s252, %s250
        %s254 = smul.addr %s253, 8
        %s255 = scalar_lea.vmem %s0, %s254
      $region40: #{pcn_decoder_forward.3} parent=35 // pred_fallthru
        _
      // Predicated region
      $region41: #{pcn_decoder_forward.3} parent=35 // pred_check
        %p256 = pneg %p73
      $region42: #{pcn_decoder_forward.3} parent=35 // pred_check_branch
        %258 = sbr.rel (%p256) target = $region44
      $region43: #{pcn_decoder_forward.3} parent=35 // pred_region
        %p259 = scmp.lt.s32.totalorder %s20, 1
        %s260 = scalar_select %p259, %s20, 1
        %s261 = smul.addr %s260, 64
        %s262 = smul.addr %s261, 8
        %s263 = scalar_lea.vmem %s1, %s262
      $region44: #{pcn_decoder_forward.3} parent=35 // pred_fallthru
        _
    $region36: #{pcn_decoder_forward.3} parent=5 // pred_fallthru
      _
    %p264 = scmp.le.s32.totalorder 1, %s13
    %p265 = scmp.lt.s32.totalorder %s13, 3
    %p266 = pnand %p264, %p265
    %p267 = pneg %p266
    // Predicated region
    $region45: #{pcn_decoder_forward.3} parent=5 // pred_check
      _
    $region46: #{pcn_decoder_forward.3} parent=5 // pred_check_branch
      %269 = sbr.rel (%p266) target = $region48
    $region47: #{pcn_decoder_forward.3} parent=5 // pred_region
      %s270 = ssub.s32 %s13, 1
      %p271 = scmp.lt.s32.totalorder %s22, 1
      %s272 = scalar_select %p271, %s22, 1
      %p273 = scmp.lt.s32.totalorder %s23, 0
      %s274 = scalar_select %p273, %s23, 0
      %s275 = sadd.s32 %s274, %s272
      %s276 = smul.addr %s275, 8
      %s277 = scalar_lea.vmem %s0, %s276
      %p278 = pneg %p53
      %p279 = pneg %p50
      %p280 = scmp.lt.s32.totalorder %s22, 1
      %s281 = scalar_select %p280, %s22, 1
      %s282 = smul.addr %s281, 64
      %s283 = smul.addr %s282, 8
      %s284 = scalar_lea.vmem %s1, %s283
      %p285 = pneg %p79
      %p286 = pneg %p76
      %p287 = pneg %p100
      %p288 = pneg %p97
      %p289 = pneg %p121
      %p290 = pneg %p118
      %p291 = pneg %p142
      %p292 = pneg %p139
      %p293 = pneg %p163
      %p294 = pneg %p160
      %p295 = pneg %p184
      %p296 = pneg %p181
      %p297 = pneg %p212
      %p298 = pneg %p209
      %p299 = scmp.lt.s32.totalorder %s22, 1
      %s300 = scalar_select %p299, %s22, 1
      %p301 = scmp.lt.s32.totalorder %s23, 0
      %s302 = scalar_select %p301, %s23, 0
      %s303 = sadd.s32 %s302, %s300
      %s304 = smul.addr %s303, 4
      %s305 = scalar_lea.vmem %s7, %s304
      %p306 = scmp.lt.s32.totalorder %s22, 1
      %s307 = scalar_select %p306, %s22, 1
      %p308 = scmp.lt.s32.totalorder %s23, 0
      %s309 = scalar_select %p308, %s23, 0
      %s310 = sadd.s32 %s309, %s307
      %s311 = smul.addr %s310, 8
      %s312 = scalar_lea.vmem %s0, %s311
      %p313 = scmp.lt.s32.totalorder %s22, 1
      %s314 = scalar_select %p313, %s22, 1
      %s315 = smul.addr %s314, 64
      %s316 = smul.addr %s315, 8
      %s317 = scalar_lea.vmem %s1, %s316
      %p318 = scmp.lt.s32.totalorder %s22, 1
      %s319 = scalar_select %p318, %s22, 1
      %p320 = scmp.lt.s32.totalorder %s23, 0
      %s321 = scalar_select %p320, %s23, 0
      %s322 = sadd.s32 %s321, %s319
      %s323 = smul.addr %s322, 4
      %s324 = scalar_lea.vmem %s7, %s323
      %v326 = vld [vmem:[%s312] sm:$0x1f]
      %v327 = vld [vmem:[%s2] sm:$0xff]
      %v328 = vld [vmem:[%s2 + $0x8] sm:$0xff]
      %v329 = vld [vmem:[%s2 + $0x10] sm:$0xff]
      %v330 = vld [vmem:[%s2 + $0x18] sm:$0xff]
      %v331 = vld [vmem:[%s2 + $0x20] sm:$0xff]
      %v332 = vld [vmem:[%s2 + $0x28] sm:$0xff]
      %v333 = vld [vmem:[%s2 + $0x30] sm:$0xff]
      %v334 = vld [vmem:[%s2 + $0x38] sm:$0xff]
      %v335 = vld [vmem:[%s2 + $0x40] sm:$0xff]
      %v336 = vld [vmem:[%s2 + $0x48] sm:$0xff]
      %v337 = vld [vmem:[%s2 + $0x50] sm:$0xff]
      %v338 = vld [vmem:[%s2 + $0x58] sm:$0xff]
      %v339 = vld [vmem:[%s2 + $0x60] sm:$0xff]
      %v340 = vld [vmem:[%s2 + $0x68] sm:$0xff]
      %v341 = vld [vmem:[%s2 + $0x70] sm:$0xff]
      %v342 = vld [vmem:[%s2 + $0x78] sm:$0xff]
      %v343 = vld [vmem:[%s2 + $0x80] sm:$0xff]
      %v344 = vld [vmem:[%s2 + $0x88] sm:$0xff]
      %v345 = vld [vmem:[%s2 + $0x90] sm:$0xff]
      %v346 = vld [vmem:[%s2 + $0x98] sm:$0xff]
      %v347 = vld [vmem:[%s2 + $0xa0] sm:$0xff]
      %v348 = vld [vmem:[%s2 + $0xa8] sm:$0xff]
      %v349 = vld [vmem:[%s2 + $0xb0] sm:$0xff]
      %v350 = vld [vmem:[%s2 + $0xb8] sm:$0xff]
      %v351 = vld [vmem:[%s2 + $0xc0] sm:$0xff]
      %v352 = vld [vmem:[%s2 + $0xc8] sm:$0xff]
      %v353 = vld [vmem:[%s2 + $0xd0] sm:$0xff]
      %v354 = vld [vmem:[%s2 + $0xd8] sm:$0xff]
      %v355 = vld [vmem:[%s2 + $0xe0] sm:$0xff]
      %v356 = vld [vmem:[%s2 + $0xe8] sm:$0xff]
      %v357 = vld [vmem:[%s2 + $0xf0] sm:$0xff]
      %v358 = vld [vmem:[%s2 + $0xf8] sm:$0xff]
      %v359 = vld [vmem:[%s2 + $0x100] sm:$0xff]
      %v360 = vld [vmem:[%s2 + $0x108] sm:$0xff]
      %v361 = vld [vmem:[%s2 + $0x110] sm:$0xff]
      %v362 = vld [vmem:[%s2 + $0x118] sm:$0xff]
      %v363 = vld [vmem:[%s2 + $0x120] sm:$0xff]
      %v364 = vld [vmem:[%s2 + $0x128] sm:$0xff]
      %v365 = vld [vmem:[%s2 + $0x130] sm:$0xff]
      %v366 = vld [vmem:[%s2 + $0x138] sm:$0xff]
      %v367 = vld [vmem:[%s2 + $0x140] sm:$0xff]
      %v368 = vld [vmem:[%s2 + $0x148] sm:$0xff]
      %v369 = vld [vmem:[%s2 + $0x150] sm:$0xff]
      %v370 = vld [vmem:[%s2 + $0x158] sm:$0xff]
      %v371 = vld [vmem:[%s2 + $0x160] sm:$0xff]
      %v372 = vld [vmem:[%s2 + $0x168] sm:$0xff]
      %v373 = vld [vmem:[%s2 + $0x170] sm:$0xff]
      %v374 = vld [vmem:[%s2 + $0x178] sm:$0xff]
      %v375 = vld [vmem:[%s2 + $0x180] sm:$0xff]
      %v376 = vld [vmem:[%s2 + $0x188] sm:$0xff]
      %v377 = vld [vmem:[%s2 + $0x190] sm:$0xff]
      %v378 = vld [vmem:[%s2 + $0x198] sm:$0xff]
      %v379 = vld [vmem:[%s2 + $0x1a0] sm:$0xff]
      %v380 = vld [vmem:[%s2 + $0x1a8] sm:$0xff]
      %v381 = vld [vmem:[%s2 + $0x1b0] sm:$0xff]
      %v382 = vld [vmem:[%s2 + $0x1b8] sm:$0xff]
      %v383 = vld [vmem:[%s2 + $0x1c0] sm:$0xff]
      %v384 = vld [vmem:[%s2 + $0x1c8] sm:$0xff]
      %v385 = vld [vmem:[%s2 + $0x1d0] sm:$0xff]
      %v386 = vld [vmem:[%s2 + $0x1d8] sm:$0xff]
      %v387 = vld [vmem:[%s2 + $0x1e0] sm:$0xff]
      %v388 = vld [vmem:[%s2 + $0x1e8] sm:$0xff]
      %v389 = vld [vmem:[%s2 + $0x1f0] sm:$0xff]
      %v390 = vld [vmem:[%s2 + $0x1f8] sm:$0xff]
      %v391 = vld [vmem:[%s317] sm:$0xff]
      %v392 = vld [vmem:[%s317 + $0x8] sm:$0xff]
      %v393 = vld [vmem:[%s317 + $0x10] sm:$0xff]
      %v394 = vld [vmem:[%s317 + $0x18] sm:$0xff]
      %v395 = vld [vmem:[%s317 + $0x20] sm:$0xff]
      %v396 = vld [vmem:[%s317 + $0x28] sm:$0xff]
      %v397 = vld [vmem:[%s317 + $0x30] sm:$0xff]
      %v398 = vld [vmem:[%s317 + $0x38] sm:$0xff]
      %v399 = vld [vmem:[%s317 + $0x40] sm:$0xff]
      %v400 = vld [vmem:[%s317 + $0x48] sm:$0xff]
      %v401 = vld [vmem:[%s317 + $0x50] sm:$0xff]
      %v402 = vld [vmem:[%s317 + $0x58] sm:$0xff]
      %v403 = vld [vmem:[%s317 + $0x60] sm:$0xff]
      %v404 = vld [vmem:[%s317 + $0x68] sm:$0xff]
      %v405 = vld [vmem:[%s317 + $0x70] sm:$0xff]
      %v406 = vld [vmem:[%s317 + $0x78] sm:$0xff]
      %v407 = vld [vmem:[%s317 + $0x80] sm:$0xff]
      %v408 = vld [vmem:[%s317 + $0x88] sm:$0xff]
      %v409 = vld [vmem:[%s317 + $0x90] sm:$0xff]
      %v410 = vld [vmem:[%s317 + $0x98] sm:$0xff]
      %v411 = vld [vmem:[%s317 + $0xa0] sm:$0xff]
      %v412 = vld [vmem:[%s317 + $0xa8] sm:$0xff]
      %v413 = vld [vmem:[%s317 + $0xb0] sm:$0xff]
      %v414 = vld [vmem:[%s317 + $0xb8] sm:$0xff]
      %v415 = vld [vmem:[%s317 + $0xc0] sm:$0xff]
      %v416 = vld [vmem:[%s317 + $0xc8] sm:$0xff]
      %v417 = vld [vmem:[%s317 + $0xd0] sm:$0xff]
      %v418 = vld [vmem:[%s317 + $0xd8] sm:$0xff]
      %v419 = vld [vmem:[%s317 + $0xe0] sm:$0xff]
      %v420 = vld [vmem:[%s317 + $0xe8] sm:$0xff]
      %v421 = vld [vmem:[%s317 + $0xf0] sm:$0xff]
      %v422 = vld [vmem:[%s317 + $0xf8] sm:$0xff]
      %v423 = vld [vmem:[%s317 + $0x100] sm:$0xff]
      %v424 = vld [vmem:[%s317 + $0x108] sm:$0xff]
      %v425 = vld [vmem:[%s317 + $0x110] sm:$0xff]
      %v426 = vld [vmem:[%s317 + $0x118] sm:$0xff]
      %v427 = vld [vmem:[%s317 + $0x120] sm:$0xff]
      %v428 = vld [vmem:[%s317 + $0x128] sm:$0xff]
      %v429 = vld [vmem:[%s317 + $0x130] sm:$0xff]
      %v430 = vld [vmem:[%s317 + $0x138] sm:$0xff]
      %v431 = vld [vmem:[%s317 + $0x140] sm:$0xff]
      %v432 = vld [vmem:[%s317 + $0x148] sm:$0xff]
      %v433 = vld [vmem:[%s317 + $0x150] sm:$0xff]
      %v434 = vld [vmem:[%s317 + $0x158] sm:$0xff]
      %v435 = vld [vmem:[%s317 + $0x160] sm:$0xff]
      %v436 = vld [vmem:[%s317 + $0x168] sm:$0xff]
      %v437 = vld [vmem:[%s317 + $0x170] sm:$0xff]
      %v438 = vld [vmem:[%s317 + $0x178] sm:$0xff]
      %v439 = vld [vmem:[%s317 + $0x180] sm:$0xff]
      %v440 = vld [vmem:[%s317 + $0x188] sm:$0xff]
      %v441 = vld [vmem:[%s317 + $0x190] sm:$0xff]
      %v442 = vld [vmem:[%s317 + $0x198] sm:$0xff]
      %v443 = vld [vmem:[%s317 + $0x1a0] sm:$0xff]
      %v444 = vld [vmem:[%s317 + $0x1a8] sm:$0xff]
      %v445 = vld [vmem:[%s317 + $0x1b0] sm:$0xff]
      %v446 = vld [vmem:[%s317 + $0x1b8] sm:$0xff]
      %v447 = vld [vmem:[%s317 + $0x1c0] sm:$0xff]
      %v448 = vld [vmem:[%s317 + $0x1c8] sm:$0xff]
      %v449 = vld [vmem:[%s317 + $0x1d0] sm:$0xff]
      %v450 = vld [vmem:[%s317 + $0x1d8] sm:$0xff]
      %v451 = vld [vmem:[%s317 + $0x1e0] sm:$0xff]
      %v452 = vld [vmem:[%s317 + $0x1e8] sm:$0xff]
      %v453 = vld [vmem:[%s317 + $0x1f0] sm:$0xff]
      %v454 = vld [vmem:[%s317 + $0x1f8] sm:$0xff]
      %456 = vset.pattern.permute.xlu0 0
      %457 = vperm.xlu0 %456, %v391
      %v458 = vpop.permute.xlu0 %457
      %461 = vset.pattern.permute.xlu0 0
      %462 = vperm.xlu0 %461, %v392
      %v463 = vpop.permute.xlu0 %462
      %466 = vset.pattern.permute.xlu0 0
      %467 = vperm.xlu0 %466, %v393
      %v468 = vpop.permute.xlu0 %467
      %471 = vset.pattern.permute.xlu0 0
      %472 = vperm.xlu0 %471, %v394
      %v473 = vpop.permute.xlu0 %472
      %476 = vset.pattern.permute.xlu0 0
      %477 = vperm.xlu0 %476, %v395
      %v478 = vpop.permute.xlu0 %477
      %481 = vset.pattern.permute.xlu0 0
      %482 = vperm.xlu0 %481, %v396
      %v483 = vpop.permute.xlu0 %482
      %486 = vset.pattern.permute.xlu0 0
      %487 = vperm.xlu0 %486, %v397
      %v488 = vpop.permute.xlu0 %487
      %491 = vset.pattern.permute.xlu0 0
      %492 = vperm.xlu0 %491, %v398
      %v493 = vpop.permute.xlu0 %492
      %496 = vset.pattern.permute.xlu0 0
      %497 = vperm.xlu0 %496, %v399
      %v498 = vpop.permute.xlu0 %497
      %501 = vset.pattern.permute.xlu0 0
      %502 = vperm.xlu0 %501, %v400
      %v503 = vpop.permute.xlu0 %502
      %506 = vset.pattern.permute.xlu0 0
      %507 = vperm.xlu0 %506, %v401
      %v508 = vpop.permute.xlu0 %507
      %511 = vset.pattern.permute.xlu0 0
      %512 = vperm.xlu0 %511, %v402
      %v513 = vpop.permute.xlu0 %512
      %516 = vset.pattern.permute.xlu0 0
      %517 = vperm.xlu0 %516, %v403
      %v518 = vpop.permute.xlu0 %517
      %521 = vset.pattern.permute.xlu0 0
      %522 = vperm.xlu0 %521, %v404
      %v523 = vpop.permute.xlu0 %522
      %526 = vset.pattern.permute.xlu0 0
      %527 = vperm.xlu0 %526, %v405
      %v528 = vpop.permute.xlu0 %527
      %531 = vset.pattern.permute.xlu0 0
      %532 = vperm.xlu0 %531, %v406
      %v533 = vpop.permute.xlu0 %532
      %536 = vset.pattern.permute.xlu0 0
      %537 = vperm.xlu0 %536, %v407
      %v538 = vpop.permute.xlu0 %537
      %541 = vset.pattern.permute.xlu0 0
      %542 = vperm.xlu0 %541, %v408
      %v543 = vpop.permute.xlu0 %542
      %546 = vset.pattern.permute.xlu0 0
      %547 = vperm.xlu0 %546, %v409
      %v548 = vpop.permute.xlu0 %547
      %551 = vset.pattern.permute.xlu0 0
      %552 = vperm.xlu0 %551, %v410
      %v553 = vpop.permute.xlu0 %552
      %556 = vset.pattern.permute.xlu0 0
      %557 = vperm.xlu0 %556, %v411
      %v558 = vpop.permute.xlu0 %557
      %561 = vset.pattern.permute.xlu0 0
      %562 = vperm.xlu0 %561, %v412
      %v563 = vpop.permute.xlu0 %562
      %566 = vset.pattern.permute.xlu0 0
      %567 = vperm.xlu0 %566, %v413
      %v568 = vpop.permute.xlu0 %567
      %571 = vset.pattern.permute.xlu0 0
      %572 = vperm.xlu0 %571, %v414
      %v573 = vpop.permute.xlu0 %572
      %576 = vset.pattern.permute.xlu0 0
      %577 = vperm.xlu0 %576, %v415
      %v578 = vpop.permute.xlu0 %577
      %581 = vset.pattern.permute.xlu0 0
      %582 = vperm.xlu0 %581, %v416
      %v583 = vpop.permute.xlu0 %582
      %586 = vset.pattern.permute.xlu0 0
      %587 = vperm.xlu0 %586, %v417
      %v588 = vpop.permute.xlu0 %587
      %591 = vset.pattern.permute.xlu0 0
      %592 = vperm.xlu0 %591, %v418
      %v593 = vpop.permute.xlu0 %592
      %596 = vset.pattern.permute.xlu0 0
      %597 = vperm.xlu0 %596, %v419
      %v598 = vpop.permute.xlu0 %597
      %601 = vset.pattern.permute.xlu0 0
      %602 = vperm.xlu0 %601, %v420
      %v603 = vpop.permute.xlu0 %602
      %606 = vset.pattern.permute.xlu0 0
      %607 = vperm.xlu0 %606, %v421
      %v608 = vpop.permute.xlu0 %607
      %611 = vset.pattern.permute.xlu0 0
      %612 = vperm.xlu0 %611, %v422
      %v613 = vpop.permute.xlu0 %612
      %616 = vset.pattern.permute.xlu0 0
      %617 = vperm.xlu0 %616, %v423
      %v618 = vpop.permute.xlu0 %617
      %621 = vset.pattern.permute.xlu0 0
      %622 = vperm.xlu0 %621, %v424
      %v623 = vpop.permute.xlu0 %622
      %626 = vset.pattern.permute.xlu0 0
      %627 = vperm.xlu0 %626, %v425
      %v628 = vpop.permute.xlu0 %627
      %631 = vset.pattern.permute.xlu0 0
      %632 = vperm.xlu0 %631, %v426
      %v633 = vpop.permute.xlu0 %632
      %636 = vset.pattern.permute.xlu0 0
      %637 = vperm.xlu0 %636, %v427
      %v638 = vpop.permute.xlu0 %637
      %641 = vset.pattern.permute.xlu0 0
      %642 = vperm.xlu0 %641, %v428
      %v643 = vpop.permute.xlu0 %642
      %646 = vset.pattern.permute.xlu0 0
      %647 = vperm.xlu0 %646, %v429
      %v648 = vpop.permute.xlu0 %647
      %651 = vset.pattern.permute.xlu0 0
      %652 = vperm.xlu0 %651, %v430
      %v653 = vpop.permute.xlu0 %652
      %656 = vset.pattern.permute.xlu0 0
      %657 = vperm.xlu0 %656, %v431
      %v658 = vpop.permute.xlu0 %657
      %661 = vset.pattern.permute.xlu0 0
      %662 = vperm.xlu0 %661, %v432
      %v663 = vpop.permute.xlu0 %662
      %666 = vset.pattern.permute.xlu0 0
      %667 = vperm.xlu0 %666, %v433
      %v668 = vpop.permute.xlu0 %667
      %671 = vset.pattern.permute.xlu0 0
      %672 = vperm.xlu0 %671, %v434
      %v673 = vpop.permute.xlu0 %672
      %676 = vset.pattern.permute.xlu0 0
      %677 = vperm.xlu0 %676, %v435
      %v678 = vpop.permute.xlu0 %677
      %681 = vset.pattern.permute.xlu0 0
      %682 = vperm.xlu0 %681, %v436
      %v683 = vpop.permute.xlu0 %682
      %686 = vset.pattern.permute.xlu0 0
      %687 = vperm.xlu0 %686, %v437
      %v688 = vpop.permute.xlu0 %687
      %691 = vset.pattern.permute.xlu0 0
      %692 = vperm.xlu0 %691, %v438
      %v693 = vpop.permute.xlu0 %692
      %696 = vset.pattern.permute.xlu0 0
      %697 = vperm.xlu0 %696, %v439
      %v698 = vpop.permute.xlu0 %697
      %701 = vset.pattern.permute.xlu0 0
      %702 = vperm.xlu0 %701, %v440
      %v703 = vpop.permute.xlu0 %702
      %706 = vset.pattern.permute.xlu0 0
      %707 = vperm.xlu0 %706, %v441
      %v708 = vpop.permute.xlu0 %707
      %711 = vset.pattern.permute.xlu0 0
      %712 = vperm.xlu0 %711, %v442
      %v713 = vpop.permute.xlu0 %712
      %716 = vset.pattern.permute.xlu0 0
      %717 = vperm.xlu0 %716, %v443
      %v718 = vpop.permute.xlu0 %717
      %721 = vset.pattern.permute.xlu0 0
      %722 = vperm.xlu0 %721, %v444
      %v723 = vpop.permute.xlu0 %722
      %726 = vset.pattern.permute.xlu0 0
      %727 = vperm.xlu0 %726, %v445
      %v728 = vpop.permute.xlu0 %727
      %731 = vset.pattern.permute.xlu0 0
      %732 = vperm.xlu0 %731, %v446
      %v733 = vpop.permute.xlu0 %732
      %736 = vset.pattern.permute.xlu0 0
      %737 = vperm.xlu0 %736, %v447
      %v738 = vpop.permute.xlu0 %737
      %741 = vset.pattern.permute.xlu0 0
      %742 = vperm.xlu0 %741, %v448
      %v743 = vpop.permute.xlu0 %742
      %746 = vset.pattern.permute.xlu0 0
      %747 = vperm.xlu0 %746, %v449
      %v748 = vpop.permute.xlu0 %747
      %751 = vset.pattern.permute.xlu0 0
      %752 = vperm.xlu0 %751, %v450
      %v753 = vpop.permute.xlu0 %752
      %756 = vset.pattern.permute.xlu0 0
      %757 = vperm.xlu0 %756, %v451
      %v758 = vpop.permute.xlu0 %757
      %761 = vset.pattern.permute.xlu0 0
      %762 = vperm.xlu0 %761, %v452
      %v763 = vpop.permute.xlu0 %762
      %766 = vset.pattern.permute.xlu0 0
      %767 = vperm.xlu0 %766, %v453
      %v768 = vpop.permute.xlu0 %767
      %771 = vset.pattern.permute.xlu0 0
      %772 = vperm.xlu0 %771, %v454
      %v773 = vpop.permute.xlu0 %772
      %vm775 = vcmask 39936
      %v777 = vsel %vm775, %v327, 0
      %v780 = vsel %vm775, %v328, 0
      %v783 = vsel %vm775, %v329, 0
      %v786 = vsel %vm775, %v330, 0
      %v789 = vsel %vm775, %v331, 0
      %v792 = vsel %vm775, %v332, 0
      %v795 = vsel %vm775, %v333, 0
      %v798 = vsel %vm775, %v334, 0
      %v801 = vsel %vm775, %v335, 0
      %v804 = vsel %vm775, %v336, 0
      %v807 = vsel %vm775, %v337, 0
      %v810 = vsel %vm775, %v338, 0
      %v813 = vsel %vm775, %v339, 0
      %v816 = vsel %vm775, %v340, 0
      %v819 = vsel %vm775, %v341, 0
      %v822 = vsel %vm775, %v342, 0
      %v825 = vsel %vm775, %v343, 0
      %v828 = vsel %vm775, %v344, 0
      %v831 = vsel %vm775, %v345, 0
      %v834 = vsel %vm775, %v346, 0
      %v837 = vsel %vm775, %v347, 0
      %v840 = vsel %vm775, %v348, 0
      %v843 = vsel %vm775, %v349, 0
      %v846 = vsel %vm775, %v350, 0
      %v849 = vsel %vm775, %v351, 0
      %v852 = vsel %vm775, %v352, 0
      %v855 = vsel %vm775, %v353, 0
      %v858 = vsel %vm775, %v354, 0
      %v861 = vsel %vm775, %v355, 0
      %v864 = vsel %vm775, %v356, 0
      %v867 = vsel %vm775, %v357, 0
      %v870 = vsel %vm775, %v358, 0
      %v873 = vsel %vm775, %v359, 0
      %v876 = vsel %vm775, %v360, 0
      %v879 = vsel %vm775, %v361, 0
      %v882 = vsel %vm775, %v362, 0
      %v885 = vsel %vm775, %v363, 0
      %v888 = vsel %vm775, %v364, 0
      %v891 = vsel %vm775, %v365, 0
      %v894 = vsel %vm775, %v366, 0
      %v897 = vsel %vm775, %v367, 0
      %v900 = vsel %vm775, %v368, 0
      %v903 = vsel %vm775, %v369, 0
      %v906 = vsel %vm775, %v370, 0
      %v909 = vsel %vm775, %v371, 0
      %v912 = vsel %vm775, %v372, 0
      %v915 = vsel %vm775, %v373, 0
      %v918 = vsel %vm775, %v374, 0
      %v921 = vsel %vm775, %v375, 0
      %v924 = vsel %vm775, %v376, 0
      %v927 = vsel %vm775, %v377, 0
      %v930 = vsel %vm775, %v378, 0
      %v933 = vsel %vm775, %v379, 0
      %v936 = vsel %vm775, %v380, 0
      %v939 = vsel %vm775, %v381, 0
      %v942 = vsel %vm775, %v382, 0
      %v945 = vsel %vm775, %v383, 0
      %v948 = vsel %vm775, %v384, 0
      %v951 = vsel %vm775, %v385, 0
      %v954 = vsel %vm775, %v386, 0
      %v957 = vsel %vm775, %v387, 0
      %v960 = vsel %vm775, %v388, 0
      %v963 = vsel %vm775, %v389, 0
      %v966 = vsel %vm775, %v390, 0
      %vm968 = vcmask 1044480
      %v970 = vsel %vm968, %v326, 0
      %972 = vmatprep.subr.mxu0 0.0
      %973 = vmatpush1.msra.mxu0 %v970
      %974 = vmatprep.subr.mxu0 0.0
      %975 = vmatpush1.msra.mxu0 0.0
      %976 = vmatprep.subr.mxu0 0.0
      %977 = vmatpush1.msra.mxu0 0.0
      %978 = vmatprep.subr.mxu0 0.0
      %979 = vmatpush1.msra.mxu0 0.0
      %980 = vmatprep.subr.mxu0 0.0
      %981 = vmatpush1.msra.mxu0 0.0
      %982 = vmatprep.subr.mxu0 0.0
      %983 = vmatpush1.msra.mxu0 0.0
      %984 = vmatprep.subr.mxu0 0.0
      %985 = vmatpush1.msra.mxu0 0.0
      %986 = vmatprep.subr.mxu0 0.0
      %987 = vmatpush1.msra.mxu0 0.0
      %988 = vmatprep.subr.mxu0 0.0
      %989 = vmatpush1.msra.mxu0 0.0
      %990 = vmatprep.subr.mxu0 0.0
      %991 = vmatpush1.msra.mxu0 0.0
      %992 = vmatprep.subr.mxu0 0.0
      %993 = vmatpush1.msra.mxu0 0.0
      %994 = vmatprep.subr.mxu0 0.0
      %995 = vmatpush1.msra.mxu0 0.0
      %996 = vmatprep.subr.mxu0 0.0
      %997 = vmatpush1.msra.mxu0 0.0
      %998 = vmatprep.subr.mxu0 0.0
      %999 = vmatpush1.msra.mxu0 0.0
      %1000 = vmatprep.subr.mxu0 0.0
      %1001 = vmatpush1.msra.mxu0 0.0
      %1002 = vmatprep.subr.mxu0 0.0
      %1003 = vmatpush1.msra.mxu0 0.0
      %1004 = vmatprep.subr.mxu0 0.0
      %1005 = vmatpush1.msra.mxu0 0.0
      %1006 = vmatprep.subr.mxu0 0.0
      %1007 = vmatpush1.msra.mxu0 0.0
      %1008 = vmatprep.subr.mxu0 0.0
      %1009 = vmatpush1.msra.mxu0 0.0
      %1010 = vmatprep.subr.mxu0 0.0
      %1011 = vmatpush1.msra.mxu0 0.0
      %1012 = vmatprep.subr.mxu0 0.0
      %1013 = vmatpush1.msra.mxu0 0.0
      %1014 = vmatprep.subr.mxu0 0.0
      %1015 = vmatpush1.msra.mxu0 0.0
      %1016 = vmatprep.subr.mxu0 0.0
      %1017 = vmatpush1.msra.mxu0 0.0
      %1018 = vmatprep.subr.mxu0 0.0
      %1019 = vmatpush1.msra.mxu0 0.0
      %1020 = vmatprep.subr.mxu0 0.0
      %1021 = vmatpush1.msra.mxu0 0.0
      %1022 = vmatprep.subr.mxu0 0.0
      %1023 = vmatpush1.msra.mxu0 0.0
      %1024 = vmatprep.subr.mxu0 0.0
      %1025 = vmatpush1.msra.mxu0 0.0
      %1026 = vmatprep.subr.mxu0 0.0
      %1027 = vmatpush1.msra.mxu0 0.0
      %1028 = vmatprep.subr.mxu0 0.0
      %1029 = vmatpush1.msra.mxu0 0.0
      %1030 = vmatprep.subr.mxu0 0.0
      %1031 = vmatpush1.msra.mxu0 0.0
      %1032 = vmatprep.subr.mxu0 0.0
      %1033 = vmatpush1.msra.mxu0 0.0
      %1034 = vmatprep.subr.mxu0 0.0
      %1035 = vmatpush1.msra.mxu0 0.0
      %1036 = vmatprep.mubr.f32.mxu0 0.0
      %1037 = vmatmul.mubr.f32.gmra.mrb[0].mxu0 %v777
      %v1038 = vpop.f32.mrb[0].mxu0
      %v1039 = vadd.f32 %v458, %v1038
      %v1040 = vpop.f32.mrb[0].mxu0
      %1041 = vmatprep.mubr.f32.mxu0 0.0
      %1042 = vmatmul.mubr.f32.gmra.mrb[0].mxu0 %v780
      %v1043 = vpop.f32.mrb[0].mxu0
      %v1044 = vadd.f32 %v463, %v1043
      %v1045 = vpop.f32.mrb[0].mxu0
      %1046 = vmatprep.mubr.f32.mxu0 0.0
      %1047 = vmatmul.mubr.f32.gmra.mrb[0].mxu0 %v783
      %v1048 = vpop.f32.mrb[0].mxu0
      %v1049 = vadd.f32 %v468, %v1048
      %v1050 = vpop.f32.mrb[0].mxu0
      %1051 = vmatprep.mubr.f32.mxu0 0.0
      %1052 = vmatmul.mubr.f32.gmra.mrb[0].mxu0 %v786
      %v1053 = vpop.f32.mrb[0].mxu0
      %v1054 = vadd.f32 %v473, %v1053
      %v1055 = vpop.f32.mrb[0].mxu0
      %1056 = vmatprep.mubr.f32.mxu0 0.0
      %1057 = vmatmul.mubr.f32.gmra.mrb[0].mxu0 %v789
      %v1058 = vpop.f32.mrb[0].mxu0
      %v1059 = vadd.f32 %v478, %v1058
      %v1060 = vpop.f32.mrb[0].mxu0
      %1061 = vmatprep.mubr.f32.mxu0 0.0
      %1062 = vmatmul.mubr.f32.gmra.mrb[0].mxu0 %v792
      %v1063 = vpop.f32.mrb[0].mxu0
      %v1064 = vadd.f32 %v483, %v1063
      %v1065 = vpop.f32.mrb[0].mxu0
      %1066 = vmatprep.mubr.f32.mxu0 0.0
      %1067 = vmatmul.mubr.f32.gmra.mrb[0].mxu0 %v795
      %v1068 = vpop.f32.mrb[0].mxu0
      %v1069 = vadd.f32 %v488, %v1068
      %v1070 = vpop.f32.mrb[0].mxu0
      %1071 = vmatprep.mubr.f32.mxu0 0.0
      %1072 = vmatmul.mubr.f32.gmra.mrb[0].mxu0 %v798
      %v1073 = vpop.f32.mrb[0].mxu0
      %v1074 = vadd.f32 %v493, %v1073
      %v1075 = vpop.f32.mrb[0].mxu0
      %1076 = vmatprep.mubr.f32.mxu0 0.0
      %1077 = vmatmul.mubr.f32.gmra.mrb[0].mxu0 %v801
      %v1078 = vpop.f32.mrb[0].mxu0
      %v1079 = vadd.f32 %v498, %v1078
      %v1080 = vpop.f32.mrb[0].mxu0
      %1081 = vmatprep.mubr.f32.mxu0 0.0
      %1082 = vmatmul.mubr.f32.gmra.mrb[0].mxu0 %v804
      %v1083 = vpop.f32.mrb[0].mxu0
      %v1084 = vadd.f32 %v503, %v1083
      %v1085 = vpop.f32.mrb[0].mxu0
      %1086 = vmatprep.mubr.f32.mxu0 0.0
      %1087 = vmatmul.mubr.f32.gmra.mrb[0].mxu0 %v807
      %v1088 = vpop.f32.mrb[0].mxu0
      %v1089 = vadd.f32 %v508, %v1088
      %v1090 = vpop.f32.mrb[0].mxu0
      %1091 = vmatprep.mubr.f32.mxu0 0.0
      %1092 = vmatmul.mubr.f32.gmra.mrb[0].mxu0 %v810
      %v1093 = vpop.f32.mrb[0].mxu0
      %v1094 = vadd.f32 %v513, %v1093
      %v1095 = vpop.f32.mrb[0].mxu0
      %1096 = vmatprep.mubr.f32.mxu0 0.0
      %1097 = vmatmul.mubr.f32.gmra.mrb[0].mxu0 %v813
      %v1098 = vpop.f32.mrb[0].mxu0
      %v1099 = vadd.f32 %v518, %v1098
      %v1100 = vpop.f32.mrb[0].mxu0
      %1101 = vmatprep.mubr.f32.mxu0 0.0
      %1102 = vmatmul.mubr.f32.gmra.mrb[0].mxu0 %v816
      %v1103 = vpop.f32.mrb[0].mxu0
      %v1104 = vadd.f32 %v523, %v1103
      %v1105 = vpop.f32.mrb[0].mxu0
      %1106 = vmatprep.mubr.f32.mxu0 0.0
      %1107 = vmatmul.mubr.f32.gmra.mrb[0].mxu0 %v819
      %v1108 = vpop.f32.mrb[0].mxu0
      %v1109 = vadd.f32 %v528, %v1108
      %v1110 = vpop.f32.mrb[0].mxu0
      %1111 = vmatprep.mubr.f32.mxu0 0.0
      %1112 = vmatmul.mubr.f32.gmra.mrb[0].mxu0 %v822
      %v1113 = vpop.f32.mrb[0].mxu0
      %v1114 = vadd.f32 %v533, %v1113
      %v1115 = vpop.f32.mrb[0].mxu0
      %1116 = vmatprep.mubr.f32.mxu0 0.0
      %1117 = vmatmul.mubr.f32.gmra.mrb[0].mxu0 %v825
      %v1118 = vpop.f32.mrb[0].mxu0
      %v1119 = vadd.f32 %v538, %v1118
      %v1120 = vpop.f32.mrb[0].mxu0
      %1121 = vmatprep.mubr.f32.mxu0 0.0
      %1122 = vmatmul.mubr.f32.gmra.mrb[0].mxu0 %v828
      %v1123 = vpop.f32.mrb[0].mxu0
      %v1124 = vadd.f32 %v543, %v1123
      %v1125 = vpop.f32.mrb[0].mxu0
      %1126 = vmatprep.mubr.f32.mxu0 0.0
      %1127 = vmatmul.mubr.f32.gmra.mrb[0].mxu0 %v831
      %v1128 = vpop.f32.mrb[0].mxu0
      %v1129 = vadd.f32 %v548, %v1128
      %v1130 = vpop.f32.mrb[0].mxu0
      %1131 = vmatprep.mubr.f32.mxu0 0.0
      %1132 = vmatmul.mubr.f32.gmra.mrb[0].mxu0 %v834
      %v1133 = vpop.f32.mrb[0].mxu0
      %v1134 = vadd.f32 %v553, %v1133
      %v1135 = vpop.f32.mrb[0].mxu0
      %1136 = vmatprep.mubr.f32.mxu0 0.0
      %1137 = vmatmul.mubr.f32.gmra.mrb[0].mxu0 %v837
      %v1138 = vpop.f32.mrb[0].mxu0
      %v1139 = vadd.f32 %v558, %v1138
      %v1140 = vpop.f32.mrb[0].mxu0
      %1141 = vmatprep.mubr.f32.mxu0 0.0
      %1142 = vmatmul.mubr.f32.gmra.mrb[0].mxu0 %v840
      %v1143 = vpop.f32.mrb[0].mxu0
      %v1144 = vadd.f32 %v563, %v1143
      %v1145 = vpop.f32.mrb[0].mxu0
      %1146 = vmatprep.mubr.f32.mxu0 0.0
      %1147 = vmatmul.mubr.f32.gmra.mrb[0].mxu0 %v843
      %v1148 = vpop.f32.mrb[0].mxu0
      %v1149 = vadd.f32 %v568, %v1148
      %v1150 = vpop.f32.mrb[0].mxu0
      %1151 = vmatprep.mubr.f32.mxu0 0.0
      %1152 = vmatmul.mubr.f32.gmra.mrb[0].mxu0 %v846
      %v1153 = vpop.f32.mrb[0].mxu0
      %v1154 = vadd.f32 %v573, %v1153
      %v1155 = vpop.f32.mrb[0].mxu0
      %1156 = vmatprep.mubr.f32.mxu0 0.0
      %1157 = vmatmul.mubr.f32.gmra.mrb[0].mxu0 %v849
      %v1158 = vpop.f32.mrb[0].mxu0
      %v1159 = vadd.f32 %v578, %v1158
      %v1160 = vpop.f32.mrb[0].mxu0
      %1161 = vmatprep.mubr.f32.mxu0 0.0
      %1162 = vmatmul.mubr.f32.gmra.mrb[0].mxu0 %v852
      %v1163 = vpop.f32.mrb[0].mxu0
      %v1164 = vadd.f32 %v583, %v1163
      %v1165 = vpop.f32.mrb[0].mxu0
      %1166 = vmatprep.mubr.f32.mxu0 0.0
      %1167 = vmatmul.mubr.f32.gmra.mrb[0].mxu0 %v855
      %v1168 = vpop.f32.mrb[0].mxu0
      %v1169 = vadd.f32 %v588, %v1168
      %v1170 = vpop.f32.mrb[0].mxu0
      %1171 = vmatprep.mubr.f32.mxu0 0.0
      %1172 = vmatmul.mubr.f32.gmra.mrb[0].mxu0 %v858
      %v1173 = vpop.f32.mrb[0].mxu0
      %v1174 = vadd.f32 %v593, %v1173
      %v1175 = vpop.f32.mrb[0].mxu0
      %1176 = vmatprep.mubr.f32.mxu0 0.0
      %1177 = vmatmul.mubr.f32.gmra.mrb[0].mxu0 %v861
      %v1178 = vpop.f32.mrb[0].mxu0
      %v1179 = vadd.f32 %v598, %v1178
      %v1180 = vpop.f32.mrb[0].mxu0
      %1181 = vmatprep.mubr.f32.mxu0 0.0
      %1182 = vmatmul.mubr.f32.gmra.mrb[0].mxu0 %v864
      %v1183 = vpop.f32.mrb[0].mxu0
      %v1184 = vadd.f32 %v603, %v1183
      %v1185 = vpop.f32.mrb[0].mxu0
      %1186 = vmatprep.mubr.f32.mxu0 0.0
      %1187 = vmatmul.mubr.f32.gmra.mrb[0].mxu0 %v867
      %v1188 = vpop.f32.mrb[0].mxu0
      %v1189 = vadd.f32 %v608, %v1188
      %v1190 = vpop.f32.mrb[0].mxu0
      %1191 = vmatprep.mubr.f32.mxu0 0.0
      %1192 = vmatmul.mubr.f32.gmra.mrb[0].mxu0 %v870
      %v1193 = vpop.f32.mrb[0].mxu0
      %v1194 = vadd.f32 %v613, %v1193
      %v1195 = vpop.f32.mrb[0].mxu0
      %1196 = vmatprep.mubr.f32.mxu0 0.0
      %1197 = vmatmul.mubr.f32.gmra.mrb[0].mxu0 %v873
      %v1198 = vpop.f32.mrb[0].mxu0
      %v1199 = vadd.f32 %v618, %v1198
      %v1200 = vpop.f32.mrb[0].mxu0
      %1201 = vmatprep.mubr.f32.mxu0 0.0
      %1202 = vmatmul.mubr.f32.gmra.mrb[0].mxu0 %v876
      %v1203 = vpop.f32.mrb[0].mxu0
      %v1204 = vadd.f32 %v623, %v1203
      %v1205 = vpop.f32.mrb[0].mxu0
      %1206 = vmatprep.mubr.f32.mxu0 0.0
      %1207 = vmatmul.mubr.f32.gmra.mrb[0].mxu0 %v879
      %v1208 = vpop.f32.mrb[0].mxu0
      %v1209 = vadd.f32 %v628, %v1208
      %v1210 = vpop.f32.mrb[0].mxu0
      %1211 = vmatprep.mubr.f32.mxu0 0.0
      %1212 = vmatmul.mubr.f32.gmra.mrb[0].mxu0 %v882
      %v1213 = vpop.f32.mrb[0].mxu0
      %v1214 = vadd.f32 %v633, %v1213
      %v1215 = vpop.f32.mrb[0].mxu0
      %1216 = vmatprep.mubr.f32.mxu0 0.0
      %1217 = vmatmul.mubr.f32.gmra.mrb[0].mxu0 %v885
      %v1218 = vpop.f32.mrb[0].mxu0
      %v1219 = vadd.f32 %v638, %v1218
      %v1220 = vpop.f32.mrb[0].mxu0
      %1221 = vmatprep.mubr.f32.mxu0 0.0
      %1222 = vmatmul.mubr.f32.gmra.mrb[0].mxu0 %v888
      %v1223 = vpop.f32.mrb[0].mxu0
      %v1224 = vadd.f32 %v643, %v1223
      %v1225 = vpop.f32.mrb[0].mxu0
      %1226 = vmatprep.mubr.f32.mxu0 0.0
      %1227 = vmatmul.mubr.f32.gmra.mrb[0].mxu0 %v891
      %v1228 = vpop.f32.mrb[0].mxu0
      %v1229 = vadd.f32 %v648, %v1228
      %v1230 = vpop.f32.mrb[0].mxu0
      %1231 = vmatprep.mubr.f32.mxu0 0.0
      %1232 = vmatmul.mubr.f32.gmra.mrb[0].mxu0 %v894
      %v1233 = vpop.f32.mrb[0].mxu0
      %v1234 = vadd.f32 %v653, %v1233
      %v1235 = vpop.f32.mrb[0].mxu0
      %1236 = vmatprep.mubr.f32.mxu0 0.0
      %1237 = vmatmul.mubr.f32.gmra.mrb[0].mxu0 %v897
      %v1238 = vpop.f32.mrb[0].mxu0
      %v1239 = vadd.f32 %v658, %v1238
      %v1240 = vpop.f32.mrb[0].mxu0
      %1241 = vmatprep.mubr.f32.mxu0 0.0
      %1242 = vmatmul.mubr.f32.gmra.mrb[0].mxu0 %v900
      %v1243 = vpop.f32.mrb[0].mxu0
      %v1244 = vadd.f32 %v663, %v1243
      %v1245 = vpop.f32.mrb[0].mxu0
      %1246 = vmatprep.mubr.f32.mxu0 0.0
      %1247 = vmatmul.mubr.f32.gmra.mrb[0].mxu0 %v903
      %v1248 = vpop.f32.mrb[0].mxu0
      %v1249 = vadd.f32 %v668, %v1248
      %v1250 = vpop.f32.mrb[0].mxu0
      %1251 = vmatprep.mubr.f32.mxu0 0.0
      %1252 = vmatmul.mubr.f32.gmra.mrb[0].mxu0 %v906
      %v1253 = vpop.f32.mrb[0].mxu0
      %v1254 = vadd.f32 %v673, %v1253
      %v1255 = vpop.f32.mrb[0].mxu0
      %1256 = vmatprep.mubr.f32.mxu0 0.0
      %1257 = vmatmul.mubr.f32.gmra.mrb[0].mxu0 %v909
      %v1258 = vpop.f32.mrb[0].mxu0
      %v1259 = vadd.f32 %v678, %v1258
      %v1260 = vpop.f32.mrb[0].mxu0
      %1261 = vmatprep.mubr.f32.mxu0 0.0
      %1262 = vmatmul.mubr.f32.gmra.mrb[0].mxu0 %v912
      %v1263 = vpop.f32.mrb[0].mxu0
      %v1264 = vadd.f32 %v683, %v1263
      %v1265 = vpop.f32.mrb[0].mxu0
      %1266 = vmatprep.mubr.f32.mxu0 0.0
      %1267 = vmatmul.mubr.f32.gmra.mrb[0].mxu0 %v915
      %v1268 = vpop.f32.mrb[0].mxu0
      %v1269 = vadd.f32 %v688, %v1268
      %v1270 = vpop.f32.mrb[0].mxu0
      %1271 = vmatprep.mubr.f32.mxu0 0.0
      %1272 = vmatmul.mubr.f32.gmra.mrb[0].mxu0 %v918
      %v1273 = vpop.f32.mrb[0].mxu0
      %v1274 = vadd.f32 %v693, %v1273
      %v1275 = vpop.f32.mrb[0].mxu0
      %1276 = vmatprep.mubr.f32.mxu0 0.0
      %1277 = vmatmul.mubr.f32.gmra.mrb[0].mxu0 %v921
      %v1278 = vpop.f32.mrb[0].mxu0
      %v1279 = vadd.f32 %v698, %v1278
      %v1280 = vpop.f32.mrb[0].mxu0
      %1281 = vmatprep.mubr.f32.mxu0 0.0
      %1282 = vmatmul.mubr.f32.gmra.mrb[0].mxu0 %v924
      %v1283 = vpop.f32.mrb[0].mxu0
      %v1284 = vadd.f32 %v703, %v1283
      %v1285 = vpop.f32.mrb[0].mxu0
      %1286 = vmatprep.mubr.f32.mxu0 0.0
      %1287 = vmatmul.mubr.f32.gmra.mrb[0].mxu0 %v927
      %v1288 = vpop.f32.mrb[0].mxu0
      %v1289 = vadd.f32 %v708, %v1288
      %v1290 = vpop.f32.mrb[0].mxu0
      %1291 = vmatprep.mubr.f32.mxu0 0.0
      %1292 = vmatmul.mubr.f32.gmra.mrb[0].mxu0 %v930
      %v1293 = vpop.f32.mrb[0].mxu0
      %v1294 = vadd.f32 %v713, %v1293
      %v1295 = vpop.f32.mrb[0].mxu0
      %1296 = vmatprep.mubr.f32.mxu0 0.0
      %1297 = vmatmul.mubr.f32.gmra.mrb[0].mxu0 %v933
      %v1298 = vpop.f32.mrb[0].mxu0
      %v1299 = vadd.f32 %v718, %v1298
      %v1300 = vpop.f32.mrb[0].mxu0
      %1301 = vmatprep.mubr.f32.mxu0 0.0
      %1302 = vmatmul.mubr.f32.gmra.mrb[0].mxu0 %v936
      %v1303 = vpop.f32.mrb[0].mxu0
      %v1304 = vadd.f32 %v723, %v1303
      %v1305 = vpop.f32.mrb[0].mxu0
      %1306 = vmatprep.mubr.f32.mxu0 0.0
      %1307 = vmatmul.mubr.f32.gmra.mrb[0].mxu0 %v939
      %v1308 = vpop.f32.mrb[0].mxu0
      %v1309 = vadd.f32 %v728, %v1308
      %v1310 = vpop.f32.mrb[0].mxu0
      %1311 = vmatprep.mubr.f32.mxu0 0.0
      %1312 = vmatmul.mubr.f32.gmra.mrb[0].mxu0 %v942
      %v1313 = vpop.f32.mrb[0].mxu0
      %v1314 = vadd.f32 %v733, %v1313
      %v1315 = vpop.f32.mrb[0].mxu0
      %1316 = vmatprep.mubr.f32.mxu0 0.0
      %1317 = vmatmul.mubr.f32.gmra.mrb[0].mxu0 %v945
      %v1318 = vpop.f32.mrb[0].mxu0
      %v1319 = vadd.f32 %v738, %v1318
      %v1320 = vpop.f32.mrb[0].mxu0
      %1321 = vmatprep.mubr.f32.mxu0 0.0
      %1322 = vmatmul.mubr.f32.gmra.mrb[0].mxu0 %v948
      %v1323 = vpop.f32.mrb[0].mxu0
      %v1324 = vadd.f32 %v743, %v1323
      %v1325 = vpop.f32.mrb[0].mxu0
      %1326 = vmatprep.mubr.f32.mxu0 0.0
      %1327 = vmatmul.mubr.f32.gmra.mrb[0].mxu0 %v951
      %v1328 = vpop.f32.mrb[0].mxu0
      %v1329 = vadd.f32 %v748, %v1328
      %v1330 = vpop.f32.mrb[0].mxu0
      %1331 = vmatprep.mubr.f32.mxu0 0.0
      %1332 = vmatmul.mubr.f32.gmra.mrb[0].mxu0 %v954
      %v1333 = vpop.f32.mrb[0].mxu0
      %v1334 = vadd.f32 %v753, %v1333
      %v1335 = vpop.f32.mrb[0].mxu0
      %1336 = vmatprep.mubr.f32.mxu0 0.0
      %1337 = vmatmul.mubr.f32.gmra.mrb[0].mxu0 %v957
      %v1338 = vpop.f32.mrb[0].mxu0
      %v1339 = vadd.f32 %v758, %v1338
      %v1340 = vpop.f32.mrb[0].mxu0
      %1341 = vmatprep.mubr.f32.mxu0 0.0
      %1342 = vmatmul.mubr.f32.gmra.mrb[0].mxu0 %v960
      %v1343 = vpop.f32.mrb[0].mxu0
      %v1344 = vadd.f32 %v763, %v1343
      %v1345 = vpop.f32.mrb[0].mxu0
      %1346 = vmatprep.mubr.f32.mxu0 0.0
      %1347 = vmatmul.mubr.f32.gmra.mrb[0].mxu0 %v963
      %v1348 = vpop.f32.mrb[0].mxu0
      %v1349 = vadd.f32 %v768, %v1348
      %v1350 = vpop.f32.mrb[0].mxu0
      %1351 = vmatprep.mubr.f32.mxu0 0.0
      %1352 = vmatmul.mubr.f32.gmra.mrb[0].mxu0 %v966
      %v1353 = vpop.f32.mrb[0].mxu0
      %v1354 = vadd.f32 %v773, %v1353
      %v1355 = vpop.f32.mrb[0].mxu0
      %1356 = vdwg.mxu0
      %v1357 = vmax.f32 %v1039, 0.0
      %v1358 = vmax.f32 %v1044, 0.0
      %v1359 = vmax.f32 %v1049, 0.0
      %v1360 = vmax.f32 %v1054, 0.0
      %v1361 = vmax.f32 %v1059, 0.0
      %v1362 = vmax.f32 %v1064, 0.0
      %v1363 = vmax.f32 %v1069, 0.0
      %v1364 = vmax.f32 %v1074, 0.0
      %v1365 = vmax.f32 %v1079, 0.0
      %v1366 = vmax.f32 %v1084, 0.0
      %v1367 = vmax.f32 %v1089, 0.0
      %v1368 = vmax.f32 %v1094, 0.0
      %v1369 = vmax.f32 %v1099, 0.0
      %v1370 = vmax.f32 %v1104, 0.0
      %v1371 = vmax.f32 %v1109, 0.0
      %v1372 = vmax.f32 %v1114, 0.0
      %v1373 = vmax.f32 %v1119, 0.0
      %v1374 = vmax.f32 %v1124, 0.0
      %v1375 = vmax.f32 %v1129, 0.0
      %v1376 = vmax.f32 %v1134, 0.0
      %v1377 = vmax.f32 %v1139, 0.0
      %v1378 = vmax.f32 %v1144, 0.0
      %v1379 = vmax.f32 %v1149, 0.0
      %v1380 = vmax.f32 %v1154, 0.0
      %v1381 = vmax.f32 %v1159, 0.0
      %v1382 = vmax.f32 %v1164, 0.0
      %v1383 = vmax.f32 %v1169, 0.0
      %v1384 = vmax.f32 %v1174, 0.0
      %v1385 = vmax.f32 %v1179, 0.0
      %v1386 = vmax.f32 %v1184, 0.0
      %v1387 = vmax.f32 %v1189, 0.0
      %v1388 = vmax.f32 %v1194, 0.0
      %v1389 = vmax.f32 %v1199, 0.0
      %v1390 = vmax.f32 %v1204, 0.0
      %v1391 = vmax.f32 %v1209, 0.0
      %v1392 = vmax.f32 %v1214, 0.0
      %v1393 = vmax.f32 %v1219, 0.0
      %v1394 = vmax.f32 %v1224, 0.0
      %v1395 = vmax.f32 %v1229, 0.0
      %v1396 = vmax.f32 %v1234, 0.0
      %v1397 = vmax.f32 %v1239, 0.0
      %v1398 = vmax.f32 %v1244, 0.0
      %v1399 = vmax.f32 %v1249, 0.0
      %v1400 = vmax.f32 %v1254, 0.0
      %v1401 = vmax.f32 %v1259, 0.0
      %v1402 = vmax.f32 %v1264, 0.0
      %v1403 = vmax.f32 %v1269, 0.0
      %v1404 = vmax.f32 %v1274, 0.0
      %v1405 = vmax.f32 %v1279, 0.0
      %v1406 = vmax.f32 %v1284, 0.0
      %v1407 = vmax.f32 %v1289, 0.0
      %v1408 = vmax.f32 %v1294, 0.0
      %v1409 = vmax.f32 %v1299, 0.0
      %v1410 = vmax.f32 %v1304, 0.0
      %v1411 = vmax.f32 %v1309, 0.0
      %v1412 = vmax.f32 %v1314, 0.0
      %v1413 = vmax.f32 %v1319, 0.0
      %v1414 = vmax.f32 %v1324, 0.0
      %v1415 = vmax.f32 %v1329, 0.0
      %v1416 = vmax.f32 %v1334, 0.0
      %v1417 = vmax.f32 %v1339, 0.0
      %v1418 = vmax.f32 %v1344, 0.0
      %v1419 = vmax.f32 %v1349, 0.0
      %v1420 = vmax.f32 %v1354, 0.0
      %v1421 = vld [vmem:[%s3] sm:$0xff]
      %v1422 = vld [vmem:[%s3 + $0x8] sm:$0xff]
      %v1423 = vld [vmem:[%s3 + $0x10] sm:$0xff]
      %v1424 = vld [vmem:[%s3 + $0x18] sm:$0xff]
      %v1425 = vld [vmem:[%s3 + $0x20] sm:$0xff]
      %v1426 = vld [vmem:[%s3 + $0x28] sm:$0xff]
      %v1427 = vld [vmem:[%s3 + $0x30] sm:$0xff]
      %v1428 = vld [vmem:[%s3 + $0x38] sm:$0xff]
      %v1429 = vld [vmem:[%s3 + $0x40] sm:$0xff]
      %v1430 = vld [vmem:[%s3 + $0x48] sm:$0xff]
      %v1431 = vld [vmem:[%s3 + $0x50] sm:$0xff]
      %v1432 = vld [vmem:[%s3 + $0x58] sm:$0xff]
      %v1433 = vld [vmem:[%s3 + $0x60] sm:$0xff]
      %v1434 = vld [vmem:[%s3 + $0x68] sm:$0xff]
      %v1435 = vld [vmem:[%s3 + $0x70] sm:$0xff]
      %v1436 = vld [vmem:[%s3 + $0x78] sm:$0xff]
      %v1437 = vld [vmem:[%s3 + $0x80] sm:$0xff]
      %v1438 = vld [vmem:[%s3 + $0x88] sm:$0xff]
      %v1439 = vld [vmem:[%s3 + $0x90] sm:$0xff]
      %v1440 = vld [vmem:[%s3 + $0x98] sm:$0xff]
      %v1441 = vld [vmem:[%s3 + $0xa0] sm:$0xff]
      %v1442 = vld [vmem:[%s3 + $0xa8] sm:$0xff]
      %v1443 = vld [vmem:[%s3 + $0xb0] sm:$0xff]
      %v1444 = vld [vmem:[%s3 + $0xb8] sm:$0xff]
      %v1445 = vld [vmem:[%s3 + $0xc0] sm:$0xff]
      %v1446 = vld [vmem:[%s3 + $0xc8] sm:$0xff]
      %v1447 = vld [vmem:[%s3 + $0xd0] sm:$0xff]
      %v1448 = vld [vmem:[%s3 + $0xd8] sm:$0xff]
      %v1449 = vld [vmem:[%s3 + $0xe0] sm:$0xff]
      %v1450 = vld [vmem:[%s3 + $0xe8] sm:$0xff]
      %v1451 = vld [vmem:[%s3 + $0xf0] sm:$0xff]
      %v1452 = vld [vmem:[%s3 + $0xf8] sm:$0xff]
      %v1453 = vld [vmem:[%s3 + $0x100] sm:$0xff]
      %v1454 = vld [vmem:[%s3 + $0x108] sm:$0xff]
      %v1455 = vld [vmem:[%s3 + $0x110] sm:$0xff]
      %v1456 = vld [vmem:[%s3 + $0x118] sm:$0xff]
      %v1457 = vld [vmem:[%s3 + $0x120] sm:$0xff]
      %v1458 = vld [vmem:[%s3 + $0x128] sm:$0xff]
      %v1459 = vld [vmem:[%s3 + $0x130] sm:$0xff]
      %v1460 = vld [vmem:[%s3 + $0x138] sm:$0xff]
      %v1461 = vld [vmem:[%s3 + $0x140] sm:$0xff]
      %v1462 = vld [vmem:[%s3 + $0x148] sm:$0xff]
      %v1463 = vld [vmem:[%s3 + $0x150] sm:$0xff]
      %v1464 = vld [vmem:[%s3 + $0x158] sm:$0xff]
      %v1465 = vld [vmem:[%s3 + $0x160] sm:$0xff]
      %v1466 = vld [vmem:[%s3 + $0x168] sm:$0xff]
      %v1467 = vld [vmem:[%s3 + $0x170] sm:$0xff]
      %v1468 = vld [vmem:[%s3 + $0x178] sm:$0xff]
      %v1469 = vld [vmem:[%s3 + $0x180] sm:$0xff]
      %v1470 = vld [vmem:[%s3 + $0x188] sm:$0xff]
      %v1471 = vld [vmem:[%s3 + $0x190] sm:$0xff]
      %v1472 = vld [vmem:[%s3 + $0x198] sm:$0xff]
      %v1473 = vld [vmem:[%s3 + $0x1a0] sm:$0xff]
      %v1474 = vld [vmem:[%s3 + $0x1a8] sm:$0xff]
      %v1475 = vld [vmem:[%s3 + $0x1b0] sm:$0xff]
      %v1476 = vld [vmem:[%s3 + $0x1b8] sm:$0xff]
      %v1477 = vld [vmem:[%s3 + $0x1c0] sm:$0xff]
      %v1478 = vld [vmem:[%s3 + $0x1c8] sm:$0xff]
      %v1479 = vld [vmem:[%s3 + $0x1d0] sm:$0xff]
      %v1480 = vld [vmem:[%s3 + $0x1d8] sm:$0xff]
      %v1481 = vld [vmem:[%s3 + $0x1e0] sm:$0xff]
      %v1482 = vld [vmem:[%s3 + $0x1e8] sm:$0xff]
      %v1483 = vld [vmem:[%s3 + $0x1f0] sm:$0xff]
      %v1484 = vld [vmem:[%s3 + $0x1f8] sm:$0xff]
      %v1485 = vld [vmem:[%s3 + $0x200] sm:$0xff]
      %v1486 = vld [vmem:[%s3 + $0x208] sm:$0xff]
      %v1487 = vld [vmem:[%s3 + $0x210] sm:$0xff]
      %v1488 = vld [vmem:[%s3 + $0x218] sm:$0xff]
      %v1489 = vld [vmem:[%s3 + $0x220] sm:$0xff]
      %v1490 = vld [vmem:[%s3 + $0x228] sm:$0xff]
      %v1491 = vld [vmem:[%s3 + $0x230] sm:$0xff]
      %v1492 = vld [vmem:[%s3 + $0x238] sm:$0xff]
      %v1493 = vld [vmem:[%s3 + $0x240] sm:$0xff]
      %v1494 = vld [vmem:[%s3 + $0x248] sm:$0xff]
      %v1495 = vld [vmem:[%s3 + $0x250] sm:$0xff]
      %v1496 = vld [vmem:[%s3 + $0x258] sm:$0xff]
      %v1497 = vld [vmem:[%s3 + $0x260] sm:$0xff]
      %v1498 = vld [vmem:[%s3 + $0x268] sm:$0xff]
      %v1499 = vld [vmem:[%s3 + $0x270] sm:$0xff]
      %v1500 = vld [vmem:[%s3 + $0x278] sm:$0xff]
      %v1501 = vld [vmem:[%s3 + $0x280] sm:$0xff]
      %v1502 = vld [vmem:[%s3 + $0x288] sm:$0xff]
      %v1503 = vld [vmem:[%s3 + $0x290] sm:$0xff]
      %v1504 = vld [vmem:[%s3 + $0x298] sm:$0xff]
      %v1505 = vld [vmem:[%s3 + $0x2a0] sm:$0xff]
      %v1506 = vld [vmem:[%s3 + $0x2a8] sm:$0xff]
      %v1507 = vld [vmem:[%s3 + $0x2b0] sm:$0xff]
      %v1508 = vld [vmem:[%s3 + $0x2b8] sm:$0xff]
      %v1509 = vld [vmem:[%s3 + $0x2c0] sm:$0xff]
      %v1510 = vld [vmem:[%s3 + $0x2c8] sm:$0xff]
      %v1511 = vld [vmem:[%s3 + $0x2d0] sm:$0xff]
      %v1512 = vld [vmem:[%s3 + $0x2d8] sm:$0xff]
      %v1513 = vld [vmem:[%s3 + $0x2e0] sm:$0xff]
      %v1514 = vld [vmem:[%s3 + $0x2e8] sm:$0xff]
      %v1515 = vld [vmem:[%s3 + $0x2f0] sm:$0xff]
      %v1516 = vld [vmem:[%s3 + $0x2f8] sm:$0xff]
      %v1517 = vld [vmem:[%s3 + $0x300] sm:$0xff]
      %v1518 = vld [vmem:[%s3 + $0x308] sm:$0xff]
      %v1519 = vld [vmem:[%s3 + $0x310] sm:$0xff]
      %v1520 = vld [vmem:[%s3 + $0x318] sm:$0xff]
      %v1521 = vld [vmem:[%s3 + $0x320] sm:$0xff]
      %v1522 = vld [vmem:[%s3 + $0x328] sm:$0xff]
      %v1523 = vld [vmem:[%s3 + $0x330] sm:$0xff]
      %v1524 = vld [vmem:[%s3 + $0x338] sm:$0xff]
      %v1525 = vld [vmem:[%s3 + $0x340] sm:$0xff]
      %v1526 = vld [vmem:[%s3 + $0x348] sm:$0xff]
      %v1527 = vld [vmem:[%s3 + $0x350] sm:$0xff]
      %v1528 = vld [vmem:[%s3 + $0x358] sm:$0xff]
      %v1529 = vld [vmem:[%s3 + $0x360] sm:$0xff]
      %v1530 = vld [vmem:[%s3 + $0x368] sm:$0xff]
      %v1531 = vld [vmem:[%s3 + $0x370] sm:$0xff]
      %v1532 = vld [vmem:[%s3 + $0x378] sm:$0xff]
      %v1533 = vld [vmem:[%s3 + $0x380] sm:$0xff]
      %v1534 = vld [vmem:[%s3 + $0x388] sm:$0xff]
      %v1535 = vld [vmem:[%s3 + $0x390] sm:$0xff]
      %v1536 = vld [vmem:[%s3 + $0x398] sm:$0xff]
      %v1537 = vld [vmem:[%s3 + $0x3a0] sm:$0xff]
      %v1538 = vld [vmem:[%s3 + $0x3a8] sm:$0xff]
      %v1539 = vld [vmem:[%s3 + $0x3b0] sm:$0xff]
      %v1540 = vld [vmem:[%s3 + $0x3b8] sm:$0xff]
      %v1541 = vld [vmem:[%s3 + $0x3c0] sm:$0xff]
      %v1542 = vld [vmem:[%s3 + $0x3c8] sm:$0xff]
      %v1543 = vld [vmem:[%s3 + $0x3d0] sm:$0xff]
      %v1544 = vld [vmem:[%s3 + $0x3d8] sm:$0xff]
      %v1545 = vld [vmem:[%s3 + $0x3e0] sm:$0xff]
      %v1546 = vld [vmem:[%s3 + $0x3e8] sm:$0xff]
      %v1547 = vld [vmem:[%s3 + $0x3f0] sm:$0xff]
      %v1548 = vld [vmem:[%s3 + $0x3f8] sm:$0xff]
      %v1549 = vpack.c.bf16 %v1358, %v1357
      %v1550 = vpack.c.bf16 %v1360, %v1359
      %v1551 = vpack.c.bf16 %v1362, %v1361
      %v1552 = vpack.c.bf16 %v1364, %v1363
      %v1553 = vpack.c.bf16 %v1366, %v1365
      %v1554 = vpack.c.bf16 %v1368, %v1367
      %v1555 = vpack.c.bf16 %v1370, %v1369
      %v1556 = vpack.c.bf16 %v1372, %v1371
      %v1557 = vpack.c.bf16 %v1374, %v1373
      %v1558 = vpack.c.bf16 %v1376, %v1375
      %v1559 = vpack.c.bf16 %v1378, %v1377
      %v1560 = vpack.c.bf16 %v1380, %v1379
      %v1561 = vpack.c.bf16 %v1382, %v1381
      %v1562 = vpack.c.bf16 %v1384, %v1383
      %v1563 = vpack.c.bf16 %v1386, %v1385
      %v1564 = vpack.c.bf16 %v1388, %v1387
      %v1565 = vpack.c.bf16 %v1390, %v1389
      %v1566 = vpack.c.bf16 %v1392, %v1391
      %v1567 = vpack.c.bf16 %v1394, %v1393
      %v1568 = vpack.c.bf16 %v1396, %v1395
      %v1569 = vpack.c.bf16 %v1398, %v1397
      %v1570 = vpack.c.bf16 %v1400, %v1399
      %v1571 = vpack.c.bf16 %v1402, %v1401
      %v1572 = vpack.c.bf16 %v1404, %v1403
      %v1573 = vpack.c.bf16 %v1406, %v1405
      %v1574 = vpack.c.bf16 %v1408, %v1407
      %v1575 = vpack.c.bf16 %v1410, %v1409
      %v1576 = vpack.c.bf16 %v1412, %v1411
      %v1577 = vpack.c.bf16 %v1414, %v1413
      %v1578 = vpack.c.bf16 %v1416, %v1415
      %v1579 = vpack.c.bf16 %v1418, %v1417
      %v1580 = vpack.c.bf16 %v1420, %v1419
      %v1581 = vld [vmem:[%s4] sm:$0xff]
      %v1582 = vld [vmem:[%s4 + $0x8] sm:$0xff]
      %v1583 = vld [vmem:[%s4 + $0x10] sm:$0xff]
      %v1584 = vld [vmem:[%s4 + $0x18] sm:$0xff]
      %v1585 = vld [vmem:[%s4 + $0x20] sm:$0xff]
      %v1586 = vld [vmem:[%s4 + $0x28] sm:$0xff]
      %v1587 = vld [vmem:[%s4 + $0x30] sm:$0xff]
      %v1588 = vld [vmem:[%s4 + $0x38] sm:$0xff]
      %v1589 = vld [vmem:[%s4 + $0x40] sm:$0xff]
      %v1590 = vld [vmem:[%s4 + $0x48] sm:$0xff]
      %v1591 = vld [vmem:[%s4 + $0x50] sm:$0xff]
      %v1592 = vld [vmem:[%s4 + $0x58] sm:$0xff]
      %v1593 = vld [vmem:[%s4 + $0x60] sm:$0xff]
      %v1594 = vld [vmem:[%s4 + $0x68] sm:$0xff]
      %v1595 = vld [vmem:[%s4 + $0x70] sm:$0xff]
      %v1596 = vld [vmem:[%s4 + $0x78] sm:$0xff]
      %v1597 = vld [vmem:[%s4 + $0x80] sm:$0xff]
      %v1598 = vld [vmem:[%s4 + $0x88] sm:$0xff]
      %v1599 = vld [vmem:[%s4 + $0x90] sm:$0xff]
      %v1600 = vld [vmem:[%s4 + $0x98] sm:$0xff]
      %v1601 = vld [vmem:[%s4 + $0xa0] sm:$0xff]
      %v1602 = vld [vmem:[%s4 + $0xa8] sm:$0xff]
      %v1603 = vld [vmem:[%s4 + $0xb0] sm:$0xff]
      %v1604 = vld [vmem:[%s4 + $0xb8] sm:$0xff]
      %v1605 = vld [vmem:[%s4 + $0xc0] sm:$0xff]
      %v1606 = vld [vmem:[%s4 + $0xc8] sm:$0xff]
      %v1607 = vld [vmem:[%s4 + $0xd0] sm:$0xff]
      %v1608 = vld [vmem:[%s4 + $0xd8] sm:$0xff]
      %v1609 = vld [vmem:[%s4 + $0xe0] sm:$0xff]
      %v1610 = vld [vmem:[%s4 + $0xe8] sm:$0xff]
      %v1611 = vld [vmem:[%s4 + $0xf0] sm:$0xff]
      %v1612 = vld [vmem:[%s4 + $0xf8] sm:$0xff]
      %v1613 = vld [vmem:[%s4 + $0x100] sm:$0xff]
      %v1614 = vld [vmem:[%s4 + $0x108] sm:$0xff]
      %v1615 = vld [vmem:[%s4 + $0x110] sm:$0xff]
      %v1616 = vld [vmem:[%s4 + $0x118] sm:$0xff]
      %v1617 = vld [vmem:[%s4 + $0x120] sm:$0xff]
      %v1618 = vld [vmem:[%s4 + $0x128] sm:$0xff]
      %v1619 = vld [vmem:[%s4 + $0x130] sm:$0xff]
      %v1620 = vld [vmem:[%s4 + $0x138] sm:$0xff]
      %v1621 = vld [vmem:[%s4 + $0x140] sm:$0xff]
      %v1622 = vld [vmem:[%s4 + $0x148] sm:$0xff]
      %v1623 = vld [vmem:[%s4 + $0x150] sm:$0xff]
      %v1624 = vld [vmem:[%s4 + $0x158] sm:$0xff]
      %v1625 = vld [vmem:[%s4 + $0x160] sm:$0xff]
      %v1626 = vld [vmem:[%s4 + $0x168] sm:$0xff]
      %v1627 = vld [vmem:[%s4 + $0x170] sm:$0xff]
      %v1628 = vld [vmem:[%s4 + $0x178] sm:$0xff]
      %v1629 = vld [vmem:[%s4 + $0x180] sm:$0xff]
      %v1630 = vld [vmem:[%s4 + $0x188] sm:$0xff]
      %v1631 = vld [vmem:[%s4 + $0x190] sm:$0xff]
      %v1632 = vld [vmem:[%s4 + $0x198] sm:$0xff]
      %v1633 = vld [vmem:[%s4 + $0x1a0] sm:$0xff]
      %v1634 = vld [vmem:[%s4 + $0x1a8] sm:$0xff]
      %v1635 = vld [vmem:[%s4 + $0x1b0] sm:$0xff]
      %v1636 = vld [vmem:[%s4 + $0x1b8] sm:$0xff]
      %v1637 = vld [vmem:[%s4 + $0x1c0] sm:$0xff]
      %v1638 = vld [vmem:[%s4 + $0x1c8] sm:$0xff]
      %v1639 = vld [vmem:[%s4 + $0x1d0] sm:$0xff]
      %v1640 = vld [vmem:[%s4 + $0x1d8] sm:$0xff]
      %v1641 = vld [vmem:[%s4 + $0x1e0] sm:$0xff]
      %v1642 = vld [vmem:[%s4 + $0x1e8] sm:$0xff]
      %v1643 = vld [vmem:[%s4 + $0x1f0] sm:$0xff]
      %v1644 = vld [vmem:[%s4 + $0x1f8] sm:$0xff]
      %1646 = vset.pattern.permute.xlu0 0
      %1647 = vperm.xlu0 %1646, %v1581
      %v1648 = vpop.permute.xlu0 %1647
      %1651 = vset.pattern.permute.xlu0 0
      %1652 = vperm.xlu0 %1651, %v1582
      %v1653 = vpop.permute.xlu0 %1652
      %1656 = vset.pattern.permute.xlu0 0
      %1657 = vperm.xlu0 %1656, %v1583
      %v1658 = vpop.permute.xlu0 %1657
      %1661 = vset.pattern.permute.xlu0 0
      %1662 = vperm.xlu0 %1661, %v1584
      %v1663 = vpop.permute.xlu0 %1662
      %1666 = vset.pattern.permute.xlu0 0
      %1667 = vperm.xlu0 %1666, %v1585
      %v1668 = vpop.permute.xlu0 %1667
      %1671 = vset.pattern.permute.xlu0 0
      %1672 = vperm.xlu0 %1671, %v1586
      %v1673 = vpop.permute.xlu0 %1672
      %1676 = vset.pattern.permute.xlu0 0
      %1677 = vperm.xlu0 %1676, %v1587
      %v1678 = vpop.permute.xlu0 %1677
      %1681 = vset.pattern.permute.xlu0 0
      %1682 = vperm.xlu0 %1681, %v1588
      %v1683 = vpop.permute.xlu0 %1682
      %1686 = vset.pattern.permute.xlu0 0
      %1687 = vperm.xlu0 %1686, %v1589
      %v1688 = vpop.permute.xlu0 %1687
      %1691 = vset.pattern.permute.xlu0 0
      %1692 = vperm.xlu0 %1691, %v1590
      %v1693 = vpop.permute.xlu0 %1692
      %1696 = vset.pattern.permute.xlu0 0
      %1697 = vperm.xlu0 %1696, %v1591
      %v1698 = vpop.permute.xlu0 %1697
      %1701 = vset.pattern.permute.xlu0 0
      %1702 = vperm.xlu0 %1701, %v1592
      %v1703 = vpop.permute.xlu0 %1702
      %1706 = vset.pattern.permute.xlu0 0
      %1707 = vperm.xlu0 %1706, %v1593
      %v1708 = vpop.permute.xlu0 %1707
      %1711 = vset.pattern.permute.xlu0 0
      %1712 = vperm.xlu0 %1711, %v1594
      %v1713 = vpop.permute.xlu0 %1712
      %1716 = vset.pattern.permute.xlu0 0
      %1717 = vperm.xlu0 %1716, %v1595
      %v1718 = vpop.permute.xlu0 %1717
      %1721 = vset.pattern.permute.xlu0 0
      %1722 = vperm.xlu0 %1721, %v1596
      %v1723 = vpop.permute.xlu0 %1722
      %1726 = vset.pattern.permute.xlu0 0
      %1727 = vperm.xlu0 %1726, %v1597
      %v1728 = vpop.permute.xlu0 %1727
      %1731 = vset.pattern.permute.xlu0 0
      %1732 = vperm.xlu0 %1731, %v1598
      %v1733 = vpop.permute.xlu0 %1732
      %1736 = vset.pattern.permute.xlu0 0
      %1737 = vperm.xlu0 %1736, %v1599
      %v1738 = vpop.permute.xlu0 %1737
      %1741 = vset.pattern.permute.xlu0 0
      %1742 = vperm.xlu0 %1741, %v1600
      %v1743 = vpop.permute.xlu0 %1742
      %1746 = vset.pattern.permute.xlu0 0
      %1747 = vperm.xlu0 %1746, %v1601
      %v1748 = vpop.permute.xlu0 %1747
      %1751 = vset.pattern.permute.xlu0 0
      %1752 = vperm.xlu0 %1751, %v1602
      %v1753 = vpop.permute.xlu0 %1752
      %1756 = vset.pattern.permute.xlu0 0
      %1757 = vperm.xlu0 %1756, %v1603
      %v1758 = vpop.permute.xlu0 %1757
      %1761 = vset.pattern.permute.xlu0 0
      %1762 = vperm.xlu0 %1761, %v1604
      %v1763 = vpop.permute.xlu0 %1762
      %1766 = vset.pattern.permute.xlu0 0
      %1767 = vperm.xlu0 %1766, %v1605
      %v1768 = vpop.permute.xlu0 %1767
      %1771 = vset.pattern.permute.xlu0 0
      %1772 = vperm.xlu0 %1771, %v1606
      %v1773 = vpop.permute.xlu0 %1772
      %1776 = vset.pattern.permute.xlu0 0
      %1777 = vperm.xlu0 %1776, %v1607
      %v1778 = vpop.permute.xlu0 %1777
      %1781 = vset.pattern.permute.xlu0 0
      %1782 = vperm.xlu0 %1781, %v1608
      %v1783 = vpop.permute.xlu0 %1782
      %1786 = vset.pattern.permute.xlu0 0
      %1787 = vperm.xlu0 %1786, %v1609
      %v1788 = vpop.permute.xlu0 %1787
      %1791 = vset.pattern.permute.xlu0 0
      %1792 = vperm.xlu0 %1791, %v1610
      %v1793 = vpop.permute.xlu0 %1792
      %1796 = vset.pattern.permute.xlu0 0
      %1797 = vperm.xlu0 %1796, %v1611
      %v1798 = vpop.permute.xlu0 %1797
      %1801 = vset.pattern.permute.xlu0 0
      %1802 = vperm.xlu0 %1801, %v1612
      %v1803 = vpop.permute.xlu0 %1802
      %1806 = vset.pattern.permute.xlu0 0
      %1807 = vperm.xlu0 %1806, %v1613
      %v1808 = vpop.permute.xlu0 %1807
      %1811 = vset.pattern.permute.xlu0 0
      %1812 = vperm.xlu0 %1811, %v1614
      %v1813 = vpop.permute.xlu0 %1812
      %1816 = vset.pattern.permute.xlu0 0
      %1817 = vperm.xlu0 %1816, %v1615
      %v1818 = vpop.permute.xlu0 %1817
      %1821 = vset.pattern.permute.xlu0 0
      %1822 = vperm.xlu0 %1821, %v1616
      %v1823 = vpop.permute.xlu0 %1822
      %1826 = vset.pattern.permute.xlu0 0
      %1827 = vperm.xlu0 %1826, %v1617
      %v1828 = vpop.permute.xlu0 %1827
      %1831 = vset.pattern.permute.xlu0 0
      %1832 = vperm.xlu0 %1831, %v1618
      %v1833 = vpop.permute.xlu0 %1832
      %1836 = vset.pattern.permute.xlu0 0
      %1837 = vperm.xlu0 %1836, %v1619
      %v1838 = vpop.permute.xlu0 %1837
      %1841 = vset.pattern.permute.xlu0 0
      %1842 = vperm.xlu0 %1841, %v1620
      %v1843 = vpop.permute.xlu0 %1842
      %1846 = vset.pattern.permute.xlu0 0
      %1847 = vperm.xlu0 %1846, %v1621
      %v1848 = vpop.permute.xlu0 %1847
      %1851 = vset.pattern.permute.xlu0 0
      %1852 = vperm.xlu0 %1851, %v1622
      %v1853 = vpop.permute.xlu0 %1852
      %1856 = vset.pattern.permute.xlu0 0
      %1857 = vperm.xlu0 %1856, %v1623
      %v1858 = vpop.permute.xlu0 %1857
      %1861 = vset.pattern.permute.xlu0 0
      %1862 = vperm.xlu0 %1861, %v1624
      %v1863 = vpop.permute.xlu0 %1862
      %1866 = vset.pattern.permute.xlu0 0
      %1867 = vperm.xlu0 %1866, %v1625
      %v1868 = vpop.permute.xlu0 %1867
      %1871 = vset.pattern.permute.xlu0 0
      %1872 = vperm.xlu0 %1871, %v1626
      %v1873 = vpop.permute.xlu0 %1872
      %1876 = vset.pattern.permute.xlu0 0
      %1877 = vperm.xlu0 %1876, %v1627
      %v1878 = vpop.permute.xlu0 %1877
      %1881 = vset.pattern.permute.xlu0 0
      %1882 = vperm.xlu0 %1881, %v1628
      %v1883 = vpop.permute.xlu0 %1882
      %1886 = vset.pattern.permute.xlu0 0
      %1887 = vperm.xlu0 %1886, %v1629
      %v1888 = vpop.permute.xlu0 %1887
      %1891 = vset.pattern.permute.xlu0 0
      %1892 = vperm.xlu0 %1891, %v1630
      %v1893 = vpop.permute.xlu0 %1892
      %1896 = vset.pattern.permute.xlu0 0
      %1897 = vperm.xlu0 %1896, %v1631
      %v1898 = vpop.permute.xlu0 %1897
      %1901 = vset.pattern.permute.xlu0 0
      %1902 = vperm.xlu0 %1901, %v1632
      %v1903 = vpop.permute.xlu0 %1902
      %1906 = vset.pattern.permute.xlu0 0
      %1907 = vperm.xlu0 %1906, %v1633
      %v1908 = vpop.permute.xlu0 %1907
      %1911 = vset.pattern.permute.xlu0 0
      %1912 = vperm.xlu0 %1911, %v1634
      %v1913 = vpop.permute.xlu0 %1912
      %1916 = vset.pattern.permute.xlu0 0
      %1917 = vperm.xlu0 %1916, %v1635
      %v1918 = vpop.permute.xlu0 %1917
      %1921 = vset.pattern.permute.xlu0 0
      %1922 = vperm.xlu0 %1921, %v1636
      %v1923 = vpop.permute.xlu0 %1922
      %1926 = vset.pattern.permute.xlu0 0
      %1927 = vperm.xlu0 %1926, %v1637
      %v1928 = vpop.permute.xlu0 %1927
      %1931 = vset.pattern.permute.xlu0 0
      %1932 = vperm.xlu0 %1931, %v1638
      %v1933 = vpop.permute.xlu0 %1932
      %1936 = vset.pattern.permute.xlu0 0
      %1937 = vperm.xlu0 %1936, %v1639
      %v1938 = vpop.permute.xlu0 %1937
      %1941 = vset.pattern.permute.xlu0 0
      %1942 = vperm.xlu0 %1941, %v1640
      %v1943 = vpop.permute.xlu0 %1942
      %1946 = vset.pattern.permute.xlu0 0
      %1947 = vperm.xlu0 %1946, %v1641
      %v1948 = vpop.permute.xlu0 %1947
      %1951 = vset.pattern.permute.xlu0 0
      %1952 = vperm.xlu0 %1951, %v1642
      %v1953 = vpop.permute.xlu0 %1952
      %1956 = vset.pattern.permute.xlu0 0
      %1957 = vperm.xlu0 %1956, %v1643
      %v1958 = vpop.permute.xlu0 %1957
      %1961 = vset.pattern.permute.xlu0 0
      %1962 = vperm.xlu0 %1961, %v1644
      %v1963 = vpop.permute.xlu0 %1962
      %v2093 = vunpack.c.l.b16 %v1421
      %v2094 = vunpack.c.h.b16 %v1421
      %v2095 = vunpack.c.l.b16 %v1422
      %v2096 = vunpack.c.h.b16 %v1422
      %v2097 = vunpack.c.l.b16 %v1423
      %v2098 = vunpack.c.h.b16 %v1423
      %v2099 = vunpack.c.l.b16 %v1424
      %v2100 = vunpack.c.h.b16 %v1424
      %v2101 = vunpack.c.l.b16 %v1425
      %v2102 = vunpack.c.h.b16 %v1425
      %v2103 = vunpack.c.l.b16 %v1426
      %v2104 = vunpack.c.h.b16 %v1426
      %v2105 = vunpack.c.l.b16 %v1427
      %v2106 = vunpack.c.h.b16 %v1427
      %v2107 = vunpack.c.l.b16 %v1428
      %v2108 = vunpack.c.h.b16 %v1428
      %v2109 = vunpack.c.l.b16 %v1429
      %v2110 = vunpack.c.h.b16 %v1429
      %v2111 = vunpack.c.l.b16 %v1430
      %v2112 = vunpack.c.h.b16 %v1430
      %v2113 = vunpack.c.l.b16 %v1431
      %v2114 = vunpack.c.h.b16 %v1431
      %v2115 = vunpack.c.l.b16 %v1432
      %v2116 = vunpack.c.h.b16 %v1432
      %v2117 = vunpack.c.l.b16 %v1433
      %v2118 = vunpack.c.h.b16 %v1433
      %v2119 = vunpack.c.l.b16 %v1434
      %v2120 = vunpack.c.h.b16 %v1434
      %v2121 = vunpack.c.l.b16 %v1435
      %v2122 = vunpack.c.h.b16 %v1435
      %v2123 = vunpack.c.l.b16 %v1436
      %v2124 = vunpack.c.h.b16 %v1436
      %v2125 = vunpack.c.l.b16 %v1437
      %v2126 = vunpack.c.h.b16 %v1437
      %v2127 = vunpack.c.l.b16 %v1438
      %v2128 = vunpack.c.h.b16 %v1438
      %v2129 = vunpack.c.l.b16 %v1439
      %v2130 = vunpack.c.h.b16 %v1439
      %v2131 = vunpack.c.l.b16 %v1440
      %v2132 = vunpack.c.h.b16 %v1440
      %v2133 = vunpack.c.l.b16 %v1441
      %v2134 = vunpack.c.h.b16 %v1441
      %v2135 = vunpack.c.l.b16 %v1442
      %v2136 = vunpack.c.h.b16 %v1442
      %v2137 = vunpack.c.l.b16 %v1443
      %v2138 = vunpack.c.h.b16 %v1443
      %v2139 = vunpack.c.l.b16 %v1444
      %v2140 = vunpack.c.h.b16 %v1444
      %v2141 = vunpack.c.l.b16 %v1445
      %v2142 = vunpack.c.h.b16 %v1445
      %v2143 = vunpack.c.l.b16 %v1446
      %v2144 = vunpack.c.h.b16 %v1446
      %v2145 = vunpack.c.l.b16 %v1447
      %v2146 = vunpack.c.h.b16 %v1447
      %v2147 = vunpack.c.l.b16 %v1448
      %v2148 = vunpack.c.h.b16 %v1448
      %v2149 = vunpack.c.l.b16 %v1449
      %v2150 = vunpack.c.h.b16 %v1449
      %v2151 = vunpack.c.l.b16 %v1450
      %v2152 = vunpack.c.h.b16 %v1450
      %v2153 = vunpack.c.l.b16 %v1451
      %v2154 = vunpack.c.h.b16 %v1451
      %v2155 = vunpack.c.l.b16 %v1452
      %v2156 = vunpack.c.h.b16 %v1452
      %v2157 = vunpack.c.l.b16 %v1453
      %v2158 = vunpack.c.h.b16 %v1453
      %v2159 = vunpack.c.l.b16 %v1454
      %v2160 = vunpack.c.h.b16 %v1454
      %v2161 = vunpack.c.l.b16 %v1455
      %v2162 = vunpack.c.h.b16 %v1455
      %v2163 = vunpack.c.l.b16 %v1456
      %v2164 = vunpack.c.h.b16 %v1456
      %v2165 = vunpack.c.l.b16 %v1457
      %v2166 = vunpack.c.h.b16 %v1457
      %v2167 = vunpack.c.l.b16 %v1458
      %v2168 = vunpack.c.h.b16 %v1458
      %v2169 = vunpack.c.l.b16 %v1459
      %v2170 = vunpack.c.h.b16 %v1459
      %v2171 = vunpack.c.l.b16 %v1460
      %v2172 = vunpack.c.h.b16 %v1460
      %v2173 = vunpack.c.l.b16 %v1461
      %v2174 = vunpack.c.h.b16 %v1461
      %v2175 = vunpack.c.l.b16 %v1462
      %v2176 = vunpack.c.h.b16 %v1462
      %v2177 = vunpack.c.l.b16 %v1463
      %v2178 = vunpack.c.h.b16 %v1463
      %v2179 = vunpack.c.l.b16 %v1464
      %v2180 = vunpack.c.h.b16 %v1464
      %v2181 = vunpack.c.l.b16 %v1465
      %v2182 = vunpack.c.h.b16 %v1465
      %v2183 = vunpack.c.l.b16 %v1466
      %v2184 = vunpack.c.h.b16 %v1466
      %v2185 = vunpack.c.l.b16 %v1467
      %v2186 = vunpack.c.h.b16 %v1467
      %v2187 = vunpack.c.l.b16 %v1468
      %v2188 = vunpack.c.h.b16 %v1468
      %v2189 = vunpack.c.l.b16 %v1469
      %v2190 = vunpack.c.h.b16 %v1469
      %v2191 = vunpack.c.l.b16 %v1470
      %v2192 = vunpack.c.h.b16 %v1470
      %v2193 = vunpack.c.l.b16 %v1471
      %v2194 = vunpack.c.h.b16 %v1471
      %v2195 = vunpack.c.l.b16 %v1472
      %v2196 = vunpack.c.h.b16 %v1472
      %v2197 = vunpack.c.l.b16 %v1473
      %v2198 = vunpack.c.h.b16 %v1473
      %v2199 = vunpack.c.l.b16 %v1474
      %v2200 = vunpack.c.h.b16 %v1474
      %v2201 = vunpack.c.l.b16 %v1475
      %v2202 = vunpack.c.h.b16 %v1475
      %v2203 = vunpack.c.l.b16 %v1476
      %v2204 = vunpack.c.h.b16 %v1476
      %v2205 = vunpack.c.l.b16 %v1477
      %v2206 = vunpack.c.h.b16 %v1477
      %v2207 = vunpack.c.l.b16 %v1478
      %v2208 = vunpack.c.h.b16 %v1478
      %v2209 = vunpack.c.l.b16 %v1479
      %v2210 = vunpack.c.h.b16 %v1479
      %v2211 = vunpack.c.l.b16 %v1480
      %v2212 = vunpack.c.h.b16 %v1480
      %v2213 = vunpack.c.l.b16 %v1481
      %v2214 = vunpack.c.h.b16 %v1481
      %v2215 = vunpack.c.l.b16 %v1482
      %v2216 = vunpack.c.h.b16 %v1482
      %v2217 = vunpack.c.l.b16 %v1483
      %v2218 = vunpack.c.h.b16 %v1483
      %v2219 = vunpack.c.l.b16 %v1484
      %v2220 = vunpack.c.h.b16 %v1484
      %v2221 = vunpack.c.l.b16 %v1485
      %v2222 = vunpack.c.h.b16 %v1485
      %v2223 = vunpack.c.l.b16 %v1486
      %v2224 = vunpack.c.h.b16 %v1486
      %v2225 = vunpack.c.l.b16 %v1487
      %v2226 = vunpack.c.h.b16 %v1487
      %v2227 = vunpack.c.l.b16 %v1488
      %v2228 = vunpack.c.h.b16 %v1488
      %v2229 = vunpack.c.l.b16 %v1489
      %v2230 = vunpack.c.h.b16 %v1489
      %v2231 = vunpack.c.l.b16 %v1490
      %v2232 = vunpack.c.h.b16 %v1490
      %v2233 = vunpack.c.l.b16 %v1491
      %v2234 = vunpack.c.h.b16 %v1491
      %v2235 = vunpack.c.l.b16 %v1492
      %v2236 = vunpack.c.h.b16 %v1492
      %v2237 = vunpack.c.l.b16 %v1493
      %v2238 = vunpack.c.h.b16 %v1493
      %v2239 = vunpack.c.l.b16 %v1494
      %v2240 = vunpack.c.h.b16 %v1494
      %v2241 = vunpack.c.l.b16 %v1495
      %v2242 = vunpack.c.h.b16 %v1495
      %v2243 = vunpack.c.l.b16 %v1496
      %v2244 = vunpack.c.h.b16 %v1496
      %v2245 = vunpack.c.l.b16 %v1497
      %v2246 = vunpack.c.h.b16 %v1497
      %v2247 = vunpack.c.l.b16 %v1498
      %v2248 = vunpack.c.h.b16 %v1498
      %v2249 = vunpack.c.l.b16 %v1499
      %v2250 = vunpack.c.h.b16 %v1499
      %v2251 = vunpack.c.l.b16 %v1500
      %v2252 = vunpack.c.h.b16 %v1500
      %v2253 = vunpack.c.l.b16 %v1501
      %v2254 = vunpack.c.h.b16 %v1501
      %v2255 = vunpack.c.l.b16 %v1502
      %v2256 = vunpack.c.h.b16 %v1502
      %v2257 = vunpack.c.l.b16 %v1503
      %v2258 = vunpack.c.h.b16 %v1503
      %v2259 = vunpack.c.l.b16 %v1504
      %v2260 = vunpack.c.h.b16 %v1504
      %v2261 = vunpack.c.l.b16 %v1505
      %v2262 = vunpack.c.h.b16 %v1505
      %v2263 = vunpack.c.l.b16 %v1506
      %v2264 = vunpack.c.h.b16 %v1506
      %v2265 = vunpack.c.l.b16 %v1507
      %v2266 = vunpack.c.h.b16 %v1507
      %v2267 = vunpack.c.l.b16 %v1508
      %v2268 = vunpack.c.h.b16 %v1508
      %v2269 = vunpack.c.l.b16 %v1509
      %v2270 = vunpack.c.h.b16 %v1509
      %v2271 = vunpack.c.l.b16 %v1510
      %v2272 = vunpack.c.h.b16 %v1510
      %v2273 = vunpack.c.l.b16 %v1511
      %v2274 = vunpack.c.h.b16 %v1511
      %v2275 = vunpack.c.l.b16 %v1512
      %v2276 = vunpack.c.h.b16 %v1512
      %v2277 = vunpack.c.l.b16 %v1513
      %v2278 = vunpack.c.h.b16 %v1513
      %v2279 = vunpack.c.l.b16 %v1514
      %v2280 = vunpack.c.h.b16 %v1514
      %v2281 = vunpack.c.l.b16 %v1515
      %v2282 = vunpack.c.h.b16 %v1515
      %v2283 = vunpack.c.l.b16 %v1516
      %v2284 = vunpack.c.h.b16 %v1516
      %v2285 = vunpack.c.l.b16 %v1517
      %v2286 = vunpack.c.h.b16 %v1517
      %v2287 = vunpack.c.l.b16 %v1518
      %v2288 = vunpack.c.h.b16 %v1518
      %v2289 = vunpack.c.l.b16 %v1519
      %v2290 = vunpack.c.h.b16 %v1519
      %v2291 = vunpack.c.l.b16 %v1520
      %v2292 = vunpack.c.h.b16 %v1520
      %v2293 = vunpack.c.l.b16 %v1521
      %v2294 = vunpack.c.h.b16 %v1521
      %v2295 = vunpack.c.l.b16 %v1522
      %v2296 = vunpack.c.h.b16 %v1522
      %v2297 = vunpack.c.l.b16 %v1523
      %v2298 = vunpack.c.h.b16 %v1523
      %v2299 = vunpack.c.l.b16 %v1524
      %v2300 = vunpack.c.h.b16 %v1524
      %v2301 = vunpack.c.l.b16 %v1525
      %v2302 = vunpack.c.h.b16 %v1525
      %v2303 = vunpack.c.l.b16 %v1526
      %v2304 = vunpack.c.h.b16 %v1526
      %v2305 = vunpack.c.l.b16 %v1527
      %v2306 = vunpack.c.h.b16 %v1527
      %v2307 = vunpack.c.l.b16 %v1528
      %v2308 = vunpack.c.h.b16 %v1528
      %v2309 = vunpack.c.l.b16 %v1529
      %v2310 = vunpack.c.h.b16 %v1529
      %v2311 = vunpack.c.l.b16 %v1530
      %v2312 = vunpack.c.h.b16 %v1530
      %v2313 = vunpack.c.l.b16 %v1531
      %v2314 = vunpack.c.h.b16 %v1531
      %v2315 = vunpack.c.l.b16 %v1532
      %v2316 = vunpack.c.h.b16 %v1532
      %v2317 = vunpack.c.l.b16 %v1533
      %v2318 = vunpack.c.h.b16 %v1533
      %v2319 = vunpack.c.l.b16 %v1534
      %v2320 = vunpack.c.h.b16 %v1534
      %v2321 = vunpack.c.l.b16 %v1535
      %v2322 = vunpack.c.h.b16 %v1535
      %v2323 = vunpack.c.l.b16 %v1536
      %v2324 = vunpack.c.h.b16 %v1536
      %v2325 = vunpack.c.l.b16 %v1537
      %v2326 = vunpack.c.h.b16 %v1537
      %v2327 = vunpack.c.l.b16 %v1538
      %v2328 = vunpack.c.h.b16 %v1538
      %v2329 = vunpack.c.l.b16 %v1539
      %v2330 = vunpack.c.h.b16 %v1539
      %v2331 = vunpack.c.l.b16 %v1540
      %v2332 = vunpack.c.h.b16 %v1540
      %v2333 = vunpack.c.l.b16 %v1541
      %v2334 = vunpack.c.h.b16 %v1541
      %v2335 = vunpack.c.l.b16 %v1542
      %v2336 = vunpack.c.h.b16 %v1542
      %v2337 = vunpack.c.l.b16 %v1543
      %v2338 = vunpack.c.h.b16 %v1543
      %v2339 = vunpack.c.l.b16 %v1544
      %v2340 = vunpack.c.h.b16 %v1544
      %v2341 = vunpack.c.l.b16 %v1545
      %v2342 = vunpack.c.h.b16 %v1545
      %v2343 = vunpack.c.l.b16 %v1546
      %v2344 = vunpack.c.h.b16 %v1546
      %v2345 = vunpack.c.l.b16 %v1547
      %v2346 = vunpack.c.h.b16 %v1547
      %v2347 = vunpack.c.l.b16 %v1548
      %v2348 = vunpack.c.h.b16 %v1548
      %v2349 = vpack.c.b16 %v2097, %v2093
      %v2350 = vpack.c.b16 %v2098, %v2094
      %v2351 = vpack.c.b16 %v2099, %v2095
      %v2352 = vpack.c.b16 %v2100, %v2096
      %v2353 = vpack.c.b16 %v2105, %v2101
      %v2354 = vpack.c.b16 %v2106, %v2102
      %v2355 = vpack.c.b16 %v2107, %v2103
      %v2356 = vpack.c.b16 %v2108, %v2104
      %v2357 = vpack.c.b16 %v2113, %v2109
      %v2358 = vpack.c.b16 %v2114, %v2110
      %v2359 = vpack.c.b16 %v2115, %v2111
      %v2360 = vpack.c.b16 %v2116, %v2112
      %v2361 = vpack.c.b16 %v2121, %v2117
      %v2362 = vpack.c.b16 %v2122, %v2118
      %v2363 = vpack.c.b16 %v2123, %v2119
      %v2364 = vpack.c.b16 %v2124, %v2120
      %v2365 = vpack.c.b16 %v2129, %v2125
      %v2366 = vpack.c.b16 %v2130, %v2126
      %v2367 = vpack.c.b16 %v2131, %v2127
      %v2368 = vpack.c.b16 %v2132, %v2128
      %v2369 = vpack.c.b16 %v2137, %v2133
      %v2370 = vpack.c.b16 %v2138, %v2134
      %v2371 = vpack.c.b16 %v2139, %v2135
      %v2372 = vpack.c.b16 %v2140, %v2136
      %v2373 = vpack.c.b16 %v2145, %v2141
      %v2374 = vpack.c.b16 %v2146, %v2142
      %v2375 = vpack.c.b16 %v2147, %v2143
      %v2376 = vpack.c.b16 %v2148, %v2144
      %v2377 = vpack.c.b16 %v2153, %v2149
      %v2378 = vpack.c.b16 %v2154, %v2150
      %v2379 = vpack.c.b16 %v2155, %v2151
      %v2380 = vpack.c.b16 %v2156, %v2152
      %v2381 = vpack.c.b16 %v2161, %v2157
      %v2382 = vpack.c.b16 %v2162, %v2158
      %v2383 = vpack.c.b16 %v2163, %v2159
      %v2384 = vpack.c.b16 %v2164, %v2160
      %v2385 = vpack.c.b16 %v2169, %v2165
      %v2386 = vpack.c.b16 %v2170, %v2166
      %v2387 = vpack.c.b16 %v2171, %v2167
      %v2388 = vpack.c.b16 %v2172, %v2168
      %v2389 = vpack.c.b16 %v2177, %v2173
      %v2390 = vpack.c.b16 %v2178, %v2174
      %v2391 = vpack.c.b16 %v2179, %v2175
      %v2392 = vpack.c.b16 %v2180, %v2176
      %v2393 = vpack.c.b16 %v2185, %v2181
      %v2394 = vpack.c.b16 %v2186, %v2182
      %v2395 = vpack.c.b16 %v2187, %v2183
      %v2396 = vpack.c.b16 %v2188, %v2184
      %v2397 = vpack.c.b16 %v2193, %v2189
      %v2398 = vpack.c.b16 %v2194, %v2190
      %v2399 = vpack.c.b16 %v2195, %v2191
      %v2400 = vpack.c.b16 %v2196, %v2192
      %v2401 = vpack.c.b16 %v2201, %v2197
      %v2402 = vpack.c.b16 %v2202, %v2198
      %v2403 = vpack.c.b16 %v2203, %v2199
      %v2404 = vpack.c.b16 %v2204, %v2200
      %v2405 = vpack.c.b16 %v2209, %v2205
      %v2406 = vpack.c.b16 %v2210, %v2206
      %v2407 = vpack.c.b16 %v2211, %v2207
      %v2408 = vpack.c.b16 %v2212, %v2208
      %v2409 = vpack.c.b16 %v2217, %v2213
      %v2410 = vpack.c.b16 %v2218, %v2214
      %v2411 = vpack.c.b16 %v2219, %v2215
      %v2412 = vpack.c.b16 %v2220, %v2216
      %v2413 = vpack.c.b16 %v2225, %v2221
      %v2414 = vpack.c.b16 %v2226, %v2222
      %v2415 = vpack.c.b16 %v2227, %v2223
      %v2416 = vpack.c.b16 %v2228, %v2224
      %v2417 = vpack.c.b16 %v2233, %v2229
      %v2418 = vpack.c.b16 %v2234, %v2230
      %v2419 = vpack.c.b16 %v2235, %v2231
      %v2420 = vpack.c.b16 %v2236, %v2232
      %v2421 = vpack.c.b16 %v2241, %v2237
      %v2422 = vpack.c.b16 %v2242, %v2238
      %v2423 = vpack.c.b16 %v2243, %v2239
      %v2424 = vpack.c.b16 %v2244, %v2240
      %v2425 = vpack.c.b16 %v2249, %v2245
      %v2426 = vpack.c.b16 %v2250, %v2246
      %v2427 = vpack.c.b16 %v2251, %v2247
      %v2428 = vpack.c.b16 %v2252, %v2248
      %v2429 = vpack.c.b16 %v2257, %v2253
      %v2430 = vpack.c.b16 %v2258, %v2254
      %v2431 = vpack.c.b16 %v2259, %v2255
      %v2432 = vpack.c.b16 %v2260, %v2256
      %v2433 = vpack.c.b16 %v2265, %v2261
      %v2434 = vpack.c.b16 %v2266, %v2262
      %v2435 = vpack.c.b16 %v2267, %v2263
      %v2436 = vpack.c.b16 %v2268, %v2264
      %v2437 = vpack.c.b16 %v2273, %v2269
      %v2438 = vpack.c.b16 %v2274, %v2270
      %v2439 = vpack.c.b16 %v2275, %v2271
      %v2440 = vpack.c.b16 %v2276, %v2272
      %v2441 = vpack.c.b16 %v2281, %v2277
      %v2442 = vpack.c.b16 %v2282, %v2278
      %v2443 = vpack.c.b16 %v2283, %v2279
      %v2444 = vpack.c.b16 %v2284, %v2280
      %v2445 = vpack.c.b16 %v2289, %v2285
      %v2446 = vpack.c.b16 %v2290, %v2286
      %v2447 = vpack.c.b16 %v2291, %v2287
      %v2448 = vpack.c.b16 %v2292, %v2288
      %v2449 = vpack.c.b16 %v2297, %v2293
      %v2450 = vpack.c.b16 %v2298, %v2294
      %v2451 = vpack.c.b16 %v2299, %v2295
      %v2452 = vpack.c.b16 %v2300, %v2296
      %v2453 = vpack.c.b16 %v2305, %v2301
      %v2454 = vpack.c.b16 %v2306, %v2302
      %v2455 = vpack.c.b16 %v2307, %v2303
      %v2456 = vpack.c.b16 %v2308, %v2304
      %v2457 = vpack.c.b16 %v2313, %v2309
      %v2458 = vpack.c.b16 %v2314, %v2310
      %v2459 = vpack.c.b16 %v2315, %v2311
      %v2460 = vpack.c.b16 %v2316, %v2312
      %v2461 = vpack.c.b16 %v2321, %v2317
      %v2462 = vpack.c.b16 %v2322, %v2318
      %v2463 = vpack.c.b16 %v2323, %v2319
      %v2464 = vpack.c.b16 %v2324, %v2320
      %v2465 = vpack.c.b16 %v2329, %v2325
      %v2466 = vpack.c.b16 %v2330, %v2326
      %v2467 = vpack.c.b16 %v2331, %v2327
      %v2468 = vpack.c.b16 %v2332, %v2328
      %v2469 = vpack.c.b16 %v2337, %v2333
      %v2470 = vpack.c.b16 %v2338, %v2334
      %v2471 = vpack.c.b16 %v2339, %v2335
      %v2472 = vpack.c.b16 %v2340, %v2336
      %v2473 = vpack.c.b16 %v2345, %v2341
      %v2474 = vpack.c.b16 %v2346, %v2342
      %v2475 = vpack.c.b16 %v2347, %v2343
      %v2476 = vpack.c.b16 %v2348, %v2344
      %2605 = vmatprep.subr.bf16.mxu0 0
      %2606 = vmatpush1.bf16.msra.mxu0 %v1549
      %2607 = vmatprep.subr.bf16.mxu0 0
      %2608 = vmatpush1.bf16.msra.mxu0 %v1550
      %2609 = vmatprep.subr.bf16.mxu0 0
      %2610 = vmatpush1.bf16.msra.mxu0 %v1551
      %2611 = vmatprep.subr.bf16.mxu0 0
      %2612 = vmatpush1.bf16.msra.mxu0 %v1552
      %2613 = vmatprep.subr.bf16.mxu0 0
      %2614 = vmatpush1.bf16.msra.mxu0 %v1553
      %2615 = vmatprep.subr.bf16.mxu0 0
      %2616 = vmatpush1.bf16.msra.mxu0 %v1554
      %2617 = vmatprep.subr.bf16.mxu0 0
      %2618 = vmatpush1.bf16.msra.mxu0 %v1555
      %2619 = vmatprep.subr.bf16.mxu0 0
      %2620 = vmatpush1.bf16.msra.mxu0 %v1556
      %2621 = vmatprep.subr.bf16.mxu0 0
      %2622 = vmatpush1.bf16.msra.mxu0 %v1557
      %2623 = vmatprep.subr.bf16.mxu0 0
      %2624 = vmatpush1.bf16.msra.mxu0 %v1558
      %2625 = vmatprep.subr.bf16.mxu0 0
      %2626 = vmatpush1.bf16.msra.mxu0 %v1559
      %2627 = vmatprep.subr.bf16.mxu0 0
      %2628 = vmatpush1.bf16.msra.mxu0 %v1560
      %2629 = vmatprep.subr.bf16.mxu0 0
      %2630 = vmatpush1.bf16.msra.mxu0 %v1561
      %2631 = vmatprep.subr.bf16.mxu0 0
      %2632 = vmatpush1.bf16.msra.mxu0 %v1562
      %2633 = vmatprep.subr.bf16.mxu0 0
      %2634 = vmatpush1.bf16.msra.mxu0 %v1563
      %2635 = vmatprep.subr.bf16.mxu0 0
      %2636 = vmatpush1.bf16.msra.mxu0 %v1564
      %2637 = vmatprep.mubr.bf16.mxu0 %v2350
      %2638 = vmatmul.mubr.bf16.gmra.mrb[0].mxu0 %v2349
      %v2639 = vpop.f32.mrb[0].mxu0
      %v2640 = vadd.f32 %v1648, %v2639
      %v2641 = vpop.f32.mrb[0].mxu0
      %v2642 = vpop.f32.mrb[0].mxu0
      %v2643 = vadd.f32 %v1653, %v2642
      %v2644 = vpop.f32.mrb[0].mxu0
      %2645 = vmatprep.mubr.bf16.mxu0 %v2354
      %2646 = vmatmul.mubr.bf16.gmra.mrb[0].mxu0 %v2353
      %v2647 = vpop.f32.mrb[0].mxu0
      %v2648 = vadd.f32 %v1658, %v2647
      %v2649 = vpop.f32.mrb[0].mxu0
      %v2650 = vpop.f32.mrb[0].mxu0
      %v2651 = vadd.f32 %v1663, %v2650
      %v2652 = vpop.f32.mrb[0].mxu0
      %2653 = vmatprep.mubr.bf16.mxu0 %v2358
      %2654 = vmatmul.mubr.bf16.gmra.mrb[0].mxu0 %v2357
      %v2655 = vpop.f32.mrb[0].mxu0
      %v2656 = vadd.f32 %v1668, %v2655
      %v2657 = vpop.f32.mrb[0].mxu0
      %v2658 = vpop.f32.mrb[0].mxu0
      %v2659 = vadd.f32 %v1673, %v2658
      %v2660 = vpop.f32.mrb[0].mxu0
      %2661 = vmatprep.mubr.bf16.mxu0 %v2362
      %2662 = vmatmul.mubr.bf16.gmra.mrb[0].mxu0 %v2361
      %v2663 = vpop.f32.mrb[0].mxu0
      %v2664 = vadd.f32 %v1678, %v2663
      %v2665 = vpop.f32.mrb[0].mxu0
      %v2666 = vpop.f32.mrb[0].mxu0
      %v2667 = vadd.f32 %v1683, %v2666
      %v2668 = vpop.f32.mrb[0].mxu0
      %2669 = vmatprep.mubr.bf16.mxu0 %v2366
      %2670 = vmatmul.mubr.bf16.gmra.mrb[0].mxu0 %v2365
      %v2671 = vpop.f32.mrb[0].mxu0
      %v2672 = vadd.f32 %v1688, %v2671
      %v2673 = vpop.f32.mrb[0].mxu0
      %v2674 = vpop.f32.mrb[0].mxu0
      %v2675 = vadd.f32 %v1693, %v2674
      %v2676 = vpop.f32.mrb[0].mxu0
      %2677 = vmatprep.mubr.bf16.mxu0 %v2370
      %2678 = vmatmul.mubr.bf16.gmra.mrb[0].mxu0 %v2369
      %v2679 = vpop.f32.mrb[0].mxu0
      %v2680 = vadd.f32 %v1698, %v2679
      %v2681 = vpop.f32.mrb[0].mxu0
      %v2682 = vpop.f32.mrb[0].mxu0
      %v2683 = vadd.f32 %v1703, %v2682
      %v2684 = vpop.f32.mrb[0].mxu0
      %2685 = vmatprep.mubr.bf16.mxu0 %v2374
      %2686 = vmatmul.mubr.bf16.gmra.mrb[0].mxu0 %v2373
      %v2687 = vpop.f32.mrb[0].mxu0
      %v2688 = vadd.f32 %v1708, %v2687
      %v2689 = vpop.f32.mrb[0].mxu0
      %v2690 = vpop.f32.mrb[0].mxu0
      %v2691 = vadd.f32 %v1713, %v2690
      %v2692 = vpop.f32.mrb[0].mxu0
      %2693 = vmatprep.mubr.bf16.mxu0 %v2378
      %2694 = vmatmul.mubr.bf16.gmra.mrb[0].mxu0 %v2377
      %v2695 = vpop.f32.mrb[0].mxu0
      %v2696 = vadd.f32 %v1718, %v2695
      %v2697 = vpop.f32.mrb[0].mxu0
      %v2698 = vpop.f32.mrb[0].mxu0
      %v2699 = vadd.f32 %v1723, %v2698
      %v2700 = vpop.f32.mrb[0].mxu0
      %2701 = vmatprep.mubr.bf16.mxu0 %v2382
      %2702 = vmatmul.mubr.bf16.gmra.mrb[0].mxu0 %v2381
      %v2703 = vpop.f32.mrb[0].mxu0
      %v2704 = vadd.f32 %v1728, %v2703
      %v2705 = vpop.f32.mrb[0].mxu0
      %v2706 = vpop.f32.mrb[0].mxu0
      %v2707 = vadd.f32 %v1733, %v2706
      %v2708 = vpop.f32.mrb[0].mxu0
      %2709 = vmatprep.mubr.bf16.mxu0 %v2386
      %2710 = vmatmul.mubr.bf16.gmra.mrb[0].mxu0 %v2385
      %v2711 = vpop.f32.mrb[0].mxu0
      %v2712 = vadd.f32 %v1738, %v2711
      %v2713 = vpop.f32.mrb[0].mxu0
      %v2714 = vpop.f32.mrb[0].mxu0
      %v2715 = vadd.f32 %v1743, %v2714
      %v2716 = vpop.f32.mrb[0].mxu0
      %2717 = vmatprep.mubr.bf16.mxu0 %v2390
      %2718 = vmatmul.mubr.bf16.gmra.mrb[0].mxu0 %v2389
      %v2719 = vpop.f32.mrb[0].mxu0
      %v2720 = vadd.f32 %v1748, %v2719
      %v2721 = vpop.f32.mrb[0].mxu0
      %v2722 = vpop.f32.mrb[0].mxu0
      %v2723 = vadd.f32 %v1753, %v2722
      %v2724 = vpop.f32.mrb[0].mxu0
      %2725 = vmatprep.mubr.bf16.mxu0 %v2394
      %2726 = vmatmul.mubr.bf16.gmra.mrb[0].mxu0 %v2393
      %v2727 = vpop.f32.mrb[0].mxu0
      %v2728 = vadd.f32 %v1758, %v2727
      %v2729 = vpop.f32.mrb[0].mxu0
      %v2730 = vpop.f32.mrb[0].mxu0
      %v2731 = vadd.f32 %v1763, %v2730
      %v2732 = vpop.f32.mrb[0].mxu0
      %2733 = vmatprep.mubr.bf16.mxu0 %v2398
      %2734 = vmatmul.mubr.bf16.gmra.mrb[0].mxu0 %v2397
      %v2735 = vpop.f32.mrb[0].mxu0
      %v2736 = vadd.f32 %v1768, %v2735
      %v2737 = vpop.f32.mrb[0].mxu0
      %v2738 = vpop.f32.mrb[0].mxu0
      %v2739 = vadd.f32 %v1773, %v2738
      %v2740 = vpop.f32.mrb[0].mxu0
      %2741 = vmatprep.mubr.bf16.mxu0 %v2402
      %2742 = vmatmul.mubr.bf16.gmra.mrb[0].mxu0 %v2401
      %v2743 = vpop.f32.mrb[0].mxu0
      %v2744 = vadd.f32 %v1778, %v2743
      %v2745 = vpop.f32.mrb[0].mxu0
      %v2746 = vpop.f32.mrb[0].mxu0
      %v2747 = vadd.f32 %v1783, %v2746
      %v2748 = vpop.f32.mrb[0].mxu0
      %2749 = vmatprep.mubr.bf16.mxu0 %v2406
      %2750 = vmatmul.mubr.bf16.gmra.mrb[0].mxu0 %v2405
      %v2751 = vpop.f32.mrb[0].mxu0
      %v2752 = vadd.f32 %v1788, %v2751
      %v2753 = vpop.f32.mrb[0].mxu0
      %v2754 = vpop.f32.mrb[0].mxu0
      %v2755 = vadd.f32 %v1793, %v2754
      %v2756 = vpop.f32.mrb[0].mxu0
      %2757 = vmatprep.mubr.bf16.mxu0 %v2410
      %2758 = vmatmul.mubr.bf16.gmra.mrb[0].mxu0 %v2409
      %v2759 = vpop.f32.mrb[0].mxu0
      %v2760 = vadd.f32 %v1798, %v2759
      %v2761 = vpop.f32.mrb[0].mxu0
      %v2762 = vpop.f32.mrb[0].mxu0
      %v2763 = vadd.f32 %v1803, %v2762
      %v2764 = vpop.f32.mrb[0].mxu0
      %2765 = vmatprep.mubr.bf16.mxu0 %v2414
      %2766 = vmatmul.mubr.bf16.gmra.mrb[0].mxu0 %v2413
      %v2767 = vpop.f32.mrb[0].mxu0
      %v2768 = vadd.f32 %v1808, %v2767
      %v2769 = vpop.f32.mrb[0].mxu0
      %v2770 = vpop.f32.mrb[0].mxu0
      %v2771 = vadd.f32 %v1813, %v2770
      %v2772 = vpop.f32.mrb[0].mxu0
      %2773 = vmatprep.mubr.bf16.mxu0 %v2418
      %2774 = vmatmul.mubr.bf16.gmra.mrb[0].mxu0 %v2417
      %v2775 = vpop.f32.mrb[0].mxu0
      %v2776 = vadd.f32 %v1818, %v2775
      %v2777 = vpop.f32.mrb[0].mxu0
      %v2778 = vpop.f32.mrb[0].mxu0
      %v2779 = vadd.f32 %v1823, %v2778
      %v2780 = vpop.f32.mrb[0].mxu0
      %2781 = vmatprep.mubr.bf16.mxu0 %v2422
      %2782 = vmatmul.mubr.bf16.gmra.mrb[0].mxu0 %v2421
      %v2783 = vpop.f32.mrb[0].mxu0
      %v2784 = vadd.f32 %v1828, %v2783
      %v2785 = vpop.f32.mrb[0].mxu0
      %v2786 = vpop.f32.mrb[0].mxu0
      %v2787 = vadd.f32 %v1833, %v2786
      %v2788 = vpop.f32.mrb[0].mxu0
      %2789 = vmatprep.mubr.bf16.mxu0 %v2426
      %2790 = vmatmul.mubr.bf16.gmra.mrb[0].mxu0 %v2425
      %v2791 = vpop.f32.mrb[0].mxu0
      %v2792 = vadd.f32 %v1838, %v2791
      %v2793 = vpop.f32.mrb[0].mxu0
      %v2794 = vpop.f32.mrb[0].mxu0
      %v2795 = vadd.f32 %v1843, %v2794
      %v2796 = vpop.f32.mrb[0].mxu0
      %2797 = vmatprep.mubr.bf16.mxu0 %v2430
      %2798 = vmatmul.mubr.bf16.gmra.mrb[0].mxu0 %v2429
      %v2799 = vpop.f32.mrb[0].mxu0
      %v2800 = vadd.f32 %v1848, %v2799
      %v2801 = vpop.f32.mrb[0].mxu0
      %v2802 = vpop.f32.mrb[0].mxu0
      %v2803 = vadd.f32 %v1853, %v2802
      %v2804 = vpop.f32.mrb[0].mxu0
      %2805 = vmatprep.mubr.bf16.mxu0 %v2434
      %2806 = vmatmul.mubr.bf16.gmra.mrb[0].mxu0 %v2433
      %v2807 = vpop.f32.mrb[0].mxu0
      %v2808 = vadd.f32 %v1858, %v2807
      %v2809 = vpop.f32.mrb[0].mxu0
      %v2810 = vpop.f32.mrb[0].mxu0
      %v2811 = vadd.f32 %v1863, %v2810
      %v2812 = vpop.f32.mrb[0].mxu0
      %2813 = vmatprep.mubr.bf16.mxu0 %v2438
      %2814 = vmatmul.mubr.bf16.gmra.mrb[0].mxu0 %v2437
      %v2815 = vpop.f32.mrb[0].mxu0
      %v2816 = vadd.f32 %v1868, %v2815
      %v2817 = vpop.f32.mrb[0].mxu0
      %v2818 = vpop.f32.mrb[0].mxu0
      %v2819 = vadd.f32 %v1873, %v2818
      %v2820 = vpop.f32.mrb[0].mxu0
      %2821 = vmatprep.mubr.bf16.mxu0 %v2442
      %2822 = vmatmul.mubr.bf16.gmra.mrb[0].mxu0 %v2441
      %v2823 = vpop.f32.mrb[0].mxu0
      %v2824 = vadd.f32 %v1878, %v2823
      %v2825 = vpop.f32.mrb[0].mxu0
      %v2826 = vpop.f32.mrb[0].mxu0
      %v2827 = vadd.f32 %v1883, %v2826
      %v2828 = vpop.f32.mrb[0].mxu0
      %2829 = vmatprep.mubr.bf16.mxu0 %v2446
      %2830 = vmatmul.mubr.bf16.gmra.mrb[0].mxu0 %v2445
      %v2831 = vpop.f32.mrb[0].mxu0
      %v2832 = vadd.f32 %v1888, %v2831
      %v2833 = vpop.f32.mrb[0].mxu0
      %v2834 = vpop.f32.mrb[0].mxu0
      %v2835 = vadd.f32 %v1893, %v2834
      %v2836 = vpop.f32.mrb[0].mxu0
      %2837 = vmatprep.mubr.bf16.mxu0 %v2450
      %2838 = vmatmul.mubr.bf16.gmra.mrb[0].mxu0 %v2449
      %v2839 = vpop.f32.mrb[0].mxu0
      %v2840 = vadd.f32 %v1898, %v2839
      %v2841 = vpop.f32.mrb[0].mxu0
      %v2842 = vpop.f32.mrb[0].mxu0
      %v2843 = vadd.f32 %v1903, %v2842
      %v2844 = vpop.f32.mrb[0].mxu0
      %2845 = vmatprep.mubr.bf16.mxu0 %v2454
      %2846 = vmatmul.mubr.bf16.gmra.mrb[0].mxu0 %v2453
      %v2847 = vpop.f32.mrb[0].mxu0
      %v2848 = vadd.f32 %v1908, %v2847
      %v2849 = vpop.f32.mrb[0].mxu0
      %v2850 = vpop.f32.mrb[0].mxu0
      %v2851 = vadd.f32 %v1913, %v2850
      %v2852 = vpop.f32.mrb[0].mxu0
      %2853 = vmatprep.mubr.bf16.mxu0 %v2458
      %2854 = vmatmul.mubr.bf16.gmra.mrb[0].mxu0 %v2457
      %v2855 = vpop.f32.mrb[0].mxu0
      %v2856 = vadd.f32 %v1918, %v2855
      %v2857 = vpop.f32.mrb[0].mxu0
      %v2858 = vpop.f32.mrb[0].mxu0
      %v2859 = vadd.f32 %v1923, %v2858
      %v2860 = vpop.f32.mrb[0].mxu0
      %2861 = vmatprep.mubr.bf16.mxu0 %v2462
      %2862 = vmatmul.mubr.bf16.gmra.mrb[0].mxu0 %v2461
      %v2863 = vpop.f32.mrb[0].mxu0
      %v2864 = vadd.f32 %v1928, %v2863
      %v2865 = vpop.f32.mrb[0].mxu0
      %v2866 = vpop.f32.mrb[0].mxu0
      %v2867 = vadd.f32 %v1933, %v2866
      %v2868 = vpop.f32.mrb[0].mxu0
      %2869 = vmatprep.mubr.bf16.mxu0 %v2466
      %2870 = vmatmul.mubr.bf16.gmra.mrb[0].mxu0 %v2465
      %v2871 = vpop.f32.mrb[0].mxu0
      %v2872 = vadd.f32 %v1938, %v2871
      %v2873 = vpop.f32.mrb[0].mxu0
      %v2874 = vpop.f32.mrb[0].mxu0
      %v2875 = vadd.f32 %v1943, %v2874
      %v2876 = vpop.f32.mrb[0].mxu0
      %2877 = vmatprep.mubr.bf16.mxu0 %v2470
      %2878 = vmatmul.mubr.bf16.gmra.mrb[0].mxu0 %v2469
      %v2879 = vpop.f32.mrb[0].mxu0
      %v2880 = vadd.f32 %v1948, %v2879
      %v2881 = vpop.f32.mrb[0].mxu0
      %v2882 = vpop.f32.mrb[0].mxu0
      %v2883 = vadd.f32 %v1953, %v2882
      %v2884 = vpop.f32.mrb[0].mxu0
      %2885 = vmatprep.mubr.bf16.mxu0 %v2474
      %2886 = vmatmul.mubr.bf16.gmra.mrb[0].mxu0 %v2473
      %v2887 = vpop.f32.mrb[0].mxu0
      %v2888 = vadd.f32 %v1958, %v2887
      %v2889 = vpop.f32.mrb[0].mxu0
      %v2890 = vpop.f32.mrb[0].mxu0
      %v2891 = vadd.f32 %v1963, %v2890
      %v2892 = vpop.f32.mrb[0].mxu0
      %2893 = vdwg.mxu0
      %2894 = vmatprep.subr.bf16.mxu0 0
      %2895 = vmatpush1.bf16.msra.mxu0 %v1565
      %2896 = vmatprep.subr.bf16.mxu0 0
      %2897 = vmatpush1.bf16.msra.mxu0 %v1566
      %2898 = vmatprep.subr.bf16.mxu0 0
      %2899 = vmatpush1.bf16.msra.mxu0 %v1567
      %2900 = vmatprep.subr.bf16.mxu0 0
      %2901 = vmatpush1.bf16.msra.mxu0 %v1568
      %2902 = vmatprep.subr.bf16.mxu0 0
      %2903 = vmatpush1.bf16.msra.mxu0 %v1569
      %2904 = vmatprep.subr.bf16.mxu0 0
      %2905 = vmatpush1.bf16.msra.mxu0 %v1570
      %2906 = vmatprep.subr.bf16.mxu0 0
      %2907 = vmatpush1.bf16.msra.mxu0 %v1571
      %2908 = vmatprep.subr.bf16.mxu0 0
      %2909 = vmatpush1.bf16.msra.mxu0 %v1572
      %2910 = vmatprep.subr.bf16.mxu0 0
      %2911 = vmatpush1.bf16.msra.mxu0 %v1573
      %2912 = vmatprep.subr.bf16.mxu0 0
      %2913 = vmatpush1.bf16.msra.mxu0 %v1574
      %2914 = vmatprep.subr.bf16.mxu0 0
      %2915 = vmatpush1.bf16.msra.mxu0 %v1575
      %2916 = vmatprep.subr.bf16.mxu0 0
      %2917 = vmatpush1.bf16.msra.mxu0 %v1576
      %2918 = vmatprep.subr.bf16.mxu0 0
      %2919 = vmatpush1.bf16.msra.mxu0 %v1577
      %2920 = vmatprep.subr.bf16.mxu0 0
      %2921 = vmatpush1.bf16.msra.mxu0 %v1578
      %2922 = vmatprep.subr.bf16.mxu0 0
      %2923 = vmatpush1.bf16.msra.mxu0 %v1579
      %2924 = vmatprep.subr.bf16.mxu0 0
      %2925 = vmatpush1.bf16.msra.mxu0 %v1580
      %2926 = vmatprep.mubr.bf16.mxu0 %v2352
      %2927 = vmatmul.mubr.bf16.gmra.mrb[0].mxu0 %v2351
      %v2928 = vpop.f32.mrb[0].mxu0
      %v2929 = vadd.f32 %v2640, %v2928
      %v2930 = vpop.f32.mrb[0].mxu0
      %v2931 = vpop.f32.mrb[0].mxu0
      %v2932 = vadd.f32 %v2643, %v2931
      %v2933 = vpop.f32.mrb[0].mxu0
      %2934 = vmatprep.mubr.bf16.mxu0 %v2356
      %2935 = vmatmul.mubr.bf16.gmra.mrb[0].mxu0 %v2355
      %v2936 = vpop.f32.mrb[0].mxu0
      %v2937 = vadd.f32 %v2648, %v2936
      %v2938 = vpop.f32.mrb[0].mxu0
      %v2939 = vpop.f32.mrb[0].mxu0
      %v2940 = vadd.f32 %v2651, %v2939
      %v2941 = vpop.f32.mrb[0].mxu0
      %2942 = vmatprep.mubr.bf16.mxu0 %v2360
      %2943 = vmatmul.mubr.bf16.gmra.mrb[0].mxu0 %v2359
      %v2944 = vpop.f32.mrb[0].mxu0
      %v2945 = vadd.f32 %v2656, %v2944
      %v2946 = vpop.f32.mrb[0].mxu0
      %v2947 = vpop.f32.mrb[0].mxu0
      %v2948 = vadd.f32 %v2659, %v2947
      %v2949 = vpop.f32.mrb[0].mxu0
      %2950 = vmatprep.mubr.bf16.mxu0 %v2364
      %2951 = vmatmul.mubr.bf16.gmra.mrb[0].mxu0 %v2363
      %v2952 = vpop.f32.mrb[0].mxu0
      %v2953 = vadd.f32 %v2664, %v2952
      %v2954 = vpop.f32.mrb[0].mxu0
      %v2955 = vpop.f32.mrb[0].mxu0
      %v2956 = vadd.f32 %v2667, %v2955
      %v2957 = vpop.f32.mrb[0].mxu0
      %2958 = vmatprep.mubr.bf16.mxu0 %v2368
      %2959 = vmatmul.mubr.bf16.gmra.mrb[0].mxu0 %v2367
      %v2960 = vpop.f32.mrb[0].mxu0
      %v2961 = vadd.f32 %v2672, %v2960
      %v2962 = vpop.f32.mrb[0].mxu0
      %v2963 = vpop.f32.mrb[0].mxu0
      %v2964 = vadd.f32 %v2675, %v2963
      %v2965 = vpop.f32.mrb[0].mxu0
      %2966 = vmatprep.mubr.bf16.mxu0 %v2372
      %2967 = vmatmul.mubr.bf16.gmra.mrb[0].mxu0 %v2371
      %v2968 = vpop.f32.mrb[0].mxu0
      %v2969 = vadd.f32 %v2680, %v2968
      %v2970 = vpop.f32.mrb[0].mxu0
      %v2971 = vpop.f32.mrb[0].mxu0
      %v2972 = vadd.f32 %v2683, %v2971
      %v2973 = vpop.f32.mrb[0].mxu0
      %2974 = vmatprep.mubr.bf16.mxu0 %v2376
      %2975 = vmatmul.mubr.bf16.gmra.mrb[0].mxu0 %v2375
      %v2976 = vpop.f32.mrb[0].mxu0
      %v2977 = vadd.f32 %v2688, %v2976
      %v2978 = vpop.f32.mrb[0].mxu0
      %v2979 = vpop.f32.mrb[0].mxu0
      %v2980 = vadd.f32 %v2691, %v2979
      %v2981 = vpop.f32.mrb[0].mxu0
      %2982 = vmatprep.mubr.bf16.mxu0 %v2380
      %2983 = vmatmul.mubr.bf16.gmra.mrb[0].mxu0 %v2379
      %v2984 = vpop.f32.mrb[0].mxu0
      %v2985 = vadd.f32 %v2696, %v2984
      %v2986 = vpop.f32.mrb[0].mxu0
      %v2987 = vpop.f32.mrb[0].mxu0
      %v2988 = vadd.f32 %v2699, %v2987
      %v2989 = vpop.f32.mrb[0].mxu0
      %2990 = vmatprep.mubr.bf16.mxu0 %v2384
      %2991 = vmatmul.mubr.bf16.gmra.mrb[0].mxu0 %v2383
      %v2992 = vpop.f32.mrb[0].mxu0
      %v2993 = vadd.f32 %v2704, %v2992
      %v2994 = vpop.f32.mrb[0].mxu0
      %v2995 = vpop.f32.mrb[0].mxu0
      %v2996 = vadd.f32 %v2707, %v2995
      %v2997 = vpop.f32.mrb[0].mxu0
      %2998 = vmatprep.mubr.bf16.mxu0 %v2388
      %2999 = vmatmul.mubr.bf16.gmra.mrb[0].mxu0 %v2387
      %v3000 = vpop.f32.mrb[0].mxu0
      %v3001 = vadd.f32 %v2712, %v3000
      %v3002 = vpop.f32.mrb[0].mxu0
      %v3003 = vpop.f32.mrb[0].mxu0
      %v3004 = vadd.f32 %v2715, %v3003
      %v3005 = vpop.f32.mrb[0].mxu0
      %3006 = vmatprep.mubr.bf16.mxu0 %v2392
      %3007 = vmatmul.mubr.bf16.gmra.mrb[0].mxu0 %v2391
      %v3008 = vpop.f32.mrb[0].mxu0
      %v3009 = vadd.f32 %v2720, %v3008
      %v3010 = vpop.f32.mrb[0].mxu0
      %v3011 = vpop.f32.mrb[0].mxu0
      %v3012 = vadd.f32 %v2723, %v3011
      %v3013 = vpop.f32.mrb[0].mxu0
      %3014 = vmatprep.mubr.bf16.mxu0 %v2396
      %3015 = vmatmul.mubr.bf16.gmra.mrb[0].mxu0 %v2395
      %v3016 = vpop.f32.mrb[0].mxu0
      %v3017 = vadd.f32 %v2728, %v3016
      %v3018 = vpop.f32.mrb[0].mxu0
      %v3019 = vpop.f32.mrb[0].mxu0
      %v3020 = vadd.f32 %v2731, %v3019
      %v3021 = vpop.f32.mrb[0].mxu0
      %3022 = vmatprep.mubr.bf16.mxu0 %v2400
      %3023 = vmatmul.mubr.bf16.gmra.mrb[0].mxu0 %v2399
      %v3024 = vpop.f32.mrb[0].mxu0
      %v3025 = vadd.f32 %v2736, %v3024
      %v3026 = vpop.f32.mrb[0].mxu0
      %v3027 = vpop.f32.mrb[0].mxu0
      %v3028 = vadd.f32 %v2739, %v3027
      %v3029 = vpop.f32.mrb[0].mxu0
      %3030 = vmatprep.mubr.bf16.mxu0 %v2404
      %3031 = vmatmul.mubr.bf16.gmra.mrb[0].mxu0 %v2403
      %v3032 = vpop.f32.mrb[0].mxu0
      %v3033 = vadd.f32 %v2744, %v3032
      %v3034 = vpop.f32.mrb[0].mxu0
      %v3035 = vpop.f32.mrb[0].mxu0
      %v3036 = vadd.f32 %v2747, %v3035
      %v3037 = vpop.f32.mrb[0].mxu0
      %3038 = vmatprep.mubr.bf16.mxu0 %v2408
      %3039 = vmatmul.mubr.bf16.gmra.mrb[0].mxu0 %v2407
      %v3040 = vpop.f32.mrb[0].mxu0
      %v3041 = vadd.f32 %v2752, %v3040
      %v3042 = vpop.f32.mrb[0].mxu0
      %v3043 = vpop.f32.mrb[0].mxu0
      %v3044 = vadd.f32 %v2755, %v3043
      %v3045 = vpop.f32.mrb[0].mxu0
      %3046 = vmatprep.mubr.bf16.mxu0 %v2412
      %3047 = vmatmul.mubr.bf16.gmra.mrb[0].mxu0 %v2411
      %v3048 = vpop.f32.mrb[0].mxu0
      %v3049 = vadd.f32 %v2760, %v3048
      %v3050 = vpop.f32.mrb[0].mxu0
      %v3051 = vpop.f32.mrb[0].mxu0
      %v3052 = vadd.f32 %v2763, %v3051
      %v3053 = vpop.f32.mrb[0].mxu0
      %3054 = vmatprep.mubr.bf16.mxu0 %v2416
      %3055 = vmatmul.mubr.bf16.gmra.mrb[0].mxu0 %v2415
      %v3056 = vpop.f32.mrb[0].mxu0
      %v3057 = vadd.f32 %v2768, %v3056
      %v3058 = vpop.f32.mrb[0].mxu0
      %v3059 = vpop.f32.mrb[0].mxu0
      %v3060 = vadd.f32 %v2771, %v3059
      %v3061 = vpop.f32.mrb[0].mxu0
      %3062 = vmatprep.mubr.bf16.mxu0 %v2420
      %3063 = vmatmul.mubr.bf16.gmra.mrb[0].mxu0 %v2419
      %v3064 = vpop.f32.mrb[0].mxu0
      %v3065 = vadd.f32 %v2776, %v3064
      %v3066 = vpop.f32.mrb[0].mxu0
      %v3067 = vpop.f32.mrb[0].mxu0
      %v3068 = vadd.f32 %v2779, %v3067
      %v3069 = vpop.f32.mrb[0].mxu0
      %3070 = vmatprep.mubr.bf16.mxu0 %v2424
      %3071 = vmatmul.mubr.bf16.gmra.mrb[0].mxu0 %v2423
      %v3072 = vpop.f32.mrb[0].mxu0
      %v3073 = vadd.f32 %v2784, %v3072
      %v3074 = vpop.f32.mrb[0].mxu0
      %v3075 = vpop.f32.mrb[0].mxu0
      %v3076 = vadd.f32 %v2787, %v3075
      %v3077 = vpop.f32.mrb[0].mxu0
      %3078 = vmatprep.mubr.bf16.mxu0 %v2428
      %3079 = vmatmul.mubr.bf16.gmra.mrb[0].mxu0 %v2427
      %v3080 = vpop.f32.mrb[0].mxu0
      %v3081 = vadd.f32 %v2792, %v3080
      %v3082 = vpop.f32.mrb[0].mxu0
      %v3083 = vpop.f32.mrb[0].mxu0
      %v3084 = vadd.f32 %v2795, %v3083
      %v3085 = vpop.f32.mrb[0].mxu0
      %3086 = vmatprep.mubr.bf16.mxu0 %v2432
      %3087 = vmatmul.mubr.bf16.gmra.mrb[0].mxu0 %v2431
      %v3088 = vpop.f32.mrb[0].mxu0
      %v3089 = vadd.f32 %v2800, %v3088
      %v3090 = vpop.f32.mrb[0].mxu0
      %v3091 = vpop.f32.mrb[0].mxu0
      %v3092 = vadd.f32 %v2803, %v3091
      %v3093 = vpop.f32.mrb[0].mxu0
      %3094 = vmatprep.mubr.bf16.mxu0 %v2436
      %3095 = vmatmul.mubr.bf16.gmra.mrb[0].mxu0 %v2435
      %v3096 = vpop.f32.mrb[0].mxu0
      %v3097 = vadd.f32 %v2808, %v3096
      %v3098 = vpop.f32.mrb[0].mxu0
      %v3099 = vpop.f32.mrb[0].mxu0
      %v3100 = vadd.f32 %v2811, %v3099
      %v3101 = vpop.f32.mrb[0].mxu0
      %3102 = vmatprep.mubr.bf16.mxu0 %v2440
      %3103 = vmatmul.mubr.bf16.gmra.mrb[0].mxu0 %v2439
      %v3104 = vpop.f32.mrb[0].mxu0
      %v3105 = vadd.f32 %v2816, %v3104
      %v3106 = vpop.f32.mrb[0].mxu0
      %v3107 = vpop.f32.mrb[0].mxu0
      %v3108 = vadd.f32 %v2819, %v3107
      %v3109 = vpop.f32.mrb[0].mxu0
      %3110 = vmatprep.mubr.bf16.mxu0 %v2444
      %3111 = vmatmul.mubr.bf16.gmra.mrb[0].mxu0 %v2443
      %v3112 = vpop.f32.mrb[0].mxu0
      %v3113 = vadd.f32 %v2824, %v3112
      %v3114 = vpop.f32.mrb[0].mxu0
      %v3115 = vpop.f32.mrb[0].mxu0
      %v3116 = vadd.f32 %v2827, %v3115
      %v3117 = vpop.f32.mrb[0].mxu0
      %3118 = vmatprep.mubr.bf16.mxu0 %v2448
      %3119 = vmatmul.mubr.bf16.gmra.mrb[0].mxu0 %v2447
      %v3120 = vpop.f32.mrb[0].mxu0
      %v3121 = vadd.f32 %v2832, %v3120
      %v3122 = vpop.f32.mrb[0].mxu0
      %v3123 = vpop.f32.mrb[0].mxu0
      %v3124 = vadd.f32 %v2835, %v3123
      %v3125 = vpop.f32.mrb[0].mxu0
      %3126 = vmatprep.mubr.bf16.mxu0 %v2452
      %3127 = vmatmul.mubr.bf16.gmra.mrb[0].mxu0 %v2451
      %v3128 = vpop.f32.mrb[0].mxu0
      %v3129 = vadd.f32 %v2840, %v3128
      %v3130 = vpop.f32.mrb[0].mxu0
      %v3131 = vpop.f32.mrb[0].mxu0
      %v3132 = vadd.f32 %v2843, %v3131
      %v3133 = vpop.f32.mrb[0].mxu0
      %3134 = vmatprep.mubr.bf16.mxu0 %v2456
      %3135 = vmatmul.mubr.bf16.gmra.mrb[0].mxu0 %v2455
      %v3136 = vpop.f32.mrb[0].mxu0
      %v3137 = vadd.f32 %v2848, %v3136
      %v3138 = vpop.f32.mrb[0].mxu0
      %v3139 = vpop.f32.mrb[0].mxu0
      %v3140 = vadd.f32 %v2851, %v3139
      %v3141 = vpop.f32.mrb[0].mxu0
      %3142 = vmatprep.mubr.bf16.mxu0 %v2460
      %3143 = vmatmul.mubr.bf16.gmra.mrb[0].mxu0 %v2459
      %v3144 = vpop.f32.mrb[0].mxu0
      %v3145 = vadd.f32 %v2856, %v3144
      %v3146 = vpop.f32.mrb[0].mxu0
      %v3147 = vpop.f32.mrb[0].mxu0
      %v3148 = vadd.f32 %v2859, %v3147
      %v3149 = vpop.f32.mrb[0].mxu0
      %3150 = vmatprep.mubr.bf16.mxu0 %v2464
      %3151 = vmatmul.mubr.bf16.gmra.mrb[0].mxu0 %v2463
      %v3152 = vpop.f32.mrb[0].mxu0
      %v3153 = vadd.f32 %v2864, %v3152
      %v3154 = vpop.f32.mrb[0].mxu0
      %v3155 = vpop.f32.mrb[0].mxu0
      %v3156 = vadd.f32 %v2867, %v3155
      %v3157 = vpop.f32.mrb[0].mxu0
      %3158 = vmatprep.mubr.bf16.mxu0 %v2468
      %3159 = vmatmul.mubr.bf16.gmra.mrb[0].mxu0 %v2467
      %v3160 = vpop.f32.mrb[0].mxu0
      %v3161 = vadd.f32 %v2872, %v3160
      %v3162 = vpop.f32.mrb[0].mxu0
      %v3163 = vpop.f32.mrb[0].mxu0
      %v3164 = vadd.f32 %v2875, %v3163
      %v3165 = vpop.f32.mrb[0].mxu0
      %3166 = vmatprep.mubr.bf16.mxu0 %v2472
      %3167 = vmatmul.mubr.bf16.gmra.mrb[0].mxu0 %v2471
      %v3168 = vpop.f32.mrb[0].mxu0
      %v3169 = vadd.f32 %v2880, %v3168
      %v3170 = vpop.f32.mrb[0].mxu0
      %v3171 = vpop.f32.mrb[0].mxu0
      %v3172 = vadd.f32 %v2883, %v3171
      %v3173 = vpop.f32.mrb[0].mxu0
      %3174 = vmatprep.mubr.bf16.mxu0 %v2476
      %3175 = vmatmul.mubr.bf16.gmra.mrb[0].mxu0 %v2475
      %v3176 = vpop.f32.mrb[0].mxu0
      %v3177 = vadd.f32 %v2888, %v3176
      %v3178 = vpop.f32.mrb[0].mxu0
      %v3179 = vpop.f32.mrb[0].mxu0
      %v3180 = vadd.f32 %v2891, %v3179
      %v3181 = vpop.f32.mrb[0].mxu0
      %3182 = vdwg.mxu0
      %v3183 = vmax.f32 %v2929, 0.0
      %v3184 = vmax.f32 %v2932, 0.0
      %v3185 = vmax.f32 %v2937, 0.0
      %v3186 = vmax.f32 %v2940, 0.0
      %v3187 = vmax.f32 %v2945, 0.0
      %v3188 = vmax.f32 %v2948, 0.0
      %v3189 = vmax.f32 %v2953, 0.0
      %v3190 = vmax.f32 %v2956, 0.0
      %v3191 = vmax.f32 %v2961, 0.0
      %v3192 = vmax.f32 %v2964, 0.0
      %v3193 = vmax.f32 %v2969, 0.0
      %v3194 = vmax.f32 %v2972, 0.0
      %v3195 = vmax.f32 %v2977, 0.0
      %v3196 = vmax.f32 %v2980, 0.0
      %v3197 = vmax.f32 %v2985, 0.0
      %v3198 = vmax.f32 %v2988, 0.0
      %v3199 = vmax.f32 %v2993, 0.0
      %v3200 = vmax.f32 %v2996, 0.0
      %v3201 = vmax.f32 %v3001, 0.0
      %v3202 = vmax.f32 %v3004, 0.0
      %v3203 = vmax.f32 %v3009, 0.0
      %v3204 = vmax.f32 %v3012, 0.0
      %v3205 = vmax.f32 %v3017, 0.0
      %v3206 = vmax.f32 %v3020, 0.0
      %v3207 = vmax.f32 %v3025, 0.0
      %v3208 = vmax.f32 %v3028, 0.0
      %v3209 = vmax.f32 %v3033, 0.0
      %v3210 = vmax.f32 %v3036, 0.0
      %v3211 = vmax.f32 %v3041, 0.0
      %v3212 = vmax.f32 %v3044, 0.0
      %v3213 = vmax.f32 %v3049, 0.0
      %v3214 = vmax.f32 %v3052, 0.0
      %v3215 = vmax.f32 %v3057, 0.0
      %v3216 = vmax.f32 %v3060, 0.0
      %v3217 = vmax.f32 %v3065, 0.0
      %v3218 = vmax.f32 %v3068, 0.0
      %v3219 = vmax.f32 %v3073, 0.0
      %v3220 = vmax.f32 %v3076, 0.0
      %v3221 = vmax.f32 %v3081, 0.0
      %v3222 = vmax.f32 %v3084, 0.0
      %v3223 = vmax.f32 %v3089, 0.0
      %v3224 = vmax.f32 %v3092, 0.0
      %v3225 = vmax.f32 %v3097, 0.0
      %v3226 = vmax.f32 %v3100, 0.0
      %v3227 = vmax.f32 %v3105, 0.0
      %v3228 = vmax.f32 %v3108, 0.0
      %v3229 = vmax.f32 %v3113, 0.0
      %v3230 = vmax.f32 %v3116, 0.0
      %v3231 = vmax.f32 %v3121, 0.0
      %v3232 = vmax.f32 %v3124, 0.0
      %v3233 = vmax.f32 %v3129, 0.0
      %v3234 = vmax.f32 %v3132, 0.0
      %v3235 = vmax.f32 %v3137, 0.0
      %v3236 = vmax.f32 %v3140, 0.0
      %v3237 = vmax.f32 %v3145, 0.0
      %v3238 = vmax.f32 %v3148, 0.0
      %v3239 = vmax.f32 %v3153, 0.0
      %v3240 = vmax.f32 %v3156, 0.0
      %v3241 = vmax.f32 %v3161, 0.0
      %v3242 = vmax.f32 %v3164, 0.0
      %v3243 = vmax.f32 %v3169, 0.0
      %v3244 = vmax.f32 %v3172, 0.0
      %v3245 = vmax.f32 %v3177, 0.0
      %v3246 = vmax.f32 %v3180, 0.0
      %v3247 = vld [vmem:[%s5] sm:$0xff]
      %v3248 = vpack.c.bf16 %v3184, %v3183
      %v3249 = vpack.c.bf16 %v3186, %v3185
      %v3250 = vpack.c.bf16 %v3188, %v3187
      %v3251 = vpack.c.bf16 %v3190, %v3189
      %v3252 = vpack.c.bf16 %v3192, %v3191
      %v3253 = vpack.c.bf16 %v3194, %v3193
      %v3254 = vpack.c.bf16 %v3196, %v3195
      %v3255 = vpack.c.bf16 %v3198, %v3197
      %v3256 = vpack.c.bf16 %v3200, %v3199
      %v3257 = vpack.c.bf16 %v3202, %v3201
      %v3258 = vpack.c.bf16 %v3204, %v3203
      %v3259 = vpack.c.bf16 %v3206, %v3205
      %v3260 = vpack.c.bf16 %v3208, %v3207
      %v3261 = vpack.c.bf16 %v3210, %v3209
      %v3262 = vpack.c.bf16 %v3212, %v3211
      %v3263 = vpack.c.bf16 %v3214, %v3213
      %v3264 = vpack.c.bf16 %v3216, %v3215
      %v3265 = vpack.c.bf16 %v3218, %v3217
      %v3266 = vpack.c.bf16 %v3220, %v3219
      %v3267 = vpack.c.bf16 %v3222, %v3221
      %v3268 = vpack.c.bf16 %v3224, %v3223
      %v3269 = vpack.c.bf16 %v3226, %v3225
      %v3270 = vpack.c.bf16 %v3228, %v3227
      %v3271 = vpack.c.bf16 %v3230, %v3229
      %v3272 = vpack.c.bf16 %v3232, %v3231
      %v3273 = vpack.c.bf16 %v3234, %v3233
      %v3274 = vpack.c.bf16 %v3236, %v3235
      %v3275 = vpack.c.bf16 %v3238, %v3237
      %v3276 = vpack.c.bf16 %v3240, %v3239
      %v3277 = vpack.c.bf16 %v3242, %v3241
      %v3278 = vpack.c.bf16 %v3244, %v3243
      %v3279 = vpack.c.bf16 %v3246, %v3245
      %v3280 = vld [vmem:[%s6] sm:$0x7]
      %3282 = vset.pattern.permute.xlu0 0
      %3283 = vperm.xlu0 %3282, %v3280
      %v3284 = vpop.permute.xlu0 %3283
      %v3287 = vcombine.high %v3247, %v3247
      %v3289 = vunpack.c.l.s4 1983009808
      %v3290 = vunpack.c.0.s8 %v3289
      %v3291 = vlaneseq
      %v3292 = vshrl.u32 %v3291, 7
      %v3293 = vsub.s32 %v3290, %v3292
      %v3294 = vrot.slane %v3247, %v3293
      %v3296 = vunpack.c.l.s4 1983009808
      %v3297 = vunpack.c.0.s8 %v3296
      %v3298 = vlaneseq
      %v3299 = vshrl.u32 %v3298, 7
      %v3300 = vsub.s32 %v3297, %v3299
      %v3301 = vrot.slane %v3287, %v3300
      %v3302 = vcombine.high %v3294, %v3294
      %v3303 = vcombine.high %v3301, %v3301
      %3308 = vmatprep.subr.bf16.mxu0 0
      %3309 = vmatpush1.bf16.msra.mxu0 %v3248
      %3310 = vmatprep.subr.bf16.mxu0 0
      %3311 = vmatpush1.bf16.msra.mxu0 %v3249
      %3312 = vmatprep.subr.bf16.mxu0 0
      %3313 = vmatpush1.bf16.msra.mxu0 %v3250
      %3314 = vmatprep.subr.bf16.mxu0 0
      %3315 = vmatpush1.bf16.msra.mxu0 %v3251
      %3316 = vmatprep.subr.bf16.mxu0 0
      %3317 = vmatpush1.bf16.msra.mxu0 %v3252
      %3318 = vmatprep.subr.bf16.mxu0 0
      %3319 = vmatpush1.bf16.msra.mxu0 %v3253
      %3320 = vmatprep.subr.bf16.mxu0 0
      %3321 = vmatpush1.bf16.msra.mxu0 %v3254
      %3322 = vmatprep.subr.bf16.mxu0 0
      %3323 = vmatpush1.bf16.msra.mxu0 %v3255
      %3324 = vmatprep.subr.bf16.mxu0 0
      %3325 = vmatpush1.bf16.msra.mxu0 %v3256
      %3326 = vmatprep.subr.bf16.mxu0 0
      %3327 = vmatpush1.bf16.msra.mxu0 %v3257
      %3328 = vmatprep.subr.bf16.mxu0 0
      %3329 = vmatpush1.bf16.msra.mxu0 %v3258
      %3330 = vmatprep.subr.bf16.mxu0 0
      %3331 = vmatpush1.bf16.msra.mxu0 %v3259
      %3332 = vmatprep.subr.bf16.mxu0 0
      %3333 = vmatpush1.bf16.msra.mxu0 %v3260
      %3334 = vmatprep.subr.bf16.mxu0 0
      %3335 = vmatpush1.bf16.msra.mxu0 %v3261
      %3336 = vmatprep.subr.bf16.mxu0 0
      %3337 = vmatpush1.bf16.msra.mxu0 %v3262
      %3338 = vmatprep.subr.bf16.mxu0 0
      %3339 = vmatpush1.bf16.msra.mxu0 %v3263
      %3340 = vmatprep.mubr.bf16.mxu0 %v3302
      %3341 = vmatmul.mubr.bf16.gmra.mrb[0].mxu0 %v3294
      %v3342 = vpop.f32.mrb[0].mxu0
      %v3343 = vadd.f32 %v3284, %v3342
      %v3344 = vpop.f32.mrb[0].mxu0
      %v3345 = vpop.f32.mrb[0].mxu0
      %v3346 = vpop.f32.mrb[0].mxu0
      %3347 = vdwg.mxu0
      %3348 = vmatprep.subr.bf16.mxu0 0
      %3349 = vmatpush1.bf16.msra.mxu0 %v3264
      %3350 = vmatprep.subr.bf16.mxu0 0
      %3351 = vmatpush1.bf16.msra.mxu0 %v3265
      %3352 = vmatprep.subr.bf16.mxu0 0
      %3353 = vmatpush1.bf16.msra.mxu0 %v3266
      %3354 = vmatprep.subr.bf16.mxu0 0
      %3355 = vmatpush1.bf16.msra.mxu0 %v3267
      %3356 = vmatprep.subr.bf16.mxu0 0
      %3357 = vmatpush1.bf16.msra.mxu0 %v3268
      %3358 = vmatprep.subr.bf16.mxu0 0
      %3359 = vmatpush1.bf16.msra.mxu0 %v3269
      %3360 = vmatprep.subr.bf16.mxu0 0
      %3361 = vmatpush1.bf16.msra.mxu0 %v3270
      %3362 = vmatprep.subr.bf16.mxu0 0
      %3363 = vmatpush1.bf16.msra.mxu0 %v3271
      %3364 = vmatprep.subr.bf16.mxu0 0
      %3365 = vmatpush1.bf16.msra.mxu0 %v3272
      %3366 = vmatprep.subr.bf16.mxu0 0
      %3367 = vmatpush1.bf16.msra.mxu0 %v3273
      %3368 = vmatprep.subr.bf16.mxu0 0
      %3369 = vmatpush1.bf16.msra.mxu0 %v3274
      %3370 = vmatprep.subr.bf16.mxu0 0
      %3371 = vmatpush1.bf16.msra.mxu0 %v3275
      %3372 = vmatprep.subr.bf16.mxu0 0
      %3373 = vmatpush1.bf16.msra.mxu0 %v3276
      %3374 = vmatprep.subr.bf16.mxu0 0
      %3375 = vmatpush1.bf16.msra.mxu0 %v3277
      %3376 = vmatprep.subr.bf16.mxu0 0
      %3377 = vmatpush1.bf16.msra.mxu0 %v3278
      %3378 = vmatprep.subr.bf16.mxu0 0
      %3379 = vmatpush1.bf16.msra.mxu0 %v3279
      %3380 = vmatprep.mubr.bf16.mxu0 %v3303
      %3381 = vmatmul.mubr.bf16.gmra.mrb[0].mxu0 %v3301
      %v3382 = vpop.f32.mrb[0].mxu0
      %v3383 = vadd.f32 %v3343, %v3382
      %v3384 = vpop.f32.mrb[0].mxu0
      %v3385 = vpop.f32.mrb[0].mxu0
      %v3386 = vpop.f32.mrb[0].mxu0
      %3387 = vdwg.mxu0
      %v3388 = vadd.f32 %v3383, %v326
      %vm3389 = vcmask 518144
      %3390 = vst.msk [vmem:[%s324] sm:$0x7] %vm3389, %v3388
      %p3391 = scmp.lt.s32.totalorder %s22, 1
      %s3392 = scalar_select %p3391, %s22, 1
      %p3393 = scmp.lt.s32.totalorder %s23, 0
      %s3394 = scalar_select %p3393, %s23, 0
      %s3395 = sadd.s32 %s3394, %s3392
      %s3396 = smul.addr %s3395, 4
      %s3397 = scalar_lea.vmem %s7, %s3396
      // Predicated region
      $region49: #{pcn_decoder_forward.3} parent=47 // pred_check
        %p3398 = pneg %p209
      $region50: #{pcn_decoder_forward.3} parent=47 // pred_check_branch
        %3400 = sbr.rel (%p3398) target = $region52
      $region51: #{pcn_decoder_forward.3} parent=47 // pred_region
        _
      $region52: #{pcn_decoder_forward.3} parent=47 // pred_fallthru
        _
    $region48: #{pcn_decoder_forward.3} parent=5 // pred_fallthru
      _
    %p3401 = scmp.le.s32.totalorder 2, %s13
    // Predicated region
    $region53: #{pcn_decoder_forward.3} parent=5 // pred_check
      %p3402 = pneg %p3401
    $region54: #{pcn_decoder_forward.3} parent=5 // pred_check_branch
      %3404 = sbr.rel (%p3402) target = $region56
    $region55: #{pcn_decoder_forward.3} parent=5 // pred_region
      %s3405 = ssub.s32 %s13, 2
      // Predicated region
      $region57: #{pcn_decoder_forward.3} parent=55 // pred_check
        %p3406 = pneg %p215
      $region58: #{pcn_decoder_forward.3} parent=55 // pred_check_branch
        %3408 = sbr.rel (%p3406) target = $region60
      $region59: #{pcn_decoder_forward.3} parent=55 // pred_region
        %p3409 = scmp.lt.s32.totalorder %s24, 1
        %s3410 = scalar_select %p3409, %s24, 1
        %p3411 = scmp.lt.s32.totalorder %s25, 0
        %s3412 = scalar_select %p3411, %s25, 0
        %s3413 = sadd.s32 %s3412, %s3410
        %s3414 = smul.addr %s3413, 4
        %s3415 = scalar_lea.vmem %s7, %s3414
      $region60: #{pcn_decoder_forward.3} parent=55 // pred_fallthru
        _
    $region56: #{pcn_decoder_forward.3} parent=5 // pred_fallthru
      _
  $region6: #{pcn_decoder_forward.3} parent=0 // loop_footer
    %s17 = sadd.s32 1, %s13
  $region7: #{pcn_decoder_forward.3} parent=0 // loop_footer_branch
    %12 = sbr.rel target = $region3
  $region8: #{pcn_decoder_forward.3} parent=0 // loop_exit
    _

</llo_original>
